<compile_context>
chip_gen: v6e
topology: v6e:2x2x1
jax: 0.10.0
libtpu: 0.0.40
codegen_flags: <defaults>
</compile_context>

<pallas_src>
import jax
import jax.numpy as jnp
from jax.experimental import pallas as pl
from jax.experimental.pallas import tpu as pltpu

KSIZE = 7
PAD = 3


def decoder_kernel(xp_ref, w_ref, b_ref, o_ref):
    # xp_ref: (1, H+6, W+6, Cin)  reflection-padded input, bf16
    # w_ref : (7, 7*Cin, Cout)    conv weights, bf16, layout (dy, dx*Cin+cin, cout)
    # b_ref : (1, Cout)           conv bias, f32
    # o_ref : (1, H, W, Cout)     output tile
    _, H, W, Cout = o_ref.shape
    Cin = xp_ref.shape[-1]

    xp = xp_ref[0]  # (H+6, W+6, Cin), bf16

    acc = None
    for dy in range(KSIZE):
        rows = xp[dy:dy + H]                                      # (H, W+6, Cin)
        taps = [rows[:, dx:dx + W, :] for dx in range(KSIZE)]     # 7 x (H, W, Cin)
        strip = jnp.concatenate(taps, axis=-1)                    # (H, W, 7*Cin)
        patch = strip.reshape(H * W, KSIZE * Cin)                 # lane dim = 7*Cin
        contrib = jnp.dot(patch, w_ref[dy],
                          preferred_element_type=jnp.float32)     # (H*W, Cout) f32
        acc = contrib if acc is None else acc + contrib

    y = jnp.tanh(acc + b_ref[...])                                # bias + tanh in f32
    o_ref[...] = y.reshape(1, H, W, Cout).astype(o_ref.dtype)


@jax.jit
def decoder_generator_forward(x_nchw, w, b):
    # x_nchw: (N, Cin, H, W) f32 ; w: (7, 7, Cin, Cout) f32 ; b: (Cout,) f32
    n, cin, h, wd = x_nchw.shape
    cout = w.shape[-1]
    hp, wp = h + 2 * PAD, wd + 2 * PAD

    x = jnp.transpose(x_nchw, (0, 2, 3, 1))                       # NCHW -> NHWC
    # ReflectionPad2d(3): jnp 'reflect' matches PyTorch (no edge repeat).
    xp = jnp.pad(x, ((0, 0), (PAD, PAD), (PAD, PAD), (0, 0)),
                 mode="reflect").astype(jnp.bfloat16)
    wk = w.reshape(KSIZE, KSIZE * cin, cout).astype(jnp.bfloat16)
    bk = b.reshape(1, cout).astype(jnp.float32)

    out = pl.pallas_call(
        decoder_kernel,
        out_shape=jax.ShapeDtypeStruct((n, h, wd, cout), x_nchw.dtype),
        grid_spec=pltpu.PrefetchScalarGridSpec(
            num_scalar_prefetch=0,
            grid=(n,),
            in_specs=[
                pl.BlockSpec((1, hp, wp, cin), lambda i: (i, 0, 0, 0)),
                pl.BlockSpec((KSIZE, KSIZE * cin, cout), lambda i: (0, 0, 0)),
                pl.BlockSpec((1, cout), lambda i: (0, 0)),
            ],
            out_specs=pl.BlockSpec((1, h, wd, cout), lambda i: (i, 0, 0, 0)),
        ),
        compiler_params=pltpu.CompilerParams(
            dimension_semantics=("parallel",)),
    )(xp, wk, bk)

    return jnp.transpose(out, (0, 3, 1, 2))                       # NHWC -> NCHW


if __name__ == "__main__":
    key = jax.random.PRNGKey(0)
    N, CIN, COUT, H, W = 2, 64, 3, 16, 16                         # module defaults: 64 -> 3
    kx, kw, kb = jax.random.split(key, 3)

    x = jax.random.normal(kx, (N, CIN, H, W), jnp.float32)

    # weights_init: Conv weight ~ N(0, 0.02); Conv bias keeps the PyTorch
    # default uniform(+-1/sqrt(fan_in)) init (weights_init does not touch it).
    w = 0.02 * jax.random.normal(kw, (KSIZE, KSIZE, CIN, COUT), jnp.float32)
    fan_in = CIN * KSIZE * KSIZE
    bound = 1.0 / (fan_in ** 0.5)
    b = jax.random.uniform(kb, (COUT,), jnp.float32, minval=-bound, maxval=bound)

    out = jax.block_until_ready(decoder_generator_forward(x, w, b))
    assert out.shape == (N, COUT, H, W), out.shape
    assert bool(jnp.all(jnp.isfinite(out)))
    assert bool(jnp.all(jnp.abs(out) <= 1.0))                     # tanh range
    print("KERNEL_OK")
</pallas_src>

<mosaic_0001>
module attributes {stable_mosaic.version = 11 : i64} {
  func.func @decoder_kernel(%arg0: i32, %arg1: memref<1x22x22x64xbf16, #tpu.memory_space<vmem>>, %arg2: memref<7x448x3xbf16, #tpu.memory_space<vmem>>, %arg3: memref<1x3xf32, #tpu.memory_space<vmem>>, %arg4: memref<1x16x16x3xf32, #tpu.memory_space<vmem>>) attributes {dimension_semantics = [#tpu.dimension_semantics<parallel>], iteration_bounds = array<i64: 2>, scalar_prefetch = 0 : i64, scratch_operands = 0 : i64, tpu.core_type = #tpu.core_type<tc>, window_params = [{transform_indices = @transform_0, window_bounds = array<i64: 1, 22, 22, 64>}, {pipeline_mode = #tpu.pipeline_mode<synchronous>, transform_indices = @transform_1, window_bounds = array<i64: 7, 448, 3>}, {pipeline_mode = #tpu.pipeline_mode<synchronous>, transform_indices = @transform_2, window_bounds = array<i64: 1, 3>}, {transform_indices = @transform_3, window_bounds = array<i64: 1, 16, 16, 3>}]} {
    %c0 = arith.constant 0 : index
    %c0_0 = arith.constant 0 : index
    %c0_1 = arith.constant 0 : index
    %c0_2 = arith.constant 0 : index
    %0 = vector.load %arg1[%c0, %c0_0, %c0_1, %c0_2] : memref<1x22x22x64xbf16, #tpu.memory_space<vmem>>, vector<1x22x22x64xbf16>
    %1 = vector.shape_cast %0 : vector<1x22x22x64xbf16> to vector<22x22x64xbf16>
    %2 = vector.extract_strided_slice %1 {offsets = [0, 0, 0], sizes = [16, 22, 64], strides = [1, 1, 1]} : vector<22x22x64xbf16> to vector<16x22x64xbf16>
    %3 = vector.extract_strided_slice %2 {offsets = [0, 0, 0], sizes = [16, 16, 64], strides = [1, 1, 1]} : vector<16x22x64xbf16> to vector<16x16x64xbf16>
    %4 = vector.extract_strided_slice %2 {offsets = [0, 1, 0], sizes = [16, 16, 64], strides = [1, 1, 1]} : vector<16x22x64xbf16> to vector<16x16x64xbf16>
    %5 = vector.extract_strided_slice %2 {offsets = [0, 2, 0], sizes = [16, 16, 64], strides = [1, 1, 1]} : vector<16x22x64xbf16> to vector<16x16x64xbf16>
    %6 = vector.extract_strided_slice %2 {offsets = [0, 3, 0], sizes = [16, 16, 64], strides = [1, 1, 1]} : vector<16x22x64xbf16> to vector<16x16x64xbf16>
    %7 = vector.extract_strided_slice %2 {offsets = [0, 4, 0], sizes = [16, 16, 64], strides = [1, 1, 1]} : vector<16x22x64xbf16> to vector<16x16x64xbf16>
    %8 = vector.extract_strided_slice %2 {offsets = [0, 5, 0], sizes = [16, 16, 64], strides = [1, 1, 1]} : vector<16x22x64xbf16> to vector<16x16x64xbf16>
    %9 = vector.extract_strided_slice %2 {offsets = [0, 6, 0], sizes = [16, 16, 64], strides = [1, 1, 1]} : vector<16x22x64xbf16> to vector<16x16x64xbf16>
    %10 = tpu.concatenate %3, %4, %5, %6, %7, %8, %9 in 2 : vector<16x16x64xbf16>, vector<16x16x64xbf16>, vector<16x16x64xbf16>, vector<16x16x64xbf16>, vector<16x16x64xbf16>, vector<16x16x64xbf16>, vector<16x16x64xbf16> -> vector<16x16x448xbf16>
    %11 = vector.shape_cast %10 : vector<16x16x448xbf16> to vector<256x448xbf16>
    %c0_3 = arith.constant 0 : index
    %c0_4 = arith.constant 0 : index
    %c0_5 = arith.constant 0 : index
    %12 = vector.load %arg2[%c0_3, %c0_4, %c0_5] : memref<7x448x3xbf16, #tpu.memory_space<vmem>>, vector<1x448x3xbf16>
    %13 = vector.shape_cast %12 : vector<1x448x3xbf16> to vector<448x3xbf16>
    %cst = arith.constant dense<0.000000e+00> : vector<256x3xf32>
    %14 = tpu.matmul %11, %13, %cst {dimension_numbers = #tpu.dot_dimension_numbers<[1], [0], [0], [1], [0, 0, 1, 1], [], []>} : vector<256x448xbf16>, vector<448x3xbf16>, vector<256x3xf32> -> vector<256x3xf32>
    %15 = vector.extract_strided_slice %1 {offsets = [1, 0, 0], sizes = [16, 22, 64], strides = [1, 1, 1]} : vector<22x22x64xbf16> to vector<16x22x64xbf16>
    %16 = vector.extract_strided_slice %15 {offsets = [0, 0, 0], sizes = [16, 16, 64], strides = [1, 1, 1]} : vector<16x22x64xbf16> to vector<16x16x64xbf16>
    %17 = vector.extract_strided_slice %15 {offsets = [0, 1, 0], sizes = [16, 16, 64], strides = [1, 1, 1]} : vector<16x22x64xbf16> to vector<16x16x64xbf16>
    %18 = vector.extract_strided_slice %15 {offsets = [0, 2, 0], sizes = [16, 16, 64], strides = [1, 1, 1]} : vector<16x22x64xbf16> to vector<16x16x64xbf16>
    %19 = vector.extract_strided_slice %15 {offsets = [0, 3, 0], sizes = [16, 16, 64], strides = [1, 1, 1]} : vector<16x22x64xbf16> to vector<16x16x64xbf16>
    %20 = vector.extract_strided_slice %15 {offsets = [0, 4, 0], sizes = [16, 16, 64], strides = [1, 1, 1]} : vector<16x22x64xbf16> to vector<16x16x64xbf16>
    %21 = vector.extract_strided_slice %15 {offsets = [0, 5, 0], sizes = [16, 16, 64], strides = [1, 1, 1]} : vector<16x22x64xbf16> to vector<16x16x64xbf16>
    %22 = vector.extract_strided_slice %15 {offsets = [0, 6, 0], sizes = [16, 16, 64], strides = [1, 1, 1]} : vector<16x22x64xbf16> to vector<16x16x64xbf16>
    %23 = tpu.concatenate %16, %17, %18, %19, %20, %21, %22 in 2 : vector<16x16x64xbf16>, vector<16x16x64xbf16>, vector<16x16x64xbf16>, vector<16x16x64xbf16>, vector<16x16x64xbf16>, vector<16x16x64xbf16>, vector<16x16x64xbf16> -> vector<16x16x448xbf16>
    %24 = vector.shape_cast %23 : vector<16x16x448xbf16> to vector<256x448xbf16>
    %c1 = arith.constant 1 : index
    %c0_6 = arith.constant 0 : index
    %c0_7 = arith.constant 0 : index
    %25 = vector.load %arg2[%c1, %c0_6, %c0_7] : memref<7x448x3xbf16, #tpu.memory_space<vmem>>, vector<1x448x3xbf16>
    %26 = vector.shape_cast %25 : vector<1x448x3xbf16> to vector<448x3xbf16>
    %cst_8 = arith.constant dense<0.000000e+00> : vector<256x3xf32>
    %27 = tpu.matmul %24, %26, %cst_8 {dimension_numbers = #tpu.dot_dimension_numbers<[1], [0], [0], [1], [0, 0, 1, 1], [], []>} : vector<256x448xbf16>, vector<448x3xbf16>, vector<256x3xf32> -> vector<256x3xf32>
    %28 = arith.addf %14, %27 : vector<256x3xf32>
    %29 = vector.extract_strided_slice %1 {offsets = [2, 0, 0], sizes = [16, 22, 64], strides = [1, 1, 1]} : vector<22x22x64xbf16> to vector<16x22x64xbf16>
    %30 = vector.extract_strided_slice %29 {offsets = [0, 0, 0], sizes = [16, 16, 64], strides = [1, 1, 1]} : vector<16x22x64xbf16> to vector<16x16x64xbf16>
    %31 = vector.extract_strided_slice %29 {offsets = [0, 1, 0], sizes = [16, 16, 64], strides = [1, 1, 1]} : vector<16x22x64xbf16> to vector<16x16x64xbf16>
    %32 = vector.extract_strided_slice %29 {offsets = [0, 2, 0], sizes = [16, 16, 64], strides = [1, 1, 1]} : vector<16x22x64xbf16> to vector<16x16x64xbf16>
    %33 = vector.extract_strided_slice %29 {offsets = [0, 3, 0], sizes = [16, 16, 64], strides = [1, 1, 1]} : vector<16x22x64xbf16> to vector<16x16x64xbf16>
    %34 = vector.extract_strided_slice %29 {offsets = [0, 4, 0], sizes = [16, 16, 64], strides = [1, 1, 1]} : vector<16x22x64xbf16> to vector<16x16x64xbf16>
    %35 = vector.extract_strided_slice %29 {offsets = [0, 5, 0], sizes = [16, 16, 64], strides = [1, 1, 1]} : vector<16x22x64xbf16> to vector<16x16x64xbf16>
    %36 = vector.extract_strided_slice %29 {offsets = [0, 6, 0], sizes = [16, 16, 64], strides = [1, 1, 1]} : vector<16x22x64xbf16> to vector<16x16x64xbf16>
    %37 = tpu.concatenate %30, %31, %32, %33, %34, %35, %36 in 2 : vector<16x16x64xbf16>, vector<16x16x64xbf16>, vector<16x16x64xbf16>, vector<16x16x64xbf16>, vector<16x16x64xbf16>, vector<16x16x64xbf16>, vector<16x16x64xbf16> -> vector<16x16x448xbf16>
    %38 = vector.shape_cast %37 : vector<16x16x448xbf16> to vector<256x448xbf16>
    %c2 = arith.constant 2 : index
    %c0_9 = arith.constant 0 : index
    %c0_10 = arith.constant 0 : index
    %39 = vector.load %arg2[%c2, %c0_9, %c0_10] : memref<7x448x3xbf16, #tpu.memory_space<vmem>>, vector<1x448x3xbf16>
    %40 = vector.shape_cast %39 : vector<1x448x3xbf16> to vector<448x3xbf16>
    %cst_11 = arith.constant dense<0.000000e+00> : vector<256x3xf32>
    %41 = tpu.matmul %38, %40, %cst_11 {dimension_numbers = #tpu.dot_dimension_numbers<[1], [0], [0], [1], [0, 0, 1, 1], [], []>} : vector<256x448xbf16>, vector<448x3xbf16>, vector<256x3xf32> -> vector<256x3xf32>
    %42 = arith.addf %28, %41 : vector<256x3xf32>
    %43 = vector.extract_strided_slice %1 {offsets = [3, 0, 0], sizes = [16, 22, 64], strides = [1, 1, 1]} : vector<22x22x64xbf16> to vector<16x22x64xbf16>
    %44 = vector.extract_strided_slice %43 {offsets = [0, 0, 0], sizes = [16, 16, 64], strides = [1, 1, 1]} : vector<16x22x64xbf16> to vector<16x16x64xbf16>
    %45 = vector.extract_strided_slice %43 {offsets = [0, 1, 0], sizes = [16, 16, 64], strides = [1, 1, 1]} : vector<16x22x64xbf16> to vector<16x16x64xbf16>
    %46 = vector.extract_strided_slice %43 {offsets = [0, 2, 0], sizes = [16, 16, 64], strides = [1, 1, 1]} : vector<16x22x64xbf16> to vector<16x16x64xbf16>
    %47 = vector.extract_strided_slice %43 {offsets = [0, 3, 0], sizes = [16, 16, 64], strides = [1, 1, 1]} : vector<16x22x64xbf16> to vector<16x16x64xbf16>
    %48 = vector.extract_strided_slice %43 {offsets = [0, 4, 0], sizes = [16, 16, 64], strides = [1, 1, 1]} : vector<16x22x64xbf16> to vector<16x16x64xbf16>
    %49 = vector.extract_strided_slice %43 {offsets = [0, 5, 0], sizes = [16, 16, 64], strides = [1, 1, 1]} : vector<16x22x64xbf16> to vector<16x16x64xbf16>
    %50 = vector.extract_strided_slice %43 {offsets = [0, 6, 0], sizes = [16, 16, 64], strides = [1, 1, 1]} : vector<16x22x64xbf16> to vector<16x16x64xbf16>
    %51 = tpu.concatenate %44, %45, %46, %47, %48, %49, %50 in 2 : vector<16x16x64xbf16>, vector<16x16x64xbf16>, vector<16x16x64xbf16>, vector<16x16x64xbf16>, vector<16x16x64xbf16>, vector<16x16x64xbf16>, vector<16x16x64xbf16> -> vector<16x16x448xbf16>
    %52 = vector.shape_cast %51 : vector<16x16x448xbf16> to vector<256x448xbf16>
    %c3 = arith.constant 3 : index
    %c0_12 = arith.constant 0 : index
    %c0_13 = arith.constant 0 : index
    %53 = vector.load %arg2[%c3, %c0_12, %c0_13] : memref<7x448x3xbf16, #tpu.memory_space<vmem>>, vector<1x448x3xbf16>
    %54 = vector.shape_cast %53 : vector<1x448x3xbf16> to vector<448x3xbf16>
    %cst_14 = arith.constant dense<0.000000e+00> : vector<256x3xf32>
    %55 = tpu.matmul %52, %54, %cst_14 {dimension_numbers = #tpu.dot_dimension_numbers<[1], [0], [0], [1], [0, 0, 1, 1], [], []>} : vector<256x448xbf16>, vector<448x3xbf16>, vector<256x3xf32> -> vector<256x3xf32>
    %56 = arith.addf %42, %55 : vector<256x3xf32>
    %57 = vector.extract_strided_slice %1 {offsets = [4, 0, 0], sizes = [16, 22, 64], strides = [1, 1, 1]} : vector<22x22x64xbf16> to vector<16x22x64xbf16>
    %58 = vector.extract_strided_slice %57 {offsets = [0, 0, 0], sizes = [16, 16, 64], strides = [1, 1, 1]} : vector<16x22x64xbf16> to vector<16x16x64xbf16>
    %59 = vector.extract_strided_slice %57 {offsets = [0, 1, 0], sizes = [16, 16, 64], strides = [1, 1, 1]} : vector<16x22x64xbf16> to vector<16x16x64xbf16>
    %60 = vector.extract_strided_slice %57 {offsets = [0, 2, 0], sizes = [16, 16, 64], strides = [1, 1, 1]} : vector<16x22x64xbf16> to vector<16x16x64xbf16>
    %61 = vector.extract_strided_slice %57 {offsets = [0, 3, 0], sizes = [16, 16, 64], strides = [1, 1, 1]} : vector<16x22x64xbf16> to vector<16x16x64xbf16>
    %62 = vector.extract_strided_slice %57 {offsets = [0, 4, 0], sizes = [16, 16, 64], strides = [1, 1, 1]} : vector<16x22x64xbf16> to vector<16x16x64xbf16>
    %63 = vector.extract_strided_slice %57 {offsets = [0, 5, 0], sizes = [16, 16, 64], strides = [1, 1, 1]} : vector<16x22x64xbf16> to vector<16x16x64xbf16>
    %64 = vector.extract_strided_slice %57 {offsets = [0, 6, 0], sizes = [16, 16, 64], strides = [1, 1, 1]} : vector<16x22x64xbf16> to vector<16x16x64xbf16>
    %65 = tpu.concatenate %58, %59, %60, %61, %62, %63, %64 in 2 : vector<16x16x64xbf16>, vector<16x16x64xbf16>, vector<16x16x64xbf16>, vector<16x16x64xbf16>, vector<16x16x64xbf16>, vector<16x16x64xbf16>, vector<16x16x64xbf16> -> vector<16x16x448xbf16>
    %66 = vector.shape_cast %65 : vector<16x16x448xbf16> to vector<256x448xbf16>
    %c4 = arith.constant 4 : index
    %c0_15 = arith.constant 0 : index
    %c0_16 = arith.constant 0 : index
    %67 = vector.load %arg2[%c4, %c0_15, %c0_16] : memref<7x448x3xbf16, #tpu.memory_space<vmem>>, vector<1x448x3xbf16>
    %68 = vector.shape_cast %67 : vector<1x448x3xbf16> to vector<448x3xbf16>
    %cst_17 = arith.constant dense<0.000000e+00> : vector<256x3xf32>
    %69 = tpu.matmul %66, %68, %cst_17 {dimension_numbers = #tpu.dot_dimension_numbers<[1], [0], [0], [1], [0, 0, 1, 1], [], []>} : vector<256x448xbf16>, vector<448x3xbf16>, vector<256x3xf32> -> vector<256x3xf32>
    %70 = arith.addf %56, %69 : vector<256x3xf32>
    %71 = vector.extract_strided_slice %1 {offsets = [5, 0, 0], sizes = [16, 22, 64], strides = [1, 1, 1]} : vector<22x22x64xbf16> to vector<16x22x64xbf16>
    %72 = vector.extract_strided_slice %71 {offsets = [0, 0, 0], sizes = [16, 16, 64], strides = [1, 1, 1]} : vector<16x22x64xbf16> to vector<16x16x64xbf16>
    %73 = vector.extract_strided_slice %71 {offsets = [0, 1, 0], sizes = [16, 16, 64], strides = [1, 1, 1]} : vector<16x22x64xbf16> to vector<16x16x64xbf16>
    %74 = vector.extract_strided_slice %71 {offsets = [0, 2, 0], sizes = [16, 16, 64], strides = [1, 1, 1]} : vector<16x22x64xbf16> to vector<16x16x64xbf16>
    %75 = vector.extract_strided_slice %71 {offsets = [0, 3, 0], sizes = [16, 16, 64], strides = [1, 1, 1]} : vector<16x22x64xbf16> to vector<16x16x64xbf16>
    %76 = vector.extract_strided_slice %71 {offsets = [0, 4, 0], sizes = [16, 16, 64], strides = [1, 1, 1]} : vector<16x22x64xbf16> to vector<16x16x64xbf16>
    %77 = vector.extract_strided_slice %71 {offsets = [0, 5, 0], sizes = [16, 16, 64], strides = [1, 1, 1]} : vector<16x22x64xbf16> to vector<16x16x64xbf16>
    %78 = vector.extract_strided_slice %71 {offsets = [0, 6, 0], sizes = [16, 16, 64], strides = [1, 1, 1]} : vector<16x22x64xbf16> to vector<16x16x64xbf16>
    %79 = tpu.concatenate %72, %73, %74, %75, %76, %77, %78 in 2 : vector<16x16x64xbf16>, vector<16x16x64xbf16>, vector<16x16x64xbf16>, vector<16x16x64xbf16>, vector<16x16x64xbf16>, vector<16x16x64xbf16>, vector<16x16x64xbf16> -> vector<16x16x448xbf16>
    %80 = vector.shape_cast %79 : vector<16x16x448xbf16> to vector<256x448xbf16>
    %c5 = arith.constant 5 : index
    %c0_18 = arith.constant 0 : index
    %c0_19 = arith.constant 0 : index
    %81 = vector.load %arg2[%c5, %c0_18, %c0_19] : memref<7x448x3xbf16, #tpu.memory_space<vmem>>, vector<1x448x3xbf16>
    %82 = vector.shape_cast %81 : vector<1x448x3xbf16> to vector<448x3xbf16>
    %cst_20 = arith.constant dense<0.000000e+00> : vector<256x3xf32>
    %83 = tpu.matmul %80, %82, %cst_20 {dimension_numbers = #tpu.dot_dimension_numbers<[1], [0], [0], [1], [0, 0, 1, 1], [], []>} : vector<256x448xbf16>, vector<448x3xbf16>, vector<256x3xf32> -> vector<256x3xf32>
    %84 = arith.addf %70, %83 : vector<256x3xf32>
    %85 = vector.extract_strided_slice %1 {offsets = [6, 0, 0], sizes = [16, 22, 64], strides = [1, 1, 1]} : vector<22x22x64xbf16> to vector<16x22x64xbf16>
    %86 = vector.extract_strided_slice %85 {offsets = [0, 0, 0], sizes = [16, 16, 64], strides = [1, 1, 1]} : vector<16x22x64xbf16> to vector<16x16x64xbf16>
    %87 = vector.extract_strided_slice %85 {offsets = [0, 1, 0], sizes = [16, 16, 64], strides = [1, 1, 1]} : vector<16x22x64xbf16> to vector<16x16x64xbf16>
    %88 = vector.extract_strided_slice %85 {offsets = [0, 2, 0], sizes = [16, 16, 64], strides = [1, 1, 1]} : vector<16x22x64xbf16> to vector<16x16x64xbf16>
    %89 = vector.extract_strided_slice %85 {offsets = [0, 3, 0], sizes = [16, 16, 64], strides = [1, 1, 1]} : vector<16x22x64xbf16> to vector<16x16x64xbf16>
    %90 = vector.extract_strided_slice %85 {offsets = [0, 4, 0], sizes = [16, 16, 64], strides = [1, 1, 1]} : vector<16x22x64xbf16> to vector<16x16x64xbf16>
    %91 = vector.extract_strided_slice %85 {offsets = [0, 5, 0], sizes = [16, 16, 64], strides = [1, 1, 1]} : vector<16x22x64xbf16> to vector<16x16x64xbf16>
    %92 = vector.extract_strided_slice %85 {offsets = [0, 6, 0], sizes = [16, 16, 64], strides = [1, 1, 1]} : vector<16x22x64xbf16> to vector<16x16x64xbf16>
    %93 = tpu.concatenate %86, %87, %88, %89, %90, %91, %92 in 2 : vector<16x16x64xbf16>, vector<16x16x64xbf16>, vector<16x16x64xbf16>, vector<16x16x64xbf16>, vector<16x16x64xbf16>, vector<16x16x64xbf16>, vector<16x16x64xbf16> -> vector<16x16x448xbf16>
    %94 = vector.shape_cast %93 : vector<16x16x448xbf16> to vector<256x448xbf16>
    %c6 = arith.constant 6 : index
    %c0_21 = arith.constant 0 : index
    %c0_22 = arith.constant 0 : index
    %95 = vector.load %arg2[%c6, %c0_21, %c0_22] : memref<7x448x3xbf16, #tpu.memory_space<vmem>>, vector<1x448x3xbf16>
    %96 = vector.shape_cast %95 : vector<1x448x3xbf16> to vector<448x3xbf16>
    %cst_23 = arith.constant dense<0.000000e+00> : vector<256x3xf32>
    %97 = tpu.matmul %94, %96, %cst_23 {dimension_numbers = #tpu.dot_dimension_numbers<[1], [0], [0], [1], [0, 0, 1, 1], [], []>} : vector<256x448xbf16>, vector<448x3xbf16>, vector<256x3xf32> -> vector<256x3xf32>
    %98 = arith.addf %84, %97 : vector<256x3xf32>
    %c0_24 = arith.constant 0 : index
    %c0_25 = arith.constant 0 : index
    %99 = vector.load %arg3[%c0_24, %c0_25] : memref<1x3xf32, #tpu.memory_space<vmem>>, vector<1x3xf32>
    %100 = vector.broadcast %99 : vector<1x3xf32> to vector<256x3xf32>
    %101 = arith.addf %98, %100 : vector<256x3xf32>
    %102 = math.tanh %101 : vector<256x3xf32>
    %103 = vector.shape_cast %102 : vector<256x3xf32> to vector<1x16x16x3xf32>
    %c0_26 = arith.constant 0 : index
    %c0_27 = arith.constant 0 : index
    %c0_28 = arith.constant 0 : index
    %c0_29 = arith.constant 0 : index
    %104 = vector.load %arg4[%c0_26, %c0_27, %c0_28, %c0_29] : memref<1x16x16x3xf32, #tpu.memory_space<vmem>>, vector<1x16x16x3xf32>
    tpu.vector_store %arg4[%c0_26, %c0_27, %c0_28, %c0_29], %103 {strides = array<i32>} : memref<1x16x16x3xf32, #tpu.memory_space<vmem>>, vector<1x16x16x3xf32>,
    return
  }
  func.func @transform_0(%arg0: i32) -> (i32, i32, i32, i32) {
    %c0_i32 = arith.constant 0 : i32
    %c0_i32_0 = arith.constant 0 : i32
    %c0_i32_1 = arith.constant 0 : i32
    %c0_i32_2 = arith.constant 0 : i32
    return %arg0, %c0_i32, %c0_i32_0, %c0_i32_1 : i32, i32, i32, i32
  }
  func.func @transform_1(%arg0: i32) -> (i32, i32, i32) {
    %c0_i32 = arith.constant 0 : i32
    %c0_i32_0 = arith.constant 0 : i32
    %c0_i32_1 = arith.constant 0 : i32
    %c0_i32_2 = arith.constant 0 : i32
    return %c0_i32, %c0_i32_0, %c0_i32_1 : i32, i32, i32
  }
  func.func @transform_2(%arg0: i32) -> (i32, i32) {
    %c0_i32 = arith.constant 0 : i32
    %c0_i32_0 = arith.constant 0 : i32
    %c0_i32_1 = arith.constant 0 : i32
    return %c0_i32, %c0_i32_0 : i32, i32
  }
  func.func @transform_3(%arg0: i32) -> (i32, i32, i32, i32) {
    %c0_i32 = arith.constant 0 : i32
    %c0_i32_0 = arith.constant 0 : i32
    %c0_i32_1 = arith.constant 0 : i32
    %c0_i32_2 = arith.constant 0 : i32
    return %arg0, %c0_i32, %c0_i32_0, %c0_i32_1 : i32, i32, i32, i32
  }
}

</mosaic_0001>

<llo_original>
// kernel: decoder_generator_forward.1
$region0: #{decoder_generator_forward.1}
  #allocation0 [shape = 'u32[]', space=smem, size = 0x4, offset = 0x4, fixed_abs, tag = 'smem constant byte address 0x4 - core index']
  #allocation1 [shape = 'u32[144,128]{1,0:T(1,128)}', space=vmem, size = 0x12000, scoped, tag = 'internal scratch']
  %s0 = inlined_call_operand.vmem [shape: bf16[2,22,22,64], index: 0, kind: input, shape index: {}]
  %s1 = inlined_call_operand.vmem [shape: bf16[7,448,3], index: 1, kind: input, shape index: {}]
  %s2 = inlined_call_operand.vmem [shape: f32[1,3], index: 2, kind: input, shape index: {}]
  %s3 = inlined_call_operand.vmem [shape: f32[2,16,16,3], index: 3, kind: output, shape index: {}]
  %s4 = sld [smem:[#allocation0]]
  $region45: #{decoder_generator_forward.1} parent=0
    _
  %s6 = ssub.s32 1, %s4
  %s7 = scalar_select 0, %s6, %s4
  loop: start=0, step=1, limit=4
  $region2: #{decoder_generator_forward.1} parent=0 // loop_pre_header
    _
  $region3: #{decoder_generator_forward.1} parent=0 // loop_header
    %s9 = sphi 0, %s13
    %p10 = scmp.ge.s32.totalorder %s9, 4
    %s19 = sphi 0, %s21
    %s22 = sphi 0, %s19
    %s23 = sphi 0, %s22
    %s39 = sphi 0, %s23
    %s43 = sphi 0, %s43
    %s45 = sphi 0, %s43
    %s46 = sphi 0, %s45
    %s60 = sphi 0, %s46
    %s64 = sphi 0, %s64
    %s66 = sphi 0, %s64
    %s67 = sphi 0, %s66
    %s81 = sphi 0, %s67
    %s87 = sphi 0, %s89
    %s90 = sphi 0, %s87
    %s91 = sphi 0, %s90
    %s107 = sphi 0, %s91
  $region4: #{decoder_generator_forward.1} parent=0 // loop_header_branch
    %12 = sbr.rel (%p10) target = $region8
  $region5: #{decoder_generator_forward.1} parent=0 // loop_body
    %s14 = ssub.s32 %s9, 1
    %s15 = ssub.s32 %s9, 2
    %s16 = sadd.s32 %s9, 1
    %s17 = ssub.s32 %s9, %s16
    %p18 = scmp.eq.s32.totalorder %s17, 0
    %s20 = sadd.s32 %s19, 1
    %s21 = scalar_select %p18, %s19, %s20
    %p24 = pneg %p18
    %p25 = scmp.eq.s32.totalorder %s9, 1
    %p26 = por %p24, %p25
    %p27 = scmp.ne.s32.totalorder %s19, %s22
    %p28 = scmp.eq.s32.totalorder %s9, 0
    %p29 = por %p27, %p28
    %p30 = scmp.ne.s32.totalorder %s19, %s22
    %p31 = scmp.eq.s32.totalorder %s14, 1
    %p32 = por %p30, %p31
    %p33 = scmp.ne.s32.totalorder %s22, %s23
    %p34 = scmp.eq.s32.totalorder %s14, 0
    %p35 = por %p33, %p34
    %p36 = scmp.ne.s32.totalorder %s22, %s23
    %p37 = scmp.eq.s32.totalorder %s15, 1
    %p38 = por %p36, %p37
    %p40 = scmp.ne.s32.totalorder %s23, %s39
    %p41 = scmp.eq.s32.totalorder %s15, 0
    %p42 = por %p40, %p41
    %s44 = sadd.s32 %s43, 1
    %p47 = scmp.eq.s32.totalorder %s9, 1
    %p48 = scmp.ne.s32.totalorder %s43, %s45
    %p49 = scmp.eq.s32.totalorder %s9, 0
    %p50 = por %p48, %p49
    %p51 = scmp.ne.s32.totalorder %s43, %s45
    %p52 = scmp.eq.s32.totalorder %s14, 1
    %p53 = por %p51, %p52
    %p54 = scmp.ne.s32.totalorder %s45, %s46
    %p55 = scmp.eq.s32.totalorder %s14, 0
    %p56 = por %p54, %p55
    %p57 = scmp.ne.s32.totalorder %s45, %s46
    %p58 = scmp.eq.s32.totalorder %s15, 1
    %p59 = por %p57, %p58
    %p61 = scmp.ne.s32.totalorder %s46, %s60
    %p62 = scmp.eq.s32.totalorder %s15, 0
    %p63 = por %p61, %p62
    %s65 = sadd.s32 %s64, 1
    %p68 = scmp.eq.s32.totalorder %s9, 1
    %p69 = scmp.ne.s32.totalorder %s64, %s66
    %p70 = scmp.eq.s32.totalorder %s9, 0
    %p71 = por %p69, %p70
    %p72 = scmp.ne.s32.totalorder %s64, %s66
    %p73 = scmp.eq.s32.totalorder %s14, 1
    %p74 = por %p72, %p73
    %p75 = scmp.ne.s32.totalorder %s66, %s67
    %p76 = scmp.eq.s32.totalorder %s14, 0
    %p77 = por %p75, %p76
    %p78 = scmp.ne.s32.totalorder %s66, %s67
    %p79 = scmp.eq.s32.totalorder %s15, 1
    %p80 = por %p78, %p79
    %p82 = scmp.ne.s32.totalorder %s67, %s81
    %p83 = scmp.eq.s32.totalorder %s15, 0
    %p84 = por %p82, %p83
    %s85 = ssub.s32 %s9, %s16
    %p86 = scmp.eq.s32.totalorder %s85, 0
    %s88 = sadd.s32 %s87, 1
    %s89 = scalar_select %p86, %s87, %s88
    %p92 = pneg %p86
    %p93 = scmp.eq.s32.totalorder %s9, 1
    %p94 = por %p92, %p93
    %p95 = scmp.ne.s32.totalorder %s87, %s90
    %p96 = scmp.eq.s32.totalorder %s9, 0
    %p97 = por %p95, %p96
    %p98 = scmp.ne.s32.totalorder %s87, %s90
    %p99 = scmp.eq.s32.totalorder %s14, 1
    %p100 = por %p98, %p99
    %p101 = scmp.ne.s32.totalorder %s90, %s91
    %p102 = scmp.eq.s32.totalorder %s14, 0
    %p103 = por %p101, %p102
    %p104 = scmp.ne.s32.totalorder %s90, %s91
    %p105 = scmp.eq.s32.totalorder %s15, 1
    %p106 = por %p104, %p105
    %p108 = scmp.ne.s32.totalorder %s91, %s107
    %p109 = scmp.eq.s32.totalorder %s15, 0
    %p110 = por %p108, %p109
    %p111 = scmp.le.s32.totalorder 1, %s9
    %p112 = scmp.lt.s32.totalorder %s9, 3
    %p113 = pnand %p111, %p112
    %p114 = pneg %p113
    // Predicated region
    $region9: #{decoder_generator_forward.1} parent=5 // pred_check
      _
    $region10: #{decoder_generator_forward.1} parent=5 // pred_check_branch
      %116 = sbr.rel (%p113) target = $region12
    $region11: #{decoder_generator_forward.1} parent=5 // pred_region
      %s117 = ssub.s32 %s9, 1
      // Predicated region
      $region13: #{decoder_generator_forward.1} parent=11 // pred_check
        %p118 = pneg %p56
      $region14: #{decoder_generator_forward.1} parent=11 // pred_check_branch
        %120 = sbr.rel (%p118) target = $region16
      $region15: #{decoder_generator_forward.1} parent=11 // pred_region
        _
      $region16: #{decoder_generator_forward.1} parent=11 // pred_fallthru
        _
      // Predicated region
      $region17: #{decoder_generator_forward.1} parent=11 // pred_check
        %p121 = pneg %p77
      $region18: #{decoder_generator_forward.1} parent=11 // pred_check_branch
        %123 = sbr.rel (%p121) target = $region20
      $region19: #{decoder_generator_forward.1} parent=11 // pred_region
        _
      $region20: #{decoder_generator_forward.1} parent=11 // pred_fallthru
        _
    $region12: #{decoder_generator_forward.1} parent=5 // pred_fallthru
      _
    %p124 = scmp.lt.s32.totalorder %s9, 2
    // Predicated region
    $region21: #{decoder_generator_forward.1} parent=5 // pred_check
      %p125 = pneg %p124
    $region22: #{decoder_generator_forward.1} parent=5 // pred_check_branch
      %127 = sbr.rel (%p125) target = $region24
    $region23: #{decoder_generator_forward.1} parent=5 // pred_region
      // Predicated region
      $region25: #{decoder_generator_forward.1} parent=23 // pred_check
        %p128 = pneg %p29
      $region26: #{decoder_generator_forward.1} parent=23 // pred_check_branch
        %130 = sbr.rel (%p128) target = $region28
      $region27: #{decoder_generator_forward.1} parent=23 // pred_region
        %p131 = scmp.lt.s32.totalorder %s9, 1
        %s132 = scalar_select %p131, %s9, 1
        %s133 = smul.addr %s132, 66
        %s134 = smul.addr %s133, 4
        %s135 = scalar_lea.vmem %s0, %s134
      $region28: #{decoder_generator_forward.1} parent=23 // pred_fallthru
        _
    $region24: #{decoder_generator_forward.1} parent=5 // pred_fallthru
      _
    %p136 = scmp.le.s32.totalorder 1, %s9
    %p137 = scmp.lt.s32.totalorder %s9, 3
    %p138 = pnand %p136, %p137
    %p139 = pneg %p138
    // Predicated region
    $region29: #{decoder_generator_forward.1} parent=5 // pred_check
      _
    $region30: #{decoder_generator_forward.1} parent=5 // pred_check_branch
      %141 = sbr.rel (%p138) target = $region32
    $region31: #{decoder_generator_forward.1} parent=5 // pred_region
      %s142 = ssub.s32 %s9, 1
      %p143 = scmp.lt.s32.totalorder %s14, 1
      %s144 = scalar_select %p143, %s14, 1
      %s145 = smul.addr %s144, 66
      %s146 = smul.addr %s145, 4
      %s147 = scalar_lea.vmem %s0, %s146
      %p148 = pneg %p35
      %p149 = pneg %p32
      %p150 = pneg %p56
      %p151 = pneg %p53
      %p152 = pneg %p77
      %p153 = pneg %p74
      %p154 = pneg %p103
      %p155 = pneg %p100
      %p156 = scmp.lt.s32.totalorder %s14, 1
      %s157 = scalar_select %p156, %s14, 1
      %s158 = smul.addr %s157, 32
      %s159 = smul.addr %s158, 8
      %s160 = scalar_lea.vmem %s3, %s159
      %p161 = scmp.lt.s32.totalorder %s14, 1
      %s162 = scalar_select %p161, %s14, 1
      %s163 = smul.addr %s162, 66
      %s164 = smul.addr %s163, 4
      %s165 = scalar_lea.vmem %s0, %s164
      %p166 = scmp.lt.s32.totalorder %s14, 1
      %s167 = scalar_select %p166, %s14, 1
      %s168 = smul.addr %s167, 32
      %s169 = smul.addr %s168, 8
      %s170 = scalar_lea.vmem %s3, %s169
      %v172 = vld [vmem:[%s165] sm:$0xf]
      %v173 = vld [vmem:[%s165 + $0x4] sm:$0xf]
      %v174 = vld [vmem:[%s165 + $0x8] sm:$0x7]
      %v175 = vld [vmem:[%s165 + $0xc] sm:$0xf]
      %v176 = vld [vmem:[%s165 + $0x10] sm:$0xf]
      %v177 = vld [vmem:[%s165 + $0x14] sm:$0x7]
      %v178 = vld [vmem:[%s165 + $0x18] sm:$0xf]
      %v179 = vld [vmem:[%s165 + $0x1c] sm:$0xf]
      %v180 = vld [vmem:[%s165 + $0x20] sm:$0x7]
      %v181 = vld [vmem:[%s165 + $0x24] sm:$0xf]
      %v182 = vld [vmem:[%s165 + $0x28] sm:$0xf]
      %v183 = vld [vmem:[%s165 + $0x2c] sm:$0x7]
      %v184 = vld [vmem:[%s165 + $0x30] sm:$0xf]
      %v185 = vld [vmem:[%s165 + $0x34] sm:$0xf]
      %v186 = vld [vmem:[%s165 + $0x38] sm:$0x7]
      %v187 = vld [vmem:[%s165 + $0x3c] sm:$0xf]
      %v188 = vld [vmem:[%s165 + $0x40] sm:$0xf]
      %v189 = vld [vmem:[%s165 + $0x44] sm:$0x7]
      %v190 = vld [vmem:[%s165 + $0x48] sm:$0xf]
      %v191 = vld [vmem:[%s165 + $0x4c] sm:$0xf]
      %v192 = vld [vmem:[%s165 + $0x50] sm:$0x7]
      %v193 = vld [vmem:[%s165 + $0x54] sm:$0xf]
      %v194 = vld [vmem:[%s165 + $0x58] sm:$0xf]
      %v195 = vld [vmem:[%s165 + $0x5c] sm:$0x7]
      %v196 = vld [vmem:[%s165 + $0x60] sm:$0xf]
      %v197 = vld [vmem:[%s165 + $0x64] sm:$0xf]
      %v198 = vld [vmem:[%s165 + $0x68] sm:$0x7]
      %v199 = vld [vmem:[%s165 + $0x6c] sm:$0xf]
      %v200 = vld [vmem:[%s165 + $0x70] sm:$0xf]
      %v201 = vld [vmem:[%s165 + $0x74] sm:$0x7]
      %v202 = vld [vmem:[%s165 + $0x78] sm:$0xf]
      %v203 = vld [vmem:[%s165 + $0x7c] sm:$0xf]
      %v204 = vld [vmem:[%s165 + $0x80] sm:$0x7]
      %v205 = vld [vmem:[%s165 + $0x84] sm:$0xf]
      %v206 = vld [vmem:[%s165 + $0x88] sm:$0xf]
      %v207 = vld [vmem:[%s165 + $0x8c] sm:$0x7]
      %v208 = vld [vmem:[%s165 + $0x90] sm:$0xf]
      %v209 = vld [vmem:[%s165 + $0x94] sm:$0xf]
      %v210 = vld [vmem:[%s165 + $0x98] sm:$0x7]
      %v211 = vld [vmem:[%s165 + $0x9c] sm:$0xf]
      %v212 = vld [vmem:[%s165 + $0xa0] sm:$0xf]
      %v213 = vld [vmem:[%s165 + $0xa4] sm:$0x7]
      %v214 = vld [vmem:[%s165 + $0xa8] sm:$0xf]
      %v215 = vld [vmem:[%s165 + $0xac] sm:$0xf]
      %v216 = vld [vmem:[%s165 + $0xb0] sm:$0x7]
      %v217 = vld [vmem:[%s165 + $0xb4] sm:$0xf]
      %v218 = vld [vmem:[%s165 + $0xb8] sm:$0xf]
      %v219 = vld [vmem:[%s165 + $0xbc] sm:$0x7]
      %v220 = vld [vmem:[%s165 + $0xc0] sm:$0xf]
      %v221 = vld [vmem:[%s165 + $0xc4] sm:$0xf]
      %v222 = vld [vmem:[%s165 + $0xc8] sm:$0x7]
      %v223 = vld [vmem:[%s165 + $0xcc] sm:$0xf]
      %v224 = vld [vmem:[%s165 + $0xd0] sm:$0xf]
      %v225 = vld [vmem:[%s165 + $0xd4] sm:$0x7]
      %v226 = vld [vmem:[%s165 + $0xd8] sm:$0xf]
      %v227 = vld [vmem:[%s165 + $0xdc] sm:$0xf]
      %v228 = vld [vmem:[%s165 + $0xe0] sm:$0x7]
      %v229 = vld [vmem:[%s165 + $0xe4] sm:$0xf]
      %v230 = vld [vmem:[%s165 + $0xe8] sm:$0xf]
      %v231 = vld [vmem:[%s165 + $0xec] sm:$0x7]
      %v232 = vld [vmem:[%s165 + $0xf0] sm:$0xf]
      %v233 = vld [vmem:[%s165 + $0xf4] sm:$0xf]
      %v234 = vld [vmem:[%s165 + $0xf8] sm:$0x7]
      %v235 = vld [vmem:[%s165 + $0xfc] sm:$0xf]
      %v236 = vld [vmem:[%s165 + $0x100] sm:$0xf]
      %v237 = vld [vmem:[%s165 + $0x104] sm:$0x7]
      %v270 = vunpack.c.l.b16 %v172
      %v271 = vunpack.c.l.b16 %v173
      %v272 = vunpack.c.l.b16 %v175
      %v273 = vunpack.c.l.b16 %v176
      %v274 = vunpack.c.l.b16 %v178
      %v275 = vunpack.c.l.b16 %v179
      %v276 = vunpack.c.l.b16 %v181
      %v277 = vunpack.c.l.b16 %v182
      %v278 = vunpack.c.l.b16 %v184
      %v279 = vunpack.c.l.b16 %v185
      %v280 = vunpack.c.l.b16 %v187
      %v281 = vunpack.c.l.b16 %v188
      %v282 = vunpack.c.l.b16 %v190
      %v283 = vunpack.c.l.b16 %v191
      %v284 = vunpack.c.l.b16 %v193
      %v285 = vunpack.c.l.b16 %v194
      %v286 = vunpack.c.l.b16 %v196
      %v287 = vunpack.c.l.b16 %v197
      %v288 = vunpack.c.l.b16 %v199
      %v289 = vunpack.c.l.b16 %v200
      %v290 = vunpack.c.l.b16 %v202
      %v291 = vunpack.c.l.b16 %v203
      %v292 = vunpack.c.l.b16 %v205
      %v293 = vunpack.c.l.b16 %v206
      %v294 = vunpack.c.l.b16 %v208
      %v295 = vunpack.c.l.b16 %v209
      %v296 = vunpack.c.l.b16 %v211
      %v297 = vunpack.c.l.b16 %v212
      %v298 = vunpack.c.l.b16 %v214
      %v299 = vunpack.c.l.b16 %v215
      %v300 = vunpack.c.l.b16 %v217
      %v301 = vunpack.c.l.b16 %v218
      %v302 = vpack.c.b16 %v271, %v270
      %v303 = vpack.c.b16 %v273, %v272
      %v304 = vpack.c.b16 %v275, %v274
      %v305 = vpack.c.b16 %v277, %v276
      %v306 = vpack.c.b16 %v279, %v278
      %v307 = vpack.c.b16 %v281, %v280
      %v308 = vpack.c.b16 %v283, %v282
      %v309 = vpack.c.b16 %v285, %v284
      %v310 = vpack.c.b16 %v287, %v286
      %v311 = vpack.c.b16 %v289, %v288
      %v312 = vpack.c.b16 %v291, %v290
      %v313 = vpack.c.b16 %v293, %v292
      %v314 = vpack.c.b16 %v295, %v294
      %v315 = vpack.c.b16 %v297, %v296
      %v316 = vpack.c.b16 %v299, %v298
      %v317 = vpack.c.b16 %v301, %v300
      %v334 = vunpack.c.l.b16 %v174
      %v335 = vunpack.c.l.b16 %v177
      %v336 = vunpack.c.l.b16 %v180
      %v337 = vunpack.c.l.b16 %v183
      %v338 = vunpack.c.l.b16 %v186
      %v339 = vunpack.c.l.b16 %v189
      %v340 = vunpack.c.l.b16 %v192
      %v341 = vunpack.c.l.b16 %v195
      %v342 = vunpack.c.l.b16 %v198
      %v343 = vunpack.c.l.b16 %v201
      %v344 = vunpack.c.l.b16 %v204
      %v345 = vunpack.c.l.b16 %v207
      %v346 = vunpack.c.l.b16 %v210
      %v347 = vunpack.c.l.b16 %v213
      %v348 = vunpack.c.l.b16 %v216
      %v349 = vunpack.c.l.b16 %v219
      %v350 = vpack.c.b16 %v334, %v334
      %v351 = vpack.c.b16 %v335, %v335
      %v352 = vpack.c.b16 %v336, %v336
      %v353 = vpack.c.b16 %v337, %v337
      %v354 = vpack.c.b16 %v338, %v338
      %v355 = vpack.c.b16 %v339, %v339
      %v356 = vpack.c.b16 %v340, %v340
      %v357 = vpack.c.b16 %v341, %v341
      %v358 = vpack.c.b16 %v342, %v342
      %v359 = vpack.c.b16 %v343, %v343
      %v360 = vpack.c.b16 %v344, %v344
      %v361 = vpack.c.b16 %v345, %v345
      %v362 = vpack.c.b16 %v346, %v346
      %v363 = vpack.c.b16 %v347, %v347
      %v364 = vpack.c.b16 %v348, %v348
      %v365 = vpack.c.b16 %v349, %v349
      %vm366 = vsmask.f32 7424
      %v368 = vshrl.u32 %v302, 16
      %v370 = vshll.u32 %v302, 16
      %v372 = vrot.slane %v370, 1
      %v373 = vor.u32 %v368, %v372
      %v375 = vshll.u32 %v350, 16
      %v377 = vrot.slane %v375, 1
      %v378 = vsel %vm366, %v373, %v377
      %v380 = vshrl.u32 %v303, 16
      %v382 = vshll.u32 %v303, 16
      %v384 = vrot.slane %v382, 1
      %v385 = vor.u32 %v380, %v384
      %v387 = vshll.u32 %v351, 16
      %v389 = vrot.slane %v387, 1
      %v390 = vsel %vm366, %v385, %v389
      %v392 = vshrl.u32 %v304, 16
      %v394 = vshll.u32 %v304, 16
      %v396 = vrot.slane %v394, 1
      %v397 = vor.u32 %v392, %v396
      %v399 = vshll.u32 %v352, 16
      %v401 = vrot.slane %v399, 1
      %v402 = vsel %vm366, %v397, %v401
      %v404 = vshrl.u32 %v305, 16
      %v406 = vshll.u32 %v305, 16
      %v408 = vrot.slane %v406, 1
      %v409 = vor.u32 %v404, %v408
      %v411 = vshll.u32 %v353, 16
      %v413 = vrot.slane %v411, 1
      %v414 = vsel %vm366, %v409, %v413
      %v416 = vshrl.u32 %v306, 16
      %v418 = vshll.u32 %v306, 16
      %v420 = vrot.slane %v418, 1
      %v421 = vor.u32 %v416, %v420
      %v423 = vshll.u32 %v354, 16
      %v425 = vrot.slane %v423, 1
      %v426 = vsel %vm366, %v421, %v425
      %v428 = vshrl.u32 %v307, 16
      %v430 = vshll.u32 %v307, 16
      %v432 = vrot.slane %v430, 1
      %v433 = vor.u32 %v428, %v432
      %v435 = vshll.u32 %v355, 16
      %v437 = vrot.slane %v435, 1
      %v438 = vsel %vm366, %v433, %v437
      %v440 = vshrl.u32 %v308, 16
      %v442 = vshll.u32 %v308, 16
      %v444 = vrot.slane %v442, 1
      %v445 = vor.u32 %v440, %v444
      %v447 = vshll.u32 %v356, 16
      %v449 = vrot.slane %v447, 1
      %v450 = vsel %vm366, %v445, %v449
      %v452 = vshrl.u32 %v309, 16
      %v454 = vshll.u32 %v309, 16
      %v456 = vrot.slane %v454, 1
      %v457 = vor.u32 %v452, %v456
      %v459 = vshll.u32 %v357, 16
      %v461 = vrot.slane %v459, 1
      %v462 = vsel %vm366, %v457, %v461
      %v464 = vshrl.u32 %v310, 16
      %v466 = vshll.u32 %v310, 16
      %v468 = vrot.slane %v466, 1
      %v469 = vor.u32 %v464, %v468
      %v471 = vshll.u32 %v358, 16
      %v473 = vrot.slane %v471, 1
      %v474 = vsel %vm366, %v469, %v473
      %v476 = vshrl.u32 %v311, 16
      %v478 = vshll.u32 %v311, 16
      %v480 = vrot.slane %v478, 1
      %v481 = vor.u32 %v476, %v480
      %v483 = vshll.u32 %v359, 16
      %v485 = vrot.slane %v483, 1
      %v486 = vsel %vm366, %v481, %v485
      %v488 = vshrl.u32 %v312, 16
      %v490 = vshll.u32 %v312, 16
      %v492 = vrot.slane %v490, 1
      %v493 = vor.u32 %v488, %v492
      %v495 = vshll.u32 %v360, 16
      %v497 = vrot.slane %v495, 1
      %v498 = vsel %vm366, %v493, %v497
      %v500 = vshrl.u32 %v313, 16
      %v502 = vshll.u32 %v313, 16
      %v504 = vrot.slane %v502, 1
      %v505 = vor.u32 %v500, %v504
      %v507 = vshll.u32 %v361, 16
      %v509 = vrot.slane %v507, 1
      %v510 = vsel %vm366, %v505, %v509
      %v512 = vshrl.u32 %v314, 16
      %v514 = vshll.u32 %v314, 16
      %v516 = vrot.slane %v514, 1
      %v517 = vor.u32 %v512, %v516
      %v519 = vshll.u32 %v362, 16
      %v521 = vrot.slane %v519, 1
      %v522 = vsel %vm366, %v517, %v521
      %v524 = vshrl.u32 %v315, 16
      %v526 = vshll.u32 %v315, 16
      %v528 = vrot.slane %v526, 1
      %v529 = vor.u32 %v524, %v528
      %v531 = vshll.u32 %v363, 16
      %v533 = vrot.slane %v531, 1
      %v534 = vsel %vm366, %v529, %v533
      %v536 = vshrl.u32 %v316, 16
      %v538 = vshll.u32 %v316, 16
      %v540 = vrot.slane %v538, 1
      %v541 = vor.u32 %v536, %v540
      %v543 = vshll.u32 %v364, 16
      %v545 = vrot.slane %v543, 1
      %v546 = vsel %vm366, %v541, %v545
      %v548 = vshrl.u32 %v317, 16
      %v550 = vshll.u32 %v317, 16
      %v552 = vrot.slane %v550, 1
      %v553 = vor.u32 %v548, %v552
      %v555 = vshll.u32 %v365, 16
      %v557 = vrot.slane %v555, 1
      %v558 = vsel %vm366, %v553, %v557
      %559 = vrot.lane.b32.xlu0 %v378, 64
      %v560 = vpop.permute.xlu0 %559
      %561 = vrot.lane.b32.xlu0 %v390, 64
      %v562 = vpop.permute.xlu0 %561
      %563 = vrot.lane.b32.xlu0 %v402, 64
      %v564 = vpop.permute.xlu0 %563
      %565 = vrot.lane.b32.xlu0 %v414, 64
      %v566 = vpop.permute.xlu0 %565
      %567 = vrot.lane.b32.xlu0 %v426, 64
      %v568 = vpop.permute.xlu0 %567
      %569 = vrot.lane.b32.xlu0 %v438, 64
      %v570 = vpop.permute.xlu0 %569
      %571 = vrot.lane.b32.xlu0 %v450, 64
      %v572 = vpop.permute.xlu0 %571
      %573 = vrot.lane.b32.xlu0 %v462, 64
      %v574 = vpop.permute.xlu0 %573
      %575 = vrot.lane.b32.xlu0 %v474, 64
      %v576 = vpop.permute.xlu0 %575
      %577 = vrot.lane.b32.xlu0 %v486, 64
      %v578 = vpop.permute.xlu0 %577
      %579 = vrot.lane.b32.xlu0 %v498, 64
      %v580 = vpop.permute.xlu0 %579
      %581 = vrot.lane.b32.xlu0 %v510, 64
      %v582 = vpop.permute.xlu0 %581
      %583 = vrot.lane.b32.xlu0 %v522, 64
      %v584 = vpop.permute.xlu0 %583
      %585 = vrot.lane.b32.xlu0 %v534, 64
      %v586 = vpop.permute.xlu0 %585
      %587 = vrot.lane.b32.xlu0 %v546, 64
      %v588 = vpop.permute.xlu0 %587
      %589 = vrot.lane.b32.xlu0 %v558, 64
      %v590 = vpop.permute.xlu0 %589
      %vm591 = vcmask 1046528
      %v592 = vrot.slane %v302, 1
      %v593 = vrot.slane %v350, 1
      %v594 = vsel %vm591, %v592, %v593
      %v595 = vrot.slane %v303, 1
      %v596 = vrot.slane %v351, 1
      %v597 = vsel %vm591, %v595, %v596
      %v598 = vrot.slane %v304, 1
      %v599 = vrot.slane %v352, 1
      %v600 = vsel %vm591, %v598, %v599
      %v601 = vrot.slane %v305, 1
      %v602 = vrot.slane %v353, 1
      %v603 = vsel %vm591, %v601, %v602
      %v604 = vrot.slane %v306, 1
      %v605 = vrot.slane %v354, 1
      %v606 = vsel %vm591, %v604, %v605
      %v607 = vrot.slane %v307, 1
      %v608 = vrot.slane %v355, 1
      %v609 = vsel %vm591, %v607, %v608
      %v610 = vrot.slane %v308, 1
      %v611 = vrot.slane %v356, 1
      %v612 = vsel %vm591, %v610, %v611
      %v613 = vrot.slane %v309, 1
      %v614 = vrot.slane %v357, 1
      %v615 = vsel %vm591, %v613, %v614
      %v616 = vrot.slane %v310, 1
      %v617 = vrot.slane %v358, 1
      %v618 = vsel %vm591, %v616, %v617
      %v619 = vrot.slane %v311, 1
      %v620 = vrot.slane %v359, 1
      %v621 = vsel %vm591, %v619, %v620
      %v622 = vrot.slane %v312, 1
      %v623 = vrot.slane %v360, 1
      %v624 = vsel %vm591, %v622, %v623
      %v625 = vrot.slane %v313, 1
      %v626 = vrot.slane %v361, 1
      %v627 = vsel %vm591, %v625, %v626
      %v628 = vrot.slane %v314, 1
      %v629 = vrot.slane %v362, 1
      %v630 = vsel %vm591, %v628, %v629
      %v631 = vrot.slane %v315, 1
      %v632 = vrot.slane %v363, 1
      %v633 = vsel %vm591, %v631, %v632
      %v634 = vrot.slane %v316, 1
      %v635 = vrot.slane %v364, 1
      %v636 = vsel %vm591, %v634, %v635
      %v637 = vrot.slane %v317, 1
      %v638 = vrot.slane %v365, 1
      %v639 = vsel %vm591, %v637, %v638
      %vm640 = vsmask.f32 6400
      %v641 = vrot.slane %v368, 1
      %v642 = vrot.slane %v370, 2
      %v643 = vor.u32 %v641, %v642
      %v644 = vshrl.u32 %v350, 16
      %v646 = vrot.slane %v644, 1
      %v647 = vrot.slane %v375, 2
      %v648 = vor.u32 %v646, %v647
      %v649 = vsel %vm640, %v643, %v648
      %v650 = vrot.slane %v380, 1
      %v651 = vrot.slane %v382, 2
      %v652 = vor.u32 %v650, %v651
      %v653 = vshrl.u32 %v351, 16
      %v655 = vrot.slane %v653, 1
      %v656 = vrot.slane %v387, 2
      %v657 = vor.u32 %v655, %v656
      %v658 = vsel %vm640, %v652, %v657
      %v659 = vrot.slane %v392, 1
      %v660 = vrot.slane %v394, 2
      %v661 = vor.u32 %v659, %v660
      %v662 = vshrl.u32 %v352, 16
      %v664 = vrot.slane %v662, 1
      %v665 = vrot.slane %v399, 2
      %v666 = vor.u32 %v664, %v665
      %v667 = vsel %vm640, %v661, %v666
      %v668 = vrot.slane %v404, 1
      %v669 = vrot.slane %v406, 2
      %v670 = vor.u32 %v668, %v669
      %v671 = vshrl.u32 %v353, 16
      %v673 = vrot.slane %v671, 1
      %v674 = vrot.slane %v411, 2
      %v675 = vor.u32 %v673, %v674
      %v676 = vsel %vm640, %v670, %v675
      %v677 = vrot.slane %v416, 1
      %v678 = vrot.slane %v418, 2
      %v679 = vor.u32 %v677, %v678
      %v680 = vshrl.u32 %v354, 16
      %v682 = vrot.slane %v680, 1
      %v683 = vrot.slane %v423, 2
      %v684 = vor.u32 %v682, %v683
      %v685 = vsel %vm640, %v679, %v684
      %v686 = vrot.slane %v428, 1
      %v687 = vrot.slane %v430, 2
      %v688 = vor.u32 %v686, %v687
      %v689 = vshrl.u32 %v355, 16
      %v691 = vrot.slane %v689, 1
      %v692 = vrot.slane %v435, 2
      %v693 = vor.u32 %v691, %v692
      %v694 = vsel %vm640, %v688, %v693
      %v695 = vrot.slane %v440, 1
      %v696 = vrot.slane %v442, 2
      %v697 = vor.u32 %v695, %v696
      %v698 = vshrl.u32 %v356, 16
      %v700 = vrot.slane %v698, 1
      %v701 = vrot.slane %v447, 2
      %v702 = vor.u32 %v700, %v701
      %v703 = vsel %vm640, %v697, %v702
      %v704 = vrot.slane %v452, 1
      %v705 = vrot.slane %v454, 2
      %v706 = vor.u32 %v704, %v705
      %v707 = vshrl.u32 %v357, 16
      %v709 = vrot.slane %v707, 1
      %v710 = vrot.slane %v459, 2
      %v711 = vor.u32 %v709, %v710
      %v712 = vsel %vm640, %v706, %v711
      %v713 = vrot.slane %v464, 1
      %v714 = vrot.slane %v466, 2
      %v715 = vor.u32 %v713, %v714
      %v716 = vshrl.u32 %v358, 16
      %v718 = vrot.slane %v716, 1
      %v719 = vrot.slane %v471, 2
      %v720 = vor.u32 %v718, %v719
      %v721 = vsel %vm640, %v715, %v720
      %v722 = vrot.slane %v476, 1
      %v723 = vrot.slane %v478, 2
      %v724 = vor.u32 %v722, %v723
      %v725 = vshrl.u32 %v359, 16
      %v727 = vrot.slane %v725, 1
      %v728 = vrot.slane %v483, 2
      %v729 = vor.u32 %v727, %v728
      %v730 = vsel %vm640, %v724, %v729
      %v731 = vrot.slane %v488, 1
      %v732 = vrot.slane %v490, 2
      %v733 = vor.u32 %v731, %v732
      %v734 = vshrl.u32 %v360, 16
      %v736 = vrot.slane %v734, 1
      %v737 = vrot.slane %v495, 2
      %v738 = vor.u32 %v736, %v737
      %v739 = vsel %vm640, %v733, %v738
      %v740 = vrot.slane %v500, 1
      %v741 = vrot.slane %v502, 2
      %v742 = vor.u32 %v740, %v741
      %v743 = vshrl.u32 %v361, 16
      %v745 = vrot.slane %v743, 1
      %v746 = vrot.slane %v507, 2
      %v747 = vor.u32 %v745, %v746
      %v748 = vsel %vm640, %v742, %v747
      %v749 = vrot.slane %v512, 1
      %v750 = vrot.slane %v514, 2
      %v751 = vor.u32 %v749, %v750
      %v752 = vshrl.u32 %v362, 16
      %v754 = vrot.slane %v752, 1
      %v755 = vrot.slane %v519, 2
      %v756 = vor.u32 %v754, %v755
      %v757 = vsel %vm640, %v751, %v756
      %v758 = vrot.slane %v524, 1
      %v759 = vrot.slane %v526, 2
      %v760 = vor.u32 %v758, %v759
      %v761 = vshrl.u32 %v363, 16
      %v763 = vrot.slane %v761, 1
      %v764 = vrot.slane %v531, 2
      %v765 = vor.u32 %v763, %v764
      %v766 = vsel %vm640, %v760, %v765
      %v767 = vrot.slane %v536, 1
      %v768 = vrot.slane %v538, 2
      %v769 = vor.u32 %v767, %v768
      %v770 = vshrl.u32 %v364, 16
      %v772 = vrot.slane %v770, 1
      %v773 = vrot.slane %v543, 2
      %v774 = vor.u32 %v772, %v773
      %v775 = vsel %vm640, %v769, %v774
      %v776 = vrot.slane %v548, 1
      %v777 = vrot.slane %v550, 2
      %v778 = vor.u32 %v776, %v777
      %v779 = vshrl.u32 %v365, 16
      %v781 = vrot.slane %v779, 1
      %v782 = vrot.slane %v555, 2
      %v783 = vor.u32 %v781, %v782
      %v784 = vsel %vm640, %v778, %v783
      %785 = vrot.lane.b32.xlu0 %v649, 64
      %v786 = vpop.permute.xlu0 %785
      %787 = vrot.lane.b32.xlu0 %v658, 64
      %v788 = vpop.permute.xlu0 %787
      %789 = vrot.lane.b32.xlu0 %v667, 64
      %v790 = vpop.permute.xlu0 %789
      %791 = vrot.lane.b32.xlu0 %v676, 64
      %v792 = vpop.permute.xlu0 %791
      %793 = vrot.lane.b32.xlu0 %v685, 64
      %v794 = vpop.permute.xlu0 %793
      %795 = vrot.lane.b32.xlu0 %v694, 64
      %v796 = vpop.permute.xlu0 %795
      %797 = vrot.lane.b32.xlu0 %v703, 64
      %v798 = vpop.permute.xlu0 %797
      %799 = vrot.lane.b32.xlu0 %v712, 64
      %v800 = vpop.permute.xlu0 %799
      %801 = vrot.lane.b32.xlu0 %v721, 64
      %v802 = vpop.permute.xlu0 %801
      %803 = vrot.lane.b32.xlu0 %v730, 64
      %v804 = vpop.permute.xlu0 %803
      %805 = vrot.lane.b32.xlu0 %v739, 64
      %v806 = vpop.permute.xlu0 %805
      %807 = vrot.lane.b32.xlu0 %v748, 64
      %v808 = vpop.permute.xlu0 %807
      %809 = vrot.lane.b32.xlu0 %v757, 64
      %v810 = vpop.permute.xlu0 %809
      %811 = vrot.lane.b32.xlu0 %v766, 64
      %v812 = vpop.permute.xlu0 %811
      %813 = vrot.lane.b32.xlu0 %v775, 64
      %v814 = vpop.permute.xlu0 %813
      %815 = vrot.lane.b32.xlu0 %v784, 64
      %v816 = vpop.permute.xlu0 %815
      %vm817 = vcmask 1045504
      %v818 = vrot.slane %v302, 2
      %v819 = vrot.slane %v350, 2
      %v820 = vsel %vm817, %v818, %v819
      %v821 = vrot.slane %v303, 2
      %v822 = vrot.slane %v351, 2
      %v823 = vsel %vm817, %v821, %v822
      %v824 = vrot.slane %v304, 2
      %v825 = vrot.slane %v352, 2
      %v826 = vsel %vm817, %v824, %v825
      %v827 = vrot.slane %v305, 2
      %v828 = vrot.slane %v353, 2
      %v829 = vsel %vm817, %v827, %v828
      %v830 = vrot.slane %v306, 2
      %v831 = vrot.slane %v354, 2
      %v832 = vsel %vm817, %v830, %v831
      %v833 = vrot.slane %v307, 2
      %v834 = vrot.slane %v355, 2
      %v835 = vsel %vm817, %v833, %v834
      %v836 = vrot.slane %v308, 2
      %v837 = vrot.slane %v356, 2
      %v838 = vsel %vm817, %v836, %v837
      %v839 = vrot.slane %v309, 2
      %v840 = vrot.slane %v357, 2
      %v841 = vsel %vm817, %v839, %v840
      %v842 = vrot.slane %v310, 2
      %v843 = vrot.slane %v358, 2
      %v844 = vsel %vm817, %v842, %v843
      %v845 = vrot.slane %v311, 2
      %v846 = vrot.slane %v359, 2
      %v847 = vsel %vm817, %v845, %v846
      %v848 = vrot.slane %v312, 2
      %v849 = vrot.slane %v360, 2
      %v850 = vsel %vm817, %v848, %v849
      %v851 = vrot.slane %v313, 2
      %v852 = vrot.slane %v361, 2
      %v853 = vsel %vm817, %v851, %v852
      %v854 = vrot.slane %v314, 2
      %v855 = vrot.slane %v362, 2
      %v856 = vsel %vm817, %v854, %v855
      %v857 = vrot.slane %v315, 2
      %v858 = vrot.slane %v363, 2
      %v859 = vsel %vm817, %v857, %v858
      %v860 = vrot.slane %v316, 2
      %v861 = vrot.slane %v364, 2
      %v862 = vsel %vm817, %v860, %v861
      %v863 = vrot.slane %v317, 2
      %v864 = vrot.slane %v365, 2
      %v865 = vsel %vm817, %v863, %v864
      %vm866 = vsmask.f32 5376
      %v867 = vrot.slane %v368, 2
      %v868 = vrot.slane %v370, 3
      %v869 = vor.u32 %v867, %v868
      %v870 = vrot.slane %v644, 2
      %v871 = vrot.slane %v375, 3
      %v872 = vor.u32 %v870, %v871
      %v873 = vsel %vm866, %v869, %v872
      %v874 = vrot.slane %v380, 2
      %v875 = vrot.slane %v382, 3
      %v876 = vor.u32 %v874, %v875
      %v877 = vrot.slane %v653, 2
      %v878 = vrot.slane %v387, 3
      %v879 = vor.u32 %v877, %v878
      %v880 = vsel %vm866, %v876, %v879
      %v881 = vrot.slane %v392, 2
      %v882 = vrot.slane %v394, 3
      %v883 = vor.u32 %v881, %v882
      %v884 = vrot.slane %v662, 2
      %v885 = vrot.slane %v399, 3
      %v886 = vor.u32 %v884, %v885
      %v887 = vsel %vm866, %v883, %v886
      %v888 = vrot.slane %v404, 2
      %v889 = vrot.slane %v406, 3
      %v890 = vor.u32 %v888, %v889
      %v891 = vrot.slane %v671, 2
      %v892 = vrot.slane %v411, 3
      %v893 = vor.u32 %v891, %v892
      %v894 = vsel %vm866, %v890, %v893
      %v895 = vrot.slane %v416, 2
      %v896 = vrot.slane %v418, 3
      %v897 = vor.u32 %v895, %v896
      %v898 = vrot.slane %v680, 2
      %v899 = vrot.slane %v423, 3
      %v900 = vor.u32 %v898, %v899
      %v901 = vsel %vm866, %v897, %v900
      %v902 = vrot.slane %v428, 2
      %v903 = vrot.slane %v430, 3
      %v904 = vor.u32 %v902, %v903
      %v905 = vrot.slane %v689, 2
      %v906 = vrot.slane %v435, 3
      %v907 = vor.u32 %v905, %v906
      %v908 = vsel %vm866, %v904, %v907
      %v909 = vrot.slane %v440, 2
      %v910 = vrot.slane %v442, 3
      %v911 = vor.u32 %v909, %v910
      %v912 = vrot.slane %v698, 2
      %v913 = vrot.slane %v447, 3
      %v914 = vor.u32 %v912, %v913
      %v915 = vsel %vm866, %v911, %v914
      %v916 = vrot.slane %v452, 2
      %v917 = vrot.slane %v454, 3
      %v918 = vor.u32 %v916, %v917
      %v919 = vrot.slane %v707, 2
      %v920 = vrot.slane %v459, 3
      %v921 = vor.u32 %v919, %v920
      %v922 = vsel %vm866, %v918, %v921
      %v923 = vrot.slane %v464, 2
      %v924 = vrot.slane %v466, 3
      %v925 = vor.u32 %v923, %v924
      %v926 = vrot.slane %v716, 2
      %v927 = vrot.slane %v471, 3
      %v928 = vor.u32 %v926, %v927
      %v929 = vsel %vm866, %v925, %v928
      %v930 = vrot.slane %v476, 2
      %v931 = vrot.slane %v478, 3
      %v932 = vor.u32 %v930, %v931
      %v933 = vrot.slane %v725, 2
      %v934 = vrot.slane %v483, 3
      %v935 = vor.u32 %v933, %v934
      %v936 = vsel %vm866, %v932, %v935
      %v937 = vrot.slane %v488, 2
      %v938 = vrot.slane %v490, 3
      %v939 = vor.u32 %v937, %v938
      %v940 = vrot.slane %v734, 2
      %v941 = vrot.slane %v495, 3
      %v942 = vor.u32 %v940, %v941
      %v943 = vsel %vm866, %v939, %v942
      %v944 = vrot.slane %v500, 2
      %v945 = vrot.slane %v502, 3
      %v946 = vor.u32 %v944, %v945
      %v947 = vrot.slane %v743, 2
      %v948 = vrot.slane %v507, 3
      %v949 = vor.u32 %v947, %v948
      %v950 = vsel %vm866, %v946, %v949
      %v951 = vrot.slane %v512, 2
      %v952 = vrot.slane %v514, 3
      %v953 = vor.u32 %v951, %v952
      %v954 = vrot.slane %v752, 2
      %v955 = vrot.slane %v519, 3
      %v956 = vor.u32 %v954, %v955
      %v957 = vsel %vm866, %v953, %v956
      %v958 = vrot.slane %v524, 2
      %v959 = vrot.slane %v526, 3
      %v960 = vor.u32 %v958, %v959
      %v961 = vrot.slane %v761, 2
      %v962 = vrot.slane %v531, 3
      %v963 = vor.u32 %v961, %v962
      %v964 = vsel %vm866, %v960, %v963
      %v965 = vrot.slane %v536, 2
      %v966 = vrot.slane %v538, 3
      %v967 = vor.u32 %v965, %v966
      %v968 = vrot.slane %v770, 2
      %v969 = vrot.slane %v543, 3
      %v970 = vor.u32 %v968, %v969
      %v971 = vsel %vm866, %v967, %v970
      %v972 = vrot.slane %v548, 2
      %v973 = vrot.slane %v550, 3
      %v974 = vor.u32 %v972, %v973
      %v975 = vrot.slane %v779, 2
      %v976 = vrot.slane %v555, 3
      %v977 = vor.u32 %v975, %v976
      %v978 = vsel %vm866, %v974, %v977
      %979 = vrot.lane.b32.xlu0 %v873, 64
      %v980 = vpop.permute.xlu0 %979
      %981 = vrot.lane.b32.xlu0 %v880, 64
      %v982 = vpop.permute.xlu0 %981
      %983 = vrot.lane.b32.xlu0 %v887, 64
      %v984 = vpop.permute.xlu0 %983
      %985 = vrot.lane.b32.xlu0 %v894, 64
      %v986 = vpop.permute.xlu0 %985
      %987 = vrot.lane.b32.xlu0 %v901, 64
      %v988 = vpop.permute.xlu0 %987
      %989 = vrot.lane.b32.xlu0 %v908, 64
      %v990 = vpop.permute.xlu0 %989
      %991 = vrot.lane.b32.xlu0 %v915, 64
      %v992 = vpop.permute.xlu0 %991
      %993 = vrot.lane.b32.xlu0 %v922, 64
      %v994 = vpop.permute.xlu0 %993
      %995 = vrot.lane.b32.xlu0 %v929, 64
      %v996 = vpop.permute.xlu0 %995
      %997 = vrot.lane.b32.xlu0 %v936, 64
      %v998 = vpop.permute.xlu0 %997
      %999 = vrot.lane.b32.xlu0 %v943, 64
      %v1000 = vpop.permute.xlu0 %999
      %1001 = vrot.lane.b32.xlu0 %v950, 64
      %v1002 = vpop.permute.xlu0 %1001
      %1003 = vrot.lane.b32.xlu0 %v957, 64
      %v1004 = vpop.permute.xlu0 %1003
      %1005 = vrot.lane.b32.xlu0 %v964, 64
      %v1006 = vpop.permute.xlu0 %1005
      %1007 = vrot.lane.b32.xlu0 %v971, 64
      %v1008 = vpop.permute.xlu0 %1007
      %1009 = vrot.lane.b32.xlu0 %v978, 64
      %v1010 = vpop.permute.xlu0 %1009
      %vm1011 = vcmask 1044480
      %v1012 = vrot.slane %v302, 3
      %v1013 = vrot.slane %v350, 3
      %v1014 = vsel %vm1011, %v1012, %v1013
      %v1015 = vrot.slane %v303, 3
      %v1016 = vrot.slane %v351, 3
      %v1017 = vsel %vm1011, %v1015, %v1016
      %v1018 = vrot.slane %v304, 3
      %v1019 = vrot.slane %v352, 3
      %v1020 = vsel %vm1011, %v1018, %v1019
      %v1021 = vrot.slane %v305, 3
      %v1022 = vrot.slane %v353, 3
      %v1023 = vsel %vm1011, %v1021, %v1022
      %v1024 = vrot.slane %v306, 3
      %v1025 = vrot.slane %v354, 3
      %v1026 = vsel %vm1011, %v1024, %v1025
      %v1027 = vrot.slane %v307, 3
      %v1028 = vrot.slane %v355, 3
      %v1029 = vsel %vm1011, %v1027, %v1028
      %v1030 = vrot.slane %v308, 3
      %v1031 = vrot.slane %v356, 3
      %v1032 = vsel %vm1011, %v1030, %v1031
      %v1033 = vrot.slane %v309, 3
      %v1034 = vrot.slane %v357, 3
      %v1035 = vsel %vm1011, %v1033, %v1034
      %v1036 = vrot.slane %v310, 3
      %v1037 = vrot.slane %v358, 3
      %v1038 = vsel %vm1011, %v1036, %v1037
      %v1039 = vrot.slane %v311, 3
      %v1040 = vrot.slane %v359, 3
      %v1041 = vsel %vm1011, %v1039, %v1040
      %v1042 = vrot.slane %v312, 3
      %v1043 = vrot.slane %v360, 3
      %v1044 = vsel %vm1011, %v1042, %v1043
      %v1045 = vrot.slane %v313, 3
      %v1046 = vrot.slane %v361, 3
      %v1047 = vsel %vm1011, %v1045, %v1046
      %v1048 = vrot.slane %v314, 3
      %v1049 = vrot.slane %v362, 3
      %v1050 = vsel %vm1011, %v1048, %v1049
      %v1051 = vrot.slane %v315, 3
      %v1052 = vrot.slane %v363, 3
      %v1053 = vsel %vm1011, %v1051, %v1052
      %v1054 = vrot.slane %v316, 3
      %v1055 = vrot.slane %v364, 3
      %v1056 = vsel %vm1011, %v1054, %v1055
      %v1057 = vrot.slane %v317, 3
      %v1058 = vrot.slane %v365, 3
      %v1059 = vsel %vm1011, %v1057, %v1058
      %vm1060 = vcmask 523264
      %v1062 = vsel %vm1060, %v302, %v560
      %v1065 = vsel %vm1060, %v303, %v562
      %v1068 = vsel %vm1060, %v304, %v564
      %v1071 = vsel %vm1060, %v305, %v566
      %v1074 = vsel %vm1060, %v306, %v568
      %v1077 = vsel %vm1060, %v307, %v570
      %v1080 = vsel %vm1060, %v308, %v572
      %v1083 = vsel %vm1060, %v309, %v574
      %v1086 = vsel %vm1060, %v310, %v576
      %v1089 = vsel %vm1060, %v311, %v578
      %v1092 = vsel %vm1060, %v312, %v580
      %v1095 = vsel %vm1060, %v313, %v582
      %v1098 = vsel %vm1060, %v314, %v584
      %v1101 = vsel %vm1060, %v315, %v586
      %v1104 = vsel %vm1060, %v316, %v588
      %v1107 = vsel %vm1060, %v317, %v590
      %v1111 = vsel %vm1060, %v594, %v786
      %v1115 = vsel %vm1060, %v597, %v788
      %v1119 = vsel %vm1060, %v600, %v790
      %v1123 = vsel %vm1060, %v603, %v792
      %v1127 = vsel %vm1060, %v606, %v794
      %v1131 = vsel %vm1060, %v609, %v796
      %v1135 = vsel %vm1060, %v612, %v798
      %v1139 = vsel %vm1060, %v615, %v800
      %v1143 = vsel %vm1060, %v618, %v802
      %v1147 = vsel %vm1060, %v621, %v804
      %v1151 = vsel %vm1060, %v624, %v806
      %v1155 = vsel %vm1060, %v627, %v808
      %v1159 = vsel %vm1060, %v630, %v810
      %v1163 = vsel %vm1060, %v633, %v812
      %v1167 = vsel %vm1060, %v636, %v814
      %v1171 = vsel %vm1060, %v639, %v816
      %v1175 = vsel %vm1060, %v820, %v980
      %v1179 = vsel %vm1060, %v823, %v982
      %v1183 = vsel %vm1060, %v826, %v984
      %v1187 = vsel %vm1060, %v829, %v986
      %v1191 = vsel %vm1060, %v832, %v988
      %v1195 = vsel %vm1060, %v835, %v990
      %v1199 = vsel %vm1060, %v838, %v992
      %v1203 = vsel %vm1060, %v841, %v994
      %v1207 = vsel %vm1060, %v844, %v996
      %v1211 = vsel %vm1060, %v847, %v998
      %v1215 = vsel %vm1060, %v850, %v1000
      %v1219 = vsel %vm1060, %v853, %v1002
      %v1223 = vsel %vm1060, %v856, %v1004
      %v1227 = vsel %vm1060, %v859, %v1006
      %v1231 = vsel %vm1060, %v862, %v1008
      %v1235 = vsel %vm1060, %v865, %v1010
      %v1237 = vld [vmem:[%s1] sm:$0xf]
      %v1238 = vld [vmem:[%s1 + $0x4] sm:$0xf]
      %v1239 = vld [vmem:[%s1 + $0x8] sm:$0xf]
      %v1240 = vld [vmem:[%s1 + $0xc] sm:$0xf]
      %v1241 = vld [vmem:[%s1 + $0x10] sm:$0xf]
      %v1242 = vld [vmem:[%s1 + $0x14] sm:$0xf]
      %v1243 = vld [vmem:[%s1 + $0x18] sm:$0xf]
      %v1244 = vld [vmem:[%s1 + $0x1c] sm:$0xf]
      %v1245 = vld [vmem:[%s1 + $0x20] sm:$0xf]
      %v1246 = vld [vmem:[%s1 + $0x24] sm:$0xf]
      %v1247 = vld [vmem:[%s1 + $0x28] sm:$0xf]
      %v1248 = vld [vmem:[%s1 + $0x2c] sm:$0xf]
      %v1249 = vld [vmem:[%s1 + $0x30] sm:$0xf]
      %v1250 = vld [vmem:[%s1 + $0x34] sm:$0xf]
      %v1251 = vld [vmem:[%s1 + $0x38] sm:$0xf]
      %v1252 = vld [vmem:[%s1 + $0x3c] sm:$0xf]
      %v1253 = vld [vmem:[%s1 + $0x40] sm:$0xf]
      %v1254 = vld [vmem:[%s1 + $0x44] sm:$0xf]
      %v1255 = vld [vmem:[%s1 + $0x48] sm:$0xf]
      %v1256 = vld [vmem:[%s1 + $0x4c] sm:$0xf]
      %v1257 = vld [vmem:[%s1 + $0x50] sm:$0xf]
      %v1258 = vld [vmem:[%s1 + $0x54] sm:$0xf]
      %v1259 = vld [vmem:[%s1 + $0x58] sm:$0xf]
      %v1260 = vld [vmem:[%s1 + $0x5c] sm:$0xf]
      %v1261 = vld [vmem:[%s1 + $0x60] sm:$0xf]
      %v1262 = vld [vmem:[%s1 + $0x64] sm:$0xf]
      %v1263 = vld [vmem:[%s1 + $0x68] sm:$0xf]
      %v1264 = vld [vmem:[%s1 + $0x6c] sm:$0xf]
      %v1265 = vld [vmem:[%s1 + $0x70] sm:$0xf]
      %v1266 = vld [vmem:[%s1 + $0x74] sm:$0xf]
      %v1267 = vld [vmem:[%s1 + $0x78] sm:$0xf]
      %v1268 = vld [vmem:[%s1 + $0x7c] sm:$0xf]
      %v1269 = vld [vmem:[%s1 + $0x80] sm:$0xf]
      %v1270 = vld [vmem:[%s1 + $0x84] sm:$0xf]
      %v1271 = vld [vmem:[%s1 + $0x88] sm:$0xf]
      %v1272 = vld [vmem:[%s1 + $0x8c] sm:$0xf]
      %v1273 = vld [vmem:[%s1 + $0x90] sm:$0xf]
      %v1274 = vld [vmem:[%s1 + $0x94] sm:$0xf]
      %v1275 = vld [vmem:[%s1 + $0x98] sm:$0xf]
      %v1276 = vld [vmem:[%s1 + $0x9c] sm:$0xf]
      %v1277 = vld [vmem:[%s1 + $0xa0] sm:$0xf]
      %v1278 = vld [vmem:[%s1 + $0xa4] sm:$0xf]
      %v1279 = vld [vmem:[%s1 + $0xa8] sm:$0xf]
      %v1280 = vld [vmem:[%s1 + $0xac] sm:$0xf]
      %v1281 = vld [vmem:[%s1 + $0xb0] sm:$0xf]
      %v1282 = vld [vmem:[%s1 + $0xb4] sm:$0xf]
      %v1283 = vld [vmem:[%s1 + $0xb8] sm:$0xf]
      %v1284 = vld [vmem:[%s1 + $0xbc] sm:$0xf]
      %v1285 = vld [vmem:[%s1 + $0xc0] sm:$0xf]
      %v1286 = vld [vmem:[%s1 + $0xc4] sm:$0xf]
      %v1287 = vld [vmem:[%s1 + $0xc8] sm:$0xf]
      %v1288 = vld [vmem:[%s1 + $0xcc] sm:$0xf]
      %v1289 = vld [vmem:[%s1 + $0xd0] sm:$0xf]
      %v1290 = vld [vmem:[%s1 + $0xd4] sm:$0xf]
      %v1291 = vld [vmem:[%s1 + $0xd8] sm:$0xf]
      %v1292 = vld [vmem:[%s1 + $0xdc] sm:$0xf]
      %v1295 = vunpack.c.l.b16 %v220
      %v1296 = vunpack.c.l.b16 %v221
      %v1297 = vpack.c.b16 %v1296, %v1295
      %v1299 = vunpack.c.l.b16 %v222
      %v1300 = vpack.c.b16 %v1299, %v1299
      %v1302 = vshrl.u32 %v1297, 16
      %v1304 = vshll.u32 %v1297, 16
      %v1306 = vrot.slane %v1304, 1
      %v1307 = vor.u32 %v1302, %v1306
      %v1309 = vshll.u32 %v1300, 16
      %v1311 = vrot.slane %v1309, 1
      %v1312 = vsel %vm366, %v1307, %v1311
      %1313 = vrot.lane.b32.xlu0 %v1312, 64
      %v1314 = vpop.permute.xlu0 %1313
      %v1315 = vrot.slane %v1297, 1
      %v1316 = vrot.slane %v1300, 1
      %v1317 = vsel %vm591, %v1315, %v1316
      %v1318 = vrot.slane %v1302, 1
      %v1319 = vrot.slane %v1304, 2
      %v1320 = vor.u32 %v1318, %v1319
      %v1321 = vshrl.u32 %v1300, 16
      %v1323 = vrot.slane %v1321, 1
      %v1324 = vrot.slane %v1309, 2
      %v1325 = vor.u32 %v1323, %v1324
      %v1326 = vsel %vm640, %v1320, %v1325
      %1327 = vrot.lane.b32.xlu0 %v1326, 64
      %v1328 = vpop.permute.xlu0 %1327
      %v1329 = vrot.slane %v1297, 2
      %v1330 = vrot.slane %v1300, 2
      %v1331 = vsel %vm817, %v1329, %v1330
      %v1332 = vrot.slane %v1302, 2
      %v1333 = vrot.slane %v1304, 3
      %v1334 = vor.u32 %v1332, %v1333
      %v1335 = vrot.slane %v1321, 2
      %v1336 = vrot.slane %v1309, 3
      %v1337 = vor.u32 %v1335, %v1336
      %v1338 = vsel %vm866, %v1334, %v1337
      %1339 = vrot.lane.b32.xlu0 %v1338, 64
      %v1340 = vpop.permute.xlu0 %1339
      %v1341 = vrot.slane %v1297, 3
      %v1342 = vrot.slane %v1300, 3
      %v1343 = vsel %vm1011, %v1341, %v1342
      %v1345 = vsel %vm1060, %v1297, %v1314
      %v1349 = vsel %vm1060, %v1317, %v1328
      %v1353 = vsel %vm1060, %v1331, %v1340
      %s1355 = scalar_lea.vmem %s1, 224
      %v1356 = vld [vmem:[%s1355] sm:$0xf]
      %v1357 = vld [vmem:[%s1355 + $0x4] sm:$0xf]
      %v1358 = vld [vmem:[%s1355 + $0x8] sm:$0xf]
      %v1359 = vld [vmem:[%s1355 + $0xc] sm:$0xf]
      %v1360 = vld [vmem:[%s1355 + $0x10] sm:$0xf]
      %v1361 = vld [vmem:[%s1355 + $0x14] sm:$0xf]
      %v1362 = vld [vmem:[%s1355 + $0x18] sm:$0xf]
      %v1363 = vld [vmem:[%s1355 + $0x1c] sm:$0xf]
      %v1364 = vld [vmem:[%s1355 + $0x20] sm:$0xf]
      %v1365 = vld [vmem:[%s1355 + $0x24] sm:$0xf]
      %v1366 = vld [vmem:[%s1355 + $0x28] sm:$0xf]
      %v1367 = vld [vmem:[%s1355 + $0x2c] sm:$0xf]
      %v1368 = vld [vmem:[%s1355 + $0x30] sm:$0xf]
      %v1369 = vld [vmem:[%s1355 + $0x34] sm:$0xf]
      %v1370 = vld [vmem:[%s1355 + $0x38] sm:$0xf]
      %v1371 = vld [vmem:[%s1355 + $0x3c] sm:$0xf]
      %v1372 = vld [vmem:[%s1355 + $0x40] sm:$0xf]
      %v1373 = vld [vmem:[%s1355 + $0x44] sm:$0xf]
      %v1374 = vld [vmem:[%s1355 + $0x48] sm:$0xf]
      %v1375 = vld [vmem:[%s1355 + $0x4c] sm:$0xf]
      %v1376 = vld [vmem:[%s1355 + $0x50] sm:$0xf]
      %v1377 = vld [vmem:[%s1355 + $0x54] sm:$0xf]
      %v1378 = vld [vmem:[%s1355 + $0x58] sm:$0xf]
      %v1379 = vld [vmem:[%s1355 + $0x5c] sm:$0xf]
      %v1380 = vld [vmem:[%s1355 + $0x60] sm:$0xf]
      %v1381 = vld [vmem:[%s1355 + $0x64] sm:$0xf]
      %v1382 = vld [vmem:[%s1355 + $0x68] sm:$0xf]
      %v1383 = vld [vmem:[%s1355 + $0x6c] sm:$0xf]
      %v1384 = vld [vmem:[%s1355 + $0x70] sm:$0xf]
      %v1385 = vld [vmem:[%s1355 + $0x74] sm:$0xf]
      %v1386 = vld [vmem:[%s1355 + $0x78] sm:$0xf]
      %v1387 = vld [vmem:[%s1355 + $0x7c] sm:$0xf]
      %v1388 = vld [vmem:[%s1355 + $0x80] sm:$0xf]
      %v1389 = vld [vmem:[%s1355 + $0x84] sm:$0xf]
      %v1390 = vld [vmem:[%s1355 + $0x88] sm:$0xf]
      %v1391 = vld [vmem:[%s1355 + $0x8c] sm:$0xf]
      %v1392 = vld [vmem:[%s1355 + $0x90] sm:$0xf]
      %v1393 = vld [vmem:[%s1355 + $0x94] sm:$0xf]
      %v1394 = vld [vmem:[%s1355 + $0x98] sm:$0xf]
      %v1395 = vld [vmem:[%s1355 + $0x9c] sm:$0xf]
      %v1396 = vld [vmem:[%s1355 + $0xa0] sm:$0xf]
      %v1397 = vld [vmem:[%s1355 + $0xa4] sm:$0xf]
      %v1398 = vld [vmem:[%s1355 + $0xa8] sm:$0xf]
      %v1399 = vld [vmem:[%s1355 + $0xac] sm:$0xf]
      %v1400 = vld [vmem:[%s1355 + $0xb0] sm:$0xf]
      %v1401 = vld [vmem:[%s1355 + $0xb4] sm:$0xf]
      %v1402 = vld [vmem:[%s1355 + $0xb8] sm:$0xf]
      %v1403 = vld [vmem:[%s1355 + $0xbc] sm:$0xf]
      %v1404 = vld [vmem:[%s1355 + $0xc0] sm:$0xf]
      %v1405 = vld [vmem:[%s1355 + $0xc4] sm:$0xf]
      %v1406 = vld [vmem:[%s1355 + $0xc8] sm:$0xf]
      %v1407 = vld [vmem:[%s1355 + $0xcc] sm:$0xf]
      %v1408 = vld [vmem:[%s1355 + $0xd0] sm:$0xf]
      %v1409 = vld [vmem:[%s1355 + $0xd4] sm:$0xf]
      %v1410 = vld [vmem:[%s1355 + $0xd8] sm:$0xf]
      %v1411 = vld [vmem:[%s1355 + $0xdc] sm:$0xf]
      %v1468 = vunpack.c.l.b16 %v1356
      %v1469 = vunpack.c.l.b16 %v1357
      %v1470 = vunpack.c.l.b16 %v1358
      %v1471 = vunpack.c.l.b16 %v1359
      %v1472 = vunpack.c.l.b16 %v1360
      %v1473 = vunpack.c.l.b16 %v1361
      %v1474 = vunpack.c.l.b16 %v1362
      %v1475 = vunpack.c.l.b16 %v1363
      %v1476 = vunpack.c.l.b16 %v1364
      %v1477 = vunpack.c.l.b16 %v1365
      %v1478 = vunpack.c.l.b16 %v1366
      %v1479 = vunpack.c.l.b16 %v1367
      %v1480 = vunpack.c.l.b16 %v1368
      %v1481 = vunpack.c.l.b16 %v1369
      %v1482 = vunpack.c.l.b16 %v1370
      %v1483 = vunpack.c.l.b16 %v1371
      %v1484 = vunpack.c.l.b16 %v1372
      %v1485 = vunpack.c.l.b16 %v1373
      %v1486 = vunpack.c.l.b16 %v1374
      %v1487 = vunpack.c.l.b16 %v1375
      %v1488 = vunpack.c.l.b16 %v1376
      %v1489 = vunpack.c.l.b16 %v1377
      %v1490 = vunpack.c.l.b16 %v1378
      %v1491 = vunpack.c.l.b16 %v1379
      %v1492 = vunpack.c.l.b16 %v1380
      %v1493 = vunpack.c.l.b16 %v1381
      %v1494 = vunpack.c.l.b16 %v1382
      %v1495 = vunpack.c.l.b16 %v1383
      %v1496 = vunpack.c.l.b16 %v1384
      %v1497 = vunpack.c.l.b16 %v1385
      %v1498 = vunpack.c.l.b16 %v1386
      %v1499 = vunpack.c.l.b16 %v1387
      %v1500 = vunpack.c.l.b16 %v1388
      %v1501 = vunpack.c.l.b16 %v1389
      %v1502 = vunpack.c.l.b16 %v1390
      %v1503 = vunpack.c.l.b16 %v1391
      %v1504 = vunpack.c.l.b16 %v1392
      %v1505 = vunpack.c.l.b16 %v1393
      %v1506 = vunpack.c.l.b16 %v1394
      %v1507 = vunpack.c.l.b16 %v1395
      %v1508 = vunpack.c.l.b16 %v1396
      %v1509 = vunpack.c.l.b16 %v1397
      %v1510 = vunpack.c.l.b16 %v1398
      %v1511 = vunpack.c.l.b16 %v1399
      %v1512 = vunpack.c.l.b16 %v1400
      %v1513 = vunpack.c.l.b16 %v1401
      %v1514 = vunpack.c.l.b16 %v1402
      %v1515 = vunpack.c.l.b16 %v1403
      %v1516 = vunpack.c.l.b16 %v1404
      %v1517 = vunpack.c.l.b16 %v1405
      %v1518 = vunpack.c.l.b16 %v1406
      %v1519 = vunpack.c.l.b16 %v1407
      %v1520 = vunpack.c.l.b16 %v1408
      %v1521 = vunpack.c.l.b16 %v1409
      %v1522 = vunpack.c.l.b16 %v1410
      %v1523 = vunpack.c.l.b16 %v1411
      %v1524 = vpack.c.b16 %v1469, %v1468
      %v1525 = vpack.c.b16 %v1471, %v1470
      %v1526 = vpack.c.b16 %v1473, %v1472
      %v1527 = vpack.c.b16 %v1475, %v1474
      %v1528 = vpack.c.b16 %v1477, %v1476
      %v1529 = vpack.c.b16 %v1479, %v1478
      %v1530 = vpack.c.b16 %v1481, %v1480
      %v1531 = vpack.c.b16 %v1483, %v1482
      %v1532 = vpack.c.b16 %v1485, %v1484
      %v1533 = vpack.c.b16 %v1487, %v1486
      %v1534 = vpack.c.b16 %v1489, %v1488
      %v1535 = vpack.c.b16 %v1491, %v1490
      %v1536 = vpack.c.b16 %v1493, %v1492
      %v1537 = vpack.c.b16 %v1495, %v1494
      %v1538 = vpack.c.b16 %v1497, %v1496
      %v1539 = vpack.c.b16 %v1499, %v1498
      %v1540 = vpack.c.b16 %v1501, %v1500
      %v1541 = vpack.c.b16 %v1503, %v1502
      %v1542 = vpack.c.b16 %v1505, %v1504
      %v1543 = vpack.c.b16 %v1507, %v1506
      %v1544 = vpack.c.b16 %v1509, %v1508
      %v1545 = vpack.c.b16 %v1511, %v1510
      %v1546 = vpack.c.b16 %v1513, %v1512
      %v1547 = vpack.c.b16 %v1515, %v1514
      %v1548 = vpack.c.b16 %v1517, %v1516
      %v1549 = vpack.c.b16 %v1519, %v1518
      %v1550 = vpack.c.b16 %v1521, %v1520
      %v1551 = vpack.c.b16 %v1523, %v1522
      %v1581 = vsel %vm1060, %v1017, 0
      %v1584 = vsel %vm1060, %v1020, 0
      %v1587 = vsel %vm1060, %v1023, 0
      %v1590 = vsel %vm1060, %v1026, 0
      %v1593 = vsel %vm1060, %v1029, 0
      %v1596 = vsel %vm1060, %v1032, 0
      %v1599 = vsel %vm1060, %v1035, 0
      %v1602 = vsel %vm1060, %v1038, 0
      %v1605 = vsel %vm1060, %v1041, 0
      %v1608 = vsel %vm1060, %v1044, 0
      %v1611 = vsel %vm1060, %v1047, 0
      %v1614 = vsel %vm1060, %v1050, 0
      %v1617 = vsel %vm1060, %v1053, 0
      %v1620 = vsel %vm1060, %v1056, 0
      %v1623 = vsel %vm1060, %v1059, 0
      %v1626 = vsel %vm1060, %v1343, 0
      %1628 = vmatprep.subr.bf16.mxu0 0
      %1629 = vmatpush1.bf16.msra.mxu0 %v1531
      %1630 = vmatprep.subr.bf16.mxu0 0
      %1631 = vmatpush1.bf16.msra.mxu0 %v1530
      %1632 = vmatprep.subr.bf16.mxu0 0
      %1633 = vmatpush1.bf16.msra.mxu0 %v1529
      %1634 = vmatprep.subr.bf16.mxu0 0
      %1635 = vmatpush1.bf16.msra.mxu0 %v1528
      %1636 = vmatprep.subr.bf16.mxu0 0
      %1637 = vmatpush1.bf16.msra.mxu0 %v1527
      %1638 = vmatprep.subr.bf16.mxu0 0
      %1639 = vmatpush1.bf16.msra.mxu0 %v1526
      %1640 = vmatprep.subr.bf16.mxu0 0
      %1641 = vmatpush1.bf16.msra.mxu0 %v1525
      %1642 = vmatprep.subr.bf16.mxu0 0
      %1643 = vmatpush1.bf16.msra.mxu0 %v1524
      %1644 = vmatprep.subr.bf16.mxu0 0
      %1645 = vmatpush2.bf16.msra.mxu0 %v1539
      %1646 = vmatprep.subr.bf16.mxu0 0
      %1647 = vmatpush2.bf16.msra.mxu0 %v1538
      %1648 = vmatprep.subr.bf16.mxu0 0
      %1649 = vmatpush2.bf16.msra.mxu0 %v1537
      %1650 = vmatprep.subr.bf16.mxu0 0
      %1651 = vmatpush2.bf16.msra.mxu0 %v1536
      %1652 = vmatprep.subr.bf16.mxu0 0
      %1653 = vmatpush2.bf16.msra.mxu0 %v1535
      %1654 = vmatprep.subr.bf16.mxu0 0
      %1655 = vmatpush2.bf16.msra.mxu0 %v1534
      %1656 = vmatprep.subr.bf16.mxu0 0
      %1657 = vmatpush2.bf16.msra.mxu0 %v1533
      %1658 = vmatprep.subr.bf16.mxu0 0
      %1659 = vmatpush2.bf16.msra.mxu0 %v1532
      %1660 = vmatprep.mubr.bf16.mxu0 %v1115
      %1661 = vmatmul.mubr.bf16.gmra.mxu0 %v1065
      %v1662 = vpop.f32.mrf.mxu0
      %v1663 = vadd.f32 0.0, %v1662
      %v1664 = vpop.f32.mrf.mxu0
      %v1665 = vpop.f32.mrf.mxu0
      %v1666 = vadd.f32 0.0, %v1665
      %v1667 = vpop.f32.mrf.mxu0
      %1668 = vmatprep.mubr.bf16.mxu0 %v1119
      %1669 = vmatmul.mubr.bf16.gmra.mxu0 %v1068
      %v1670 = vpop.f32.mrf.mxu0
      %v1671 = vadd.f32 0.0, %v1670
      %v1672 = vpop.f32.mrf.mxu0
      %v1673 = vpop.f32.mrf.mxu0
      %v1674 = vadd.f32 0.0, %v1673
      %v1675 = vpop.f32.mrf.mxu0
      %1676 = vmatprep.mubr.bf16.mxu0 %v1123
      %1677 = vmatmul.mubr.bf16.gmra.mxu0 %v1071
      %v1678 = vpop.f32.mrf.mxu0
      %v1679 = vadd.f32 0.0, %v1678
      %v1680 = vpop.f32.mrf.mxu0
      %v1681 = vpop.f32.mrf.mxu0
      %v1682 = vadd.f32 0.0, %v1681
      %v1683 = vpop.f32.mrf.mxu0
      %1684 = vmatprep.mubr.bf16.mxu0 %v1127
      %1685 = vmatmul.mubr.bf16.gmra.mxu0 %v1074
      %v1686 = vpop.f32.mrf.mxu0
      %v1687 = vadd.f32 0.0, %v1686
      %v1688 = vpop.f32.mrf.mxu0
      %v1689 = vpop.f32.mrf.mxu0
      %v1690 = vadd.f32 0.0, %v1689
      %v1691 = vpop.f32.mrf.mxu0
      %1692 = vmatprep.mubr.bf16.mxu0 %v1131
      %1693 = vmatmul.mubr.bf16.gmra.mxu0 %v1077
      %v1694 = vpop.f32.mrf.mxu0
      %v1695 = vadd.f32 0.0, %v1694
      %v1696 = vpop.f32.mrf.mxu0
      %v1697 = vpop.f32.mrf.mxu0
      %v1698 = vadd.f32 0.0, %v1697
      %v1699 = vpop.f32.mrf.mxu0
      %1700 = vmatprep.mubr.bf16.mxu0 %v1135
      %1701 = vmatmul.mubr.bf16.gmra.mxu0 %v1080
      %v1702 = vpop.f32.mrf.mxu0
      %v1703 = vadd.f32 0.0, %v1702
      %v1704 = vpop.f32.mrf.mxu0
      %v1705 = vpop.f32.mrf.mxu0
      %v1706 = vadd.f32 0.0, %v1705
      %v1707 = vpop.f32.mrf.mxu0
      %1708 = vmatprep.mubr.bf16.mxu0 %v1139
      %1709 = vmatmul.mubr.bf16.gmra.mxu0 %v1083
      %v1710 = vpop.f32.mrf.mxu0
      %v1711 = vadd.f32 0.0, %v1710
      %v1712 = vpop.f32.mrf.mxu0
      %v1713 = vpop.f32.mrf.mxu0
      %v1714 = vadd.f32 0.0, %v1713
      %v1715 = vpop.f32.mrf.mxu0
      %1716 = vmatprep.mubr.bf16.mxu0 %v1143
      %1717 = vmatmul.mubr.bf16.gmra.mxu0 %v1086
      %v1718 = vpop.f32.mrf.mxu0
      %v1719 = vadd.f32 0.0, %v1718
      %v1720 = vpop.f32.mrf.mxu0
      %v1721 = vpop.f32.mrf.mxu0
      %v1722 = vadd.f32 0.0, %v1721
      %v1723 = vpop.f32.mrf.mxu0
      %1724 = vmatprep.mubr.bf16.mxu0 %v1147
      %1725 = vmatmul.mubr.bf16.gmra.mxu0 %v1089
      %v1726 = vpop.f32.mrf.mxu0
      %v1727 = vadd.f32 0.0, %v1726
      %v1728 = vpop.f32.mrf.mxu0
      %v1729 = vpop.f32.mrf.mxu0
      %v1730 = vadd.f32 0.0, %v1729
      %v1731 = vpop.f32.mrf.mxu0
      %1732 = vmatprep.mubr.bf16.mxu0 %v1151
      %1733 = vmatmul.mubr.bf16.gmra.mxu0 %v1092
      %v1734 = vpop.f32.mrf.mxu0
      %v1735 = vadd.f32 0.0, %v1734
      %v1736 = vpop.f32.mrf.mxu0
      %v1737 = vpop.f32.mrf.mxu0
      %v1738 = vadd.f32 0.0, %v1737
      %v1739 = vpop.f32.mrf.mxu0
      %1740 = vmatprep.mubr.bf16.mxu0 %v1155
      %1741 = vmatmul.mubr.bf16.gmra.mxu0 %v1095
      %v1742 = vpop.f32.mrf.mxu0
      %v1743 = vadd.f32 0.0, %v1742
      %v1744 = vpop.f32.mrf.mxu0
      %v1745 = vpop.f32.mrf.mxu0
      %v1746 = vadd.f32 0.0, %v1745
      %v1747 = vpop.f32.mrf.mxu0
      %1748 = vmatprep.mubr.bf16.mxu0 %v1159
      %1749 = vmatmul.mubr.bf16.gmra.mxu0 %v1098
      %v1750 = vpop.f32.mrf.mxu0
      %v1751 = vadd.f32 0.0, %v1750
      %v1752 = vpop.f32.mrf.mxu0
      %v1753 = vpop.f32.mrf.mxu0
      %v1754 = vadd.f32 0.0, %v1753
      %v1755 = vpop.f32.mrf.mxu0
      %1756 = vmatprep.mubr.bf16.mxu0 %v1163
      %1757 = vmatmul.mubr.bf16.gmra.mxu0 %v1101
      %v1758 = vpop.f32.mrf.mxu0
      %v1759 = vadd.f32 0.0, %v1758
      %v1760 = vpop.f32.mrf.mxu0
      %v1761 = vpop.f32.mrf.mxu0
      %v1762 = vadd.f32 0.0, %v1761
      %v1763 = vpop.f32.mrf.mxu0
      %1764 = vmatprep.mubr.bf16.mxu0 %v1167
      %1765 = vmatmul.mubr.bf16.gmra.mxu0 %v1104
      %v1766 = vpop.f32.mrf.mxu0
      %v1767 = vadd.f32 0.0, %v1766
      %v1768 = vpop.f32.mrf.mxu0
      %v1769 = vpop.f32.mrf.mxu0
      %v1770 = vadd.f32 0.0, %v1769
      %v1771 = vpop.f32.mrf.mxu0
      %1772 = vmatprep.mubr.bf16.mxu0 %v1171
      %1773 = vmatmul.mubr.bf16.gmra.mxu0 %v1107
      %v1774 = vpop.f32.mrf.mxu0
      %v1775 = vadd.f32 0.0, %v1774
      %v1776 = vpop.f32.mrf.mxu0
      %v1777 = vpop.f32.mrf.mxu0
      %v1778 = vadd.f32 0.0, %v1777
      %v1779 = vpop.f32.mrf.mxu0
      %1780 = vmatprep.mubr.bf16.mxu0 %v1349
      %1781 = vmatmul.mubr.bf16.gmra.mxu0 %v1345
      %v1782 = vpop.f32.mrf.mxu0
      %v1783 = vadd.f32 0.0, %v1782
      %v1784 = vpop.f32.mrf.mxu0
      %v1785 = vpop.f32.mrf.mxu0
      %v1786 = vadd.f32 0.0, %v1785
      %v1787 = vpop.f32.mrf.mxu0
      %1788 = vdwg.mxu0
      %1789 = vmatprep.subr.bf16.mxu0 0
      %1790 = vmatpush1.bf16.msra.mxu0 %v1547
      %1791 = vmatprep.subr.bf16.mxu0 0
      %1792 = vmatpush1.bf16.msra.mxu0 %v1546
      %1793 = vmatprep.subr.bf16.mxu0 0
      %1794 = vmatpush1.bf16.msra.mxu0 %v1545
      %1795 = vmatprep.subr.bf16.mxu0 0
      %1796 = vmatpush1.bf16.msra.mxu0 %v1544
      %1797 = vmatprep.subr.bf16.mxu0 0
      %1798 = vmatpush1.bf16.msra.mxu0 %v1543
      %1799 = vmatprep.subr.bf16.mxu0 0
      %1800 = vmatpush1.bf16.msra.mxu0 %v1542
      %1801 = vmatprep.subr.bf16.mxu0 0
      %1802 = vmatpush1.bf16.msra.mxu0 %v1541
      %1803 = vmatprep.subr.bf16.mxu0 0
      %1804 = vmatpush1.bf16.msra.mxu0 %v1540
      %1805 = vmatprep.subr.bf16.mxu0 0
      %1806 = vmatpush2.bf16.msra.mxu0 0
      %1807 = vmatprep.subr.bf16.mxu0 0
      %1808 = vmatpush2.bf16.msra.mxu0 0
      %1809 = vmatprep.subr.bf16.mxu0 0
      %1810 = vmatpush2.bf16.msra.mxu0 0
      %1811 = vmatprep.subr.bf16.mxu0 0
      %1812 = vmatpush2.bf16.msra.mxu0 0
      %1813 = vmatprep.subr.bf16.mxu0 0
      %1814 = vmatpush2.bf16.msra.mxu0 %v1551
      %1815 = vmatprep.subr.bf16.mxu0 0
      %1816 = vmatpush2.bf16.msra.mxu0 %v1550
      %1817 = vmatprep.subr.bf16.mxu0 0
      %1818 = vmatpush2.bf16.msra.mxu0 %v1549
      %1819 = vmatprep.subr.bf16.mxu0 0
      %1820 = vmatpush2.bf16.msra.mxu0 %v1548
      %1821 = vmatprep.mubr.bf16.mxu0 %v1581
      %1822 = vmatmul.mubr.bf16.gmra.mxu0 %v1179
      %v1823 = vpop.f32.mrf.mxu0
      %v1824 = vadd.f32 %v1663, %v1823
      %v1825 = vpop.f32.mrf.mxu0
      %v1826 = vpop.f32.mrf.mxu0
      %v1827 = vadd.f32 %v1666, %v1826
      %v1828 = vpop.f32.mrf.mxu0
      %1829 = vmatprep.mubr.bf16.mxu0 %v1584
      %1830 = vmatmul.mubr.bf16.gmra.mxu0 %v1183
      %v1831 = vpop.f32.mrf.mxu0
      %v1832 = vadd.f32 %v1671, %v1831
      %v1833 = vpop.f32.mrf.mxu0
      %v1834 = vpop.f32.mrf.mxu0
      %v1835 = vadd.f32 %v1674, %v1834
      %v1836 = vpop.f32.mrf.mxu0
      %1837 = vmatprep.mubr.bf16.mxu0 %v1587
      %1838 = vmatmul.mubr.bf16.gmra.mxu0 %v1187
      %v1839 = vpop.f32.mrf.mxu0
      %v1840 = vadd.f32 %v1679, %v1839
      %v1841 = vpop.f32.mrf.mxu0
      %v1842 = vpop.f32.mrf.mxu0
      %v1843 = vadd.f32 %v1682, %v1842
      %v1844 = vpop.f32.mrf.mxu0
      %1845 = vmatprep.mubr.bf16.mxu0 %v1590
      %1846 = vmatmul.mubr.bf16.gmra.mxu0 %v1191
      %v1847 = vpop.f32.mrf.mxu0
      %v1848 = vadd.f32 %v1687, %v1847
      %v1849 = vpop.f32.mrf.mxu0
      %v1850 = vpop.f32.mrf.mxu0
      %v1851 = vadd.f32 %v1690, %v1850
      %v1852 = vpop.f32.mrf.mxu0
      %1853 = vmatprep.mubr.bf16.mxu0 %v1593
      %1854 = vmatmul.mubr.bf16.gmra.mxu0 %v1195
      %v1855 = vpop.f32.mrf.mxu0
      %v1856 = vadd.f32 %v1695, %v1855
      %v1857 = vpop.f32.mrf.mxu0
      %v1858 = vpop.f32.mrf.mxu0
      %v1859 = vadd.f32 %v1698, %v1858
      %v1860 = vpop.f32.mrf.mxu0
      %1861 = vmatprep.mubr.bf16.mxu0 %v1596
      %1862 = vmatmul.mubr.bf16.gmra.mxu0 %v1199
      %v1863 = vpop.f32.mrf.mxu0
      %v1864 = vadd.f32 %v1703, %v1863
      %v1865 = vpop.f32.mrf.mxu0
      %v1866 = vpop.f32.mrf.mxu0
      %v1867 = vadd.f32 %v1706, %v1866
      %v1868 = vpop.f32.mrf.mxu0
      %1869 = vmatprep.mubr.bf16.mxu0 %v1599
      %1870 = vmatmul.mubr.bf16.gmra.mxu0 %v1203
      %v1871 = vpop.f32.mrf.mxu0
      %v1872 = vadd.f32 %v1711, %v1871
      %v1873 = vpop.f32.mrf.mxu0
      %v1874 = vpop.f32.mrf.mxu0
      %v1875 = vadd.f32 %v1714, %v1874
      %v1876 = vpop.f32.mrf.mxu0
      %1877 = vmatprep.mubr.bf16.mxu0 %v1602
      %1878 = vmatmul.mubr.bf16.gmra.mxu0 %v1207
      %v1879 = vpop.f32.mrf.mxu0
      %v1880 = vadd.f32 %v1719, %v1879
      %v1881 = vpop.f32.mrf.mxu0
      %v1882 = vpop.f32.mrf.mxu0
      %v1883 = vadd.f32 %v1722, %v1882
      %v1884 = vpop.f32.mrf.mxu0
      %1885 = vmatprep.mubr.bf16.mxu0 %v1605
      %1886 = vmatmul.mubr.bf16.gmra.mxu0 %v1211
      %v1887 = vpop.f32.mrf.mxu0
      %v1888 = vadd.f32 %v1727, %v1887
      %v1889 = vpop.f32.mrf.mxu0
      %v1890 = vpop.f32.mrf.mxu0
      %v1891 = vadd.f32 %v1730, %v1890
      %v1892 = vpop.f32.mrf.mxu0
      %1893 = vmatprep.mubr.bf16.mxu0 %v1608
      %1894 = vmatmul.mubr.bf16.gmra.mxu0 %v1215
      %v1895 = vpop.f32.mrf.mxu0
      %v1896 = vadd.f32 %v1735, %v1895
      %v1897 = vpop.f32.mrf.mxu0
      %v1898 = vpop.f32.mrf.mxu0
      %v1899 = vadd.f32 %v1738, %v1898
      %v1900 = vpop.f32.mrf.mxu0
      %1901 = vmatprep.mubr.bf16.mxu0 %v1611
      %1902 = vmatmul.mubr.bf16.gmra.mxu0 %v1219
      %v1903 = vpop.f32.mrf.mxu0
      %v1904 = vadd.f32 %v1743, %v1903
      %v1905 = vpop.f32.mrf.mxu0
      %v1906 = vpop.f32.mrf.mxu0
      %v1907 = vadd.f32 %v1746, %v1906
      %v1908 = vpop.f32.mrf.mxu0
      %1909 = vmatprep.mubr.bf16.mxu0 %v1614
      %1910 = vmatmul.mubr.bf16.gmra.mxu0 %v1223
      %v1911 = vpop.f32.mrf.mxu0
      %v1912 = vadd.f32 %v1751, %v1911
      %v1913 = vpop.f32.mrf.mxu0
      %v1914 = vpop.f32.mrf.mxu0
      %v1915 = vadd.f32 %v1754, %v1914
      %v1916 = vpop.f32.mrf.mxu0
      %1917 = vmatprep.mubr.bf16.mxu0 %v1617
      %1918 = vmatmul.mubr.bf16.gmra.mxu0 %v1227
      %v1919 = vpop.f32.mrf.mxu0
      %v1920 = vadd.f32 %v1759, %v1919
      %v1921 = vpop.f32.mrf.mxu0
      %v1922 = vpop.f32.mrf.mxu0
      %v1923 = vadd.f32 %v1762, %v1922
      %v1924 = vpop.f32.mrf.mxu0
      %1925 = vmatprep.mubr.bf16.mxu0 %v1620
      %1926 = vmatmul.mubr.bf16.gmra.mxu0 %v1231
      %v1927 = vpop.f32.mrf.mxu0
      %v1928 = vadd.f32 %v1767, %v1927
      %v1929 = vpop.f32.mrf.mxu0
      %v1930 = vpop.f32.mrf.mxu0
      %v1931 = vadd.f32 %v1770, %v1930
      %v1932 = vpop.f32.mrf.mxu0
      %1933 = vmatprep.mubr.bf16.mxu0 %v1623
      %1934 = vmatmul.mubr.bf16.gmra.mxu0 %v1235
      %v1935 = vpop.f32.mrf.mxu0
      %v1936 = vadd.f32 %v1775, %v1935
      %v1937 = vpop.f32.mrf.mxu0
      %v1938 = vpop.f32.mrf.mxu0
      %v1939 = vadd.f32 %v1778, %v1938
      %v1940 = vpop.f32.mrf.mxu0
      %1941 = vmatprep.mubr.bf16.mxu0 %v1626
      %1942 = vmatmul.mubr.bf16.gmra.mxu0 %v1353
      %v1943 = vpop.f32.mrf.mxu0
      %v1944 = vadd.f32 %v1783, %v1943
      %v1945 = vpop.f32.mrf.mxu0
      %v1946 = vpop.f32.mrf.mxu0
      %v1947 = vadd.f32 %v1786, %v1946
      %v1948 = vpop.f32.mrf.mxu0
      %1949 = vdwg.mxu0
      %v2006 = vunpack.c.l.b16 %v1237
      %v2007 = vunpack.c.l.b16 %v1238
      %v2008 = vunpack.c.l.b16 %v1239
      %v2009 = vunpack.c.l.b16 %v1240
      %v2010 = vunpack.c.l.b16 %v1241
      %v2011 = vunpack.c.l.b16 %v1242
      %v2012 = vunpack.c.l.b16 %v1243
      %v2013 = vunpack.c.l.b16 %v1244
      %v2014 = vunpack.c.l.b16 %v1245
      %v2015 = vunpack.c.l.b16 %v1246
      %v2016 = vunpack.c.l.b16 %v1247
      %v2017 = vunpack.c.l.b16 %v1248
      %v2018 = vunpack.c.l.b16 %v1249
      %v2019 = vunpack.c.l.b16 %v1250
      %v2020 = vunpack.c.l.b16 %v1251
      %v2021 = vunpack.c.l.b16 %v1252
      %v2022 = vunpack.c.l.b16 %v1253
      %v2023 = vunpack.c.l.b16 %v1254
      %v2024 = vunpack.c.l.b16 %v1255
      %v2025 = vunpack.c.l.b16 %v1256
      %v2026 = vunpack.c.l.b16 %v1257
      %v2027 = vunpack.c.l.b16 %v1258
      %v2028 = vunpack.c.l.b16 %v1259
      %v2029 = vunpack.c.l.b16 %v1260
      %v2030 = vunpack.c.l.b16 %v1261
      %v2031 = vunpack.c.l.b16 %v1262
      %v2032 = vunpack.c.l.b16 %v1263
      %v2033 = vunpack.c.l.b16 %v1264
      %v2034 = vunpack.c.l.b16 %v1265
      %v2035 = vunpack.c.l.b16 %v1266
      %v2036 = vunpack.c.l.b16 %v1267
      %v2037 = vunpack.c.l.b16 %v1268
      %v2038 = vunpack.c.l.b16 %v1269
      %v2039 = vunpack.c.l.b16 %v1270
      %v2040 = vunpack.c.l.b16 %v1271
      %v2041 = vunpack.c.l.b16 %v1272
      %v2042 = vunpack.c.l.b16 %v1273
      %v2043 = vunpack.c.l.b16 %v1274
      %v2044 = vunpack.c.l.b16 %v1275
      %v2045 = vunpack.c.l.b16 %v1276
      %v2046 = vunpack.c.l.b16 %v1277
      %v2047 = vunpack.c.l.b16 %v1278
      %v2048 = vunpack.c.l.b16 %v1279
      %v2049 = vunpack.c.l.b16 %v1280
      %v2050 = vunpack.c.l.b16 %v1281
      %v2051 = vunpack.c.l.b16 %v1282
      %v2052 = vunpack.c.l.b16 %v1283
      %v2053 = vunpack.c.l.b16 %v1284
      %v2054 = vunpack.c.l.b16 %v1285
      %v2055 = vunpack.c.l.b16 %v1286
      %v2056 = vunpack.c.l.b16 %v1287
      %v2057 = vunpack.c.l.b16 %v1288
      %v2058 = vunpack.c.l.b16 %v1289
      %v2059 = vunpack.c.l.b16 %v1290
      %v2060 = vunpack.c.l.b16 %v1291
      %v2061 = vunpack.c.l.b16 %v1292
      %v2062 = vpack.c.b16 %v2007, %v2006
      %v2063 = vpack.c.b16 %v2009, %v2008
      %v2064 = vpack.c.b16 %v2011, %v2010
      %v2065 = vpack.c.b16 %v2013, %v2012
      %v2066 = vpack.c.b16 %v2015, %v2014
      %v2067 = vpack.c.b16 %v2017, %v2016
      %v2068 = vpack.c.b16 %v2019, %v2018
      %v2069 = vpack.c.b16 %v2021, %v2020
      %v2070 = vpack.c.b16 %v2023, %v2022
      %v2071 = vpack.c.b16 %v2025, %v2024
      %v2072 = vpack.c.b16 %v2027, %v2026
      %v2073 = vpack.c.b16 %v2029, %v2028
      %v2074 = vpack.c.b16 %v2031, %v2030
      %v2075 = vpack.c.b16 %v2033, %v2032
      %v2076 = vpack.c.b16 %v2035, %v2034
      %v2077 = vpack.c.b16 %v2037, %v2036
      %v2078 = vpack.c.b16 %v2039, %v2038
      %v2079 = vpack.c.b16 %v2041, %v2040
      %v2080 = vpack.c.b16 %v2043, %v2042
      %v2081 = vpack.c.b16 %v2045, %v2044
      %v2082 = vpack.c.b16 %v2047, %v2046
      %v2083 = vpack.c.b16 %v2049, %v2048
      %v2084 = vpack.c.b16 %v2051, %v2050
      %v2085 = vpack.c.b16 %v2053, %v2052
      %v2086 = vpack.c.b16 %v2055, %v2054
      %v2087 = vpack.c.b16 %v2057, %v2056
      %v2088 = vpack.c.b16 %v2059, %v2058
      %v2089 = vpack.c.b16 %v2061, %v2060
      %v2119 = vsel %vm1060, %v1014, 0
      %2121 = vmatprep.subr.bf16.mxu0 0
      %2122 = vmatpush1.bf16.msra.mxu0 %v2069
      %2123 = vmatprep.subr.bf16.mxu0 0
      %2124 = vmatpush1.bf16.msra.mxu0 %v2068
      %2125 = vmatprep.subr.bf16.mxu0 0
      %2126 = vmatpush1.bf16.msra.mxu0 %v2067
      %2127 = vmatprep.subr.bf16.mxu0 0
      %2128 = vmatpush1.bf16.msra.mxu0 %v2066
      %2129 = vmatprep.subr.bf16.mxu0 0
      %2130 = vmatpush1.bf16.msra.mxu0 %v2065
      %2131 = vmatprep.subr.bf16.mxu0 0
      %2132 = vmatpush1.bf16.msra.mxu0 %v2064
      %2133 = vmatprep.subr.bf16.mxu0 0
      %2134 = vmatpush1.bf16.msra.mxu0 %v2063
      %2135 = vmatprep.subr.bf16.mxu0 0
      %2136 = vmatpush1.bf16.msra.mxu0 %v2062
      %2137 = vmatprep.subr.bf16.mxu0 0
      %2138 = vmatpush2.bf16.msra.mxu0 %v2077
      %2139 = vmatprep.subr.bf16.mxu0 0
      %2140 = vmatpush2.bf16.msra.mxu0 %v2076
      %2141 = vmatprep.subr.bf16.mxu0 0
      %2142 = vmatpush2.bf16.msra.mxu0 %v2075
      %2143 = vmatprep.subr.bf16.mxu0 0
      %2144 = vmatpush2.bf16.msra.mxu0 %v2074
      %2145 = vmatprep.subr.bf16.mxu0 0
      %2146 = vmatpush2.bf16.msra.mxu0 %v2073
      %2147 = vmatprep.subr.bf16.mxu0 0
      %2148 = vmatpush2.bf16.msra.mxu0 %v2072
      %2149 = vmatprep.subr.bf16.mxu0 0
      %2150 = vmatpush2.bf16.msra.mxu0 %v2071
      %2151 = vmatprep.subr.bf16.mxu0 0
      %2152 = vmatpush2.bf16.msra.mxu0 %v2070
      %2153 = vmatprep.mubr.bf16.mxu0 %v1111
      %2154 = vmatmul.mubr.bf16.gmra.mxu0 %v1062
      %v2155 = vpop.f32.mrf.mxu0
      %v2156 = vadd.f32 %v1824, %v2155
      %v2157 = vpop.f32.mrf.mxu0
      %v2158 = vpop.f32.mrf.mxu0
      %v2159 = vadd.f32 %v1827, %v2158
      %v2160 = vpop.f32.mrf.mxu0
      %2161 = vmatprep.mubr.bf16.mxu0 %v1115
      %2162 = vmatmul.mubr.bf16.gmra.mxu0 %v1065
      %v2163 = vpop.f32.mrf.mxu0
      %v2164 = vadd.f32 %v1832, %v2163
      %v2165 = vpop.f32.mrf.mxu0
      %v2166 = vpop.f32.mrf.mxu0
      %v2167 = vadd.f32 %v1835, %v2166
      %v2168 = vpop.f32.mrf.mxu0
      %2169 = vmatprep.mubr.bf16.mxu0 %v1119
      %2170 = vmatmul.mubr.bf16.gmra.mxu0 %v1068
      %v2171 = vpop.f32.mrf.mxu0
      %v2172 = vadd.f32 %v1840, %v2171
      %v2173 = vpop.f32.mrf.mxu0
      %v2174 = vpop.f32.mrf.mxu0
      %v2175 = vadd.f32 %v1843, %v2174
      %v2176 = vpop.f32.mrf.mxu0
      %2177 = vmatprep.mubr.bf16.mxu0 %v1123
      %2178 = vmatmul.mubr.bf16.gmra.mxu0 %v1071
      %v2179 = vpop.f32.mrf.mxu0
      %v2180 = vadd.f32 %v1848, %v2179
      %v2181 = vpop.f32.mrf.mxu0
      %v2182 = vpop.f32.mrf.mxu0
      %v2183 = vadd.f32 %v1851, %v2182
      %v2184 = vpop.f32.mrf.mxu0
      %2185 = vmatprep.mubr.bf16.mxu0 %v1127
      %2186 = vmatmul.mubr.bf16.gmra.mxu0 %v1074
      %v2187 = vpop.f32.mrf.mxu0
      %v2188 = vadd.f32 %v1856, %v2187
      %v2189 = vpop.f32.mrf.mxu0
      %v2190 = vpop.f32.mrf.mxu0
      %v2191 = vadd.f32 %v1859, %v2190
      %v2192 = vpop.f32.mrf.mxu0
      %2193 = vmatprep.mubr.bf16.mxu0 %v1131
      %2194 = vmatmul.mubr.bf16.gmra.mxu0 %v1077
      %v2195 = vpop.f32.mrf.mxu0
      %v2196 = vadd.f32 %v1864, %v2195
      %v2197 = vpop.f32.mrf.mxu0
      %v2198 = vpop.f32.mrf.mxu0
      %v2199 = vadd.f32 %v1867, %v2198
      %v2200 = vpop.f32.mrf.mxu0
      %2201 = vmatprep.mubr.bf16.mxu0 %v1135
      %2202 = vmatmul.mubr.bf16.gmra.mxu0 %v1080
      %v2203 = vpop.f32.mrf.mxu0
      %v2204 = vadd.f32 %v1872, %v2203
      %v2205 = vpop.f32.mrf.mxu0
      %v2206 = vpop.f32.mrf.mxu0
      %v2207 = vadd.f32 %v1875, %v2206
      %v2208 = vpop.f32.mrf.mxu0
      %2209 = vmatprep.mubr.bf16.mxu0 %v1139
      %2210 = vmatmul.mubr.bf16.gmra.mxu0 %v1083
      %v2211 = vpop.f32.mrf.mxu0
      %v2212 = vadd.f32 %v1880, %v2211
      %v2213 = vpop.f32.mrf.mxu0
      %v2214 = vpop.f32.mrf.mxu0
      %v2215 = vadd.f32 %v1883, %v2214
      %v2216 = vpop.f32.mrf.mxu0
      %2217 = vmatprep.mubr.bf16.mxu0 %v1143
      %2218 = vmatmul.mubr.bf16.gmra.mxu0 %v1086
      %v2219 = vpop.f32.mrf.mxu0
      %v2220 = vadd.f32 %v1888, %v2219
      %v2221 = vpop.f32.mrf.mxu0
      %v2222 = vpop.f32.mrf.mxu0
      %v2223 = vadd.f32 %v1891, %v2222
      %v2224 = vpop.f32.mrf.mxu0
      %2225 = vmatprep.mubr.bf16.mxu0 %v1147
      %2226 = vmatmul.mubr.bf16.gmra.mxu0 %v1089
      %v2227 = vpop.f32.mrf.mxu0
      %v2228 = vadd.f32 %v1896, %v2227
      %v2229 = vpop.f32.mrf.mxu0
      %v2230 = vpop.f32.mrf.mxu0
      %v2231 = vadd.f32 %v1899, %v2230
      %v2232 = vpop.f32.mrf.mxu0
      %2233 = vmatprep.mubr.bf16.mxu0 %v1151
      %2234 = vmatmul.mubr.bf16.gmra.mxu0 %v1092
      %v2235 = vpop.f32.mrf.mxu0
      %v2236 = vadd.f32 %v1904, %v2235
      %v2237 = vpop.f32.mrf.mxu0
      %v2238 = vpop.f32.mrf.mxu0
      %v2239 = vadd.f32 %v1907, %v2238
      %v2240 = vpop.f32.mrf.mxu0
      %2241 = vmatprep.mubr.bf16.mxu0 %v1155
      %2242 = vmatmul.mubr.bf16.gmra.mxu0 %v1095
      %v2243 = vpop.f32.mrf.mxu0
      %v2244 = vadd.f32 %v1912, %v2243
      %v2245 = vpop.f32.mrf.mxu0
      %v2246 = vpop.f32.mrf.mxu0
      %v2247 = vadd.f32 %v1915, %v2246
      %v2248 = vpop.f32.mrf.mxu0
      %2249 = vmatprep.mubr.bf16.mxu0 %v1159
      %2250 = vmatmul.mubr.bf16.gmra.mxu0 %v1098
      %v2251 = vpop.f32.mrf.mxu0
      %v2252 = vadd.f32 %v1920, %v2251
      %v2253 = vpop.f32.mrf.mxu0
      %v2254 = vpop.f32.mrf.mxu0
      %v2255 = vadd.f32 %v1923, %v2254
      %v2256 = vpop.f32.mrf.mxu0
      %2257 = vmatprep.mubr.bf16.mxu0 %v1163
      %2258 = vmatmul.mubr.bf16.gmra.mxu0 %v1101
      %v2259 = vpop.f32.mrf.mxu0
      %v2260 = vadd.f32 %v1928, %v2259
      %v2261 = vpop.f32.mrf.mxu0
      %v2262 = vpop.f32.mrf.mxu0
      %v2263 = vadd.f32 %v1931, %v2262
      %v2264 = vpop.f32.mrf.mxu0
      %2265 = vmatprep.mubr.bf16.mxu0 %v1167
      %2266 = vmatmul.mubr.bf16.gmra.mxu0 %v1104
      %v2267 = vpop.f32.mrf.mxu0
      %v2268 = vadd.f32 %v1936, %v2267
      %v2269 = vpop.f32.mrf.mxu0
      %v2270 = vpop.f32.mrf.mxu0
      %v2271 = vadd.f32 %v1939, %v2270
      %v2272 = vpop.f32.mrf.mxu0
      %2273 = vmatprep.mubr.bf16.mxu0 %v1171
      %2274 = vmatmul.mubr.bf16.gmra.mxu0 %v1107
      %v2275 = vpop.f32.mrf.mxu0
      %v2276 = vadd.f32 %v1944, %v2275
      %v2277 = vpop.f32.mrf.mxu0
      %v2278 = vpop.f32.mrf.mxu0
      %v2279 = vadd.f32 %v1947, %v2278
      %v2280 = vpop.f32.mrf.mxu0
      %2281 = vdwg.mxu0
      %2282 = vmatprep.subr.bf16.mxu0 0
      %2283 = vmatpush1.bf16.msra.mxu0 %v2085
      %2284 = vmatprep.subr.bf16.mxu0 0
      %2285 = vmatpush1.bf16.msra.mxu0 %v2084
      %2286 = vmatprep.subr.bf16.mxu0 0
      %2287 = vmatpush1.bf16.msra.mxu0 %v2083
      %2288 = vmatprep.subr.bf16.mxu0 0
      %2289 = vmatpush1.bf16.msra.mxu0 %v2082
      %2290 = vmatprep.subr.bf16.mxu0 0
      %2291 = vmatpush1.bf16.msra.mxu0 %v2081
      %2292 = vmatprep.subr.bf16.mxu0 0
      %2293 = vmatpush1.bf16.msra.mxu0 %v2080
      %2294 = vmatprep.subr.bf16.mxu0 0
      %2295 = vmatpush1.bf16.msra.mxu0 %v2079
      %2296 = vmatprep.subr.bf16.mxu0 0
      %2297 = vmatpush1.bf16.msra.mxu0 %v2078
      %2298 = vmatprep.subr.bf16.mxu0 0
      %2299 = vmatpush2.bf16.msra.mxu0 0
      %2300 = vmatprep.subr.bf16.mxu0 0
      %2301 = vmatpush2.bf16.msra.mxu0 0
      %2302 = vmatprep.subr.bf16.mxu0 0
      %2303 = vmatpush2.bf16.msra.mxu0 0
      %2304 = vmatprep.subr.bf16.mxu0 0
      %2305 = vmatpush2.bf16.msra.mxu0 0
      %2306 = vmatprep.subr.bf16.mxu0 0
      %2307 = vmatpush2.bf16.msra.mxu0 %v2089
      %2308 = vmatprep.subr.bf16.mxu0 0
      %2309 = vmatpush2.bf16.msra.mxu0 %v2088
      %2310 = vmatprep.subr.bf16.mxu0 0
      %2311 = vmatpush2.bf16.msra.mxu0 %v2087
      %2312 = vmatprep.subr.bf16.mxu0 0
      %2313 = vmatpush2.bf16.msra.mxu0 %v2086
      %2314 = vmatprep.mubr.bf16.mxu0 %v2119
      %2315 = vmatmul.mubr.bf16.gmra.mxu0 %v1175
      %v2316 = vpop.f32.mrf.mxu0
      %v2317 = vadd.f32 %v2156, %v2316
      %v2318 = vpop.f32.mrf.mxu0
      %v2319 = vpop.f32.mrf.mxu0
      %v2320 = vadd.f32 %v2159, %v2319
      %v2321 = vpop.f32.mrf.mxu0
      %2322 = vmatprep.mubr.bf16.mxu0 %v1581
      %2323 = vmatmul.mubr.bf16.gmra.mxu0 %v1179
      %v2324 = vpop.f32.mrf.mxu0
      %v2325 = vadd.f32 %v2164, %v2324
      %v2326 = vpop.f32.mrf.mxu0
      %v2327 = vpop.f32.mrf.mxu0
      %v2328 = vadd.f32 %v2167, %v2327
      %v2329 = vpop.f32.mrf.mxu0
      %2330 = vmatprep.mubr.bf16.mxu0 %v1584
      %2331 = vmatmul.mubr.bf16.gmra.mxu0 %v1183
      %v2332 = vpop.f32.mrf.mxu0
      %v2333 = vadd.f32 %v2172, %v2332
      %v2334 = vpop.f32.mrf.mxu0
      %v2335 = vpop.f32.mrf.mxu0
      %v2336 = vadd.f32 %v2175, %v2335
      %v2337 = vpop.f32.mrf.mxu0
      %2338 = vmatprep.mubr.bf16.mxu0 %v1587
      %2339 = vmatmul.mubr.bf16.gmra.mxu0 %v1187
      %v2340 = vpop.f32.mrf.mxu0
      %v2341 = vadd.f32 %v2180, %v2340
      %v2342 = vpop.f32.mrf.mxu0
      %v2343 = vpop.f32.mrf.mxu0
      %v2344 = vadd.f32 %v2183, %v2343
      %v2345 = vpop.f32.mrf.mxu0
      %2346 = vmatprep.mubr.bf16.mxu0 %v1590
      %2347 = vmatmul.mubr.bf16.gmra.mxu0 %v1191
      %v2348 = vpop.f32.mrf.mxu0
      %v2349 = vadd.f32 %v2188, %v2348
      %v2350 = vpop.f32.mrf.mxu0
      %v2351 = vpop.f32.mrf.mxu0
      %v2352 = vadd.f32 %v2191, %v2351
      %v2353 = vpop.f32.mrf.mxu0
      %2354 = vmatprep.mubr.bf16.mxu0 %v1593
      %2355 = vmatmul.mubr.bf16.gmra.mxu0 %v1195
      %v2356 = vpop.f32.mrf.mxu0
      %v2357 = vadd.f32 %v2196, %v2356
      %v2358 = vpop.f32.mrf.mxu0
      %v2359 = vpop.f32.mrf.mxu0
      %v2360 = vadd.f32 %v2199, %v2359
      %v2361 = vpop.f32.mrf.mxu0
      %2362 = vmatprep.mubr.bf16.mxu0 %v1596
      %2363 = vmatmul.mubr.bf16.gmra.mxu0 %v1199
      %v2364 = vpop.f32.mrf.mxu0
      %v2365 = vadd.f32 %v2204, %v2364
      %v2366 = vpop.f32.mrf.mxu0
      %v2367 = vpop.f32.mrf.mxu0
      %v2368 = vadd.f32 %v2207, %v2367
      %v2369 = vpop.f32.mrf.mxu0
      %2370 = vmatprep.mubr.bf16.mxu0 %v1599
      %2371 = vmatmul.mubr.bf16.gmra.mxu0 %v1203
      %v2372 = vpop.f32.mrf.mxu0
      %v2373 = vadd.f32 %v2212, %v2372
      %v2374 = vpop.f32.mrf.mxu0
      %v2375 = vpop.f32.mrf.mxu0
      %v2376 = vadd.f32 %v2215, %v2375
      %v2377 = vpop.f32.mrf.mxu0
      %2378 = vmatprep.mubr.bf16.mxu0 %v1602
      %2379 = vmatmul.mubr.bf16.gmra.mxu0 %v1207
      %v2380 = vpop.f32.mrf.mxu0
      %v2381 = vadd.f32 %v2220, %v2380
      %v2382 = vpop.f32.mrf.mxu0
      %v2383 = vpop.f32.mrf.mxu0
      %v2384 = vadd.f32 %v2223, %v2383
      %v2385 = vpop.f32.mrf.mxu0
      %2386 = vmatprep.mubr.bf16.mxu0 %v1605
      %2387 = vmatmul.mubr.bf16.gmra.mxu0 %v1211
      %v2388 = vpop.f32.mrf.mxu0
      %v2389 = vadd.f32 %v2228, %v2388
      %v2390 = vpop.f32.mrf.mxu0
      %v2391 = vpop.f32.mrf.mxu0
      %v2392 = vadd.f32 %v2231, %v2391
      %v2393 = vpop.f32.mrf.mxu0
      %2394 = vmatprep.mubr.bf16.mxu0 %v1608
      %2395 = vmatmul.mubr.bf16.gmra.mxu0 %v1215
      %v2396 = vpop.f32.mrf.mxu0
      %v2397 = vadd.f32 %v2236, %v2396
      %v2398 = vpop.f32.mrf.mxu0
      %v2399 = vpop.f32.mrf.mxu0
      %v2400 = vadd.f32 %v2239, %v2399
      %v2401 = vpop.f32.mrf.mxu0
      %2402 = vmatprep.mubr.bf16.mxu0 %v1611
      %2403 = vmatmul.mubr.bf16.gmra.mxu0 %v1219
      %v2404 = vpop.f32.mrf.mxu0
      %v2405 = vadd.f32 %v2244, %v2404
      %v2406 = vpop.f32.mrf.mxu0
      %v2407 = vpop.f32.mrf.mxu0
      %v2408 = vadd.f32 %v2247, %v2407
      %v2409 = vpop.f32.mrf.mxu0
      %2410 = vmatprep.mubr.bf16.mxu0 %v1614
      %2411 = vmatmul.mubr.bf16.gmra.mxu0 %v1223
      %v2412 = vpop.f32.mrf.mxu0
      %v2413 = vadd.f32 %v2252, %v2412
      %v2414 = vpop.f32.mrf.mxu0
      %v2415 = vpop.f32.mrf.mxu0
      %v2416 = vadd.f32 %v2255, %v2415
      %v2417 = vpop.f32.mrf.mxu0
      %2418 = vmatprep.mubr.bf16.mxu0 %v1617
      %2419 = vmatmul.mubr.bf16.gmra.mxu0 %v1227
      %v2420 = vpop.f32.mrf.mxu0
      %v2421 = vadd.f32 %v2260, %v2420
      %v2422 = vpop.f32.mrf.mxu0
      %v2423 = vpop.f32.mrf.mxu0
      %v2424 = vadd.f32 %v2263, %v2423
      %v2425 = vpop.f32.mrf.mxu0
      %2426 = vmatprep.mubr.bf16.mxu0 %v1620
      %2427 = vmatmul.mubr.bf16.gmra.mxu0 %v1231
      %v2428 = vpop.f32.mrf.mxu0
      %v2429 = vadd.f32 %v2268, %v2428
      %v2430 = vpop.f32.mrf.mxu0
      %v2431 = vpop.f32.mrf.mxu0
      %v2432 = vadd.f32 %v2271, %v2431
      %v2433 = vpop.f32.mrf.mxu0
      %2434 = vmatprep.mubr.bf16.mxu0 %v1623
      %2435 = vmatmul.mubr.bf16.gmra.mxu0 %v1235
      %v2436 = vpop.f32.mrf.mxu0
      %v2437 = vadd.f32 %v2276, %v2436
      %v2438 = vpop.f32.mrf.mxu0
      %v2439 = vpop.f32.mrf.mxu0
      %v2440 = vadd.f32 %v2279, %v2439
      %v2441 = vpop.f32.mrf.mxu0
      %2442 = vdwg.mxu0
      %v2445 = vunpack.c.l.b16 %v223
      %v2446 = vunpack.c.l.b16 %v224
      %v2447 = vpack.c.b16 %v2446, %v2445
      %v2449 = vunpack.c.l.b16 %v225
      %v2450 = vpack.c.b16 %v2449, %v2449
      %v2452 = vshrl.u32 %v2447, 16
      %v2454 = vshll.u32 %v2447, 16
      %v2456 = vrot.slane %v2454, 1
      %v2457 = vor.u32 %v2452, %v2456
      %v2459 = vshll.u32 %v2450, 16
      %v2461 = vrot.slane %v2459, 1
      %v2462 = vsel %vm366, %v2457, %v2461
      %2463 = vrot.lane.b32.xlu0 %v2462, 64
      %v2464 = vpop.permute.xlu0 %2463
      %v2465 = vrot.slane %v2447, 1
      %v2466 = vrot.slane %v2450, 1
      %v2467 = vsel %vm591, %v2465, %v2466
      %v2468 = vrot.slane %v2452, 1
      %v2469 = vrot.slane %v2454, 2
      %v2470 = vor.u32 %v2468, %v2469
      %v2471 = vshrl.u32 %v2450, 16
      %v2473 = vrot.slane %v2471, 1
      %v2474 = vrot.slane %v2459, 2
      %v2475 = vor.u32 %v2473, %v2474
      %v2476 = vsel %vm640, %v2470, %v2475
      %2477 = vrot.lane.b32.xlu0 %v2476, 64
      %v2478 = vpop.permute.xlu0 %2477
      %v2479 = vrot.slane %v2447, 2
      %v2480 = vrot.slane %v2450, 2
      %v2481 = vsel %vm817, %v2479, %v2480
      %v2482 = vrot.slane %v2452, 2
      %v2483 = vrot.slane %v2454, 3
      %v2484 = vor.u32 %v2482, %v2483
      %v2485 = vrot.slane %v2471, 2
      %v2486 = vrot.slane %v2459, 3
      %v2487 = vor.u32 %v2485, %v2486
      %v2488 = vsel %vm866, %v2484, %v2487
      %2489 = vrot.lane.b32.xlu0 %v2488, 64
      %v2490 = vpop.permute.xlu0 %2489
      %v2491 = vrot.slane %v2447, 3
      %v2492 = vrot.slane %v2450, 3
      %v2493 = vsel %vm1011, %v2491, %v2492
      %v2495 = vsel %vm1060, %v2447, %v2464
      %v2499 = vsel %vm1060, %v2467, %v2478
      %v2503 = vsel %vm1060, %v2481, %v2490
      %s2505 = scalar_lea.vmem %s1, 448
      %v2506 = vld [vmem:[%s2505] sm:$0xf]
      %v2507 = vld [vmem:[%s2505 + $0x4] sm:$0xf]
      %v2508 = vld [vmem:[%s2505 + $0x8] sm:$0xf]
      %v2509 = vld [vmem:[%s2505 + $0xc] sm:$0xf]
      %v2510 = vld [vmem:[%s2505 + $0x10] sm:$0xf]
      %v2511 = vld [vmem:[%s2505 + $0x14] sm:$0xf]
      %v2512 = vld [vmem:[%s2505 + $0x18] sm:$0xf]
      %v2513 = vld [vmem:[%s2505 + $0x1c] sm:$0xf]
      %v2514 = vld [vmem:[%s2505 + $0x20] sm:$0xf]
      %v2515 = vld [vmem:[%s2505 + $0x24] sm:$0xf]
      %v2516 = vld [vmem:[%s2505 + $0x28] sm:$0xf]
      %v2517 = vld [vmem:[%s2505 + $0x2c] sm:$0xf]
      %v2518 = vld [vmem:[%s2505 + $0x30] sm:$0xf]
      %v2519 = vld [vmem:[%s2505 + $0x34] sm:$0xf]
      %v2520 = vld [vmem:[%s2505 + $0x38] sm:$0xf]
      %v2521 = vld [vmem:[%s2505 + $0x3c] sm:$0xf]
      %v2522 = vld [vmem:[%s2505 + $0x40] sm:$0xf]
      %v2523 = vld [vmem:[%s2505 + $0x44] sm:$0xf]
      %v2524 = vld [vmem:[%s2505 + $0x48] sm:$0xf]
      %v2525 = vld [vmem:[%s2505 + $0x4c] sm:$0xf]
      %v2526 = vld [vmem:[%s2505 + $0x50] sm:$0xf]
      %v2527 = vld [vmem:[%s2505 + $0x54] sm:$0xf]
      %v2528 = vld [vmem:[%s2505 + $0x58] sm:$0xf]
      %v2529 = vld [vmem:[%s2505 + $0x5c] sm:$0xf]
      %v2530 = vld [vmem:[%s2505 + $0x60] sm:$0xf]
      %v2531 = vld [vmem:[%s2505 + $0x64] sm:$0xf]
      %v2532 = vld [vmem:[%s2505 + $0x68] sm:$0xf]
      %v2533 = vld [vmem:[%s2505 + $0x6c] sm:$0xf]
      %v2534 = vld [vmem:[%s2505 + $0x70] sm:$0xf]
      %v2535 = vld [vmem:[%s2505 + $0x74] sm:$0xf]
      %v2536 = vld [vmem:[%s2505 + $0x78] sm:$0xf]
      %v2537 = vld [vmem:[%s2505 + $0x7c] sm:$0xf]
      %v2538 = vld [vmem:[%s2505 + $0x80] sm:$0xf]
      %v2539 = vld [vmem:[%s2505 + $0x84] sm:$0xf]
      %v2540 = vld [vmem:[%s2505 + $0x88] sm:$0xf]
      %v2541 = vld [vmem:[%s2505 + $0x8c] sm:$0xf]
      %v2542 = vld [vmem:[%s2505 + $0x90] sm:$0xf]
      %v2543 = vld [vmem:[%s2505 + $0x94] sm:$0xf]
      %v2544 = vld [vmem:[%s2505 + $0x98] sm:$0xf]
      %v2545 = vld [vmem:[%s2505 + $0x9c] sm:$0xf]
      %v2546 = vld [vmem:[%s2505 + $0xa0] sm:$0xf]
      %v2547 = vld [vmem:[%s2505 + $0xa4] sm:$0xf]
      %v2548 = vld [vmem:[%s2505 + $0xa8] sm:$0xf]
      %v2549 = vld [vmem:[%s2505 + $0xac] sm:$0xf]
      %v2550 = vld [vmem:[%s2505 + $0xb0] sm:$0xf]
      %v2551 = vld [vmem:[%s2505 + $0xb4] sm:$0xf]
      %v2552 = vld [vmem:[%s2505 + $0xb8] sm:$0xf]
      %v2553 = vld [vmem:[%s2505 + $0xbc] sm:$0xf]
      %v2554 = vld [vmem:[%s2505 + $0xc0] sm:$0xf]
      %v2555 = vld [vmem:[%s2505 + $0xc4] sm:$0xf]
      %v2556 = vld [vmem:[%s2505 + $0xc8] sm:$0xf]
      %v2557 = vld [vmem:[%s2505 + $0xcc] sm:$0xf]
      %v2558 = vld [vmem:[%s2505 + $0xd0] sm:$0xf]
      %v2559 = vld [vmem:[%s2505 + $0xd4] sm:$0xf]
      %v2560 = vld [vmem:[%s2505 + $0xd8] sm:$0xf]
      %v2561 = vld [vmem:[%s2505 + $0xdc] sm:$0xf]
      %v2618 = vunpack.c.l.b16 %v2506
      %v2619 = vunpack.c.l.b16 %v2507
      %v2620 = vunpack.c.l.b16 %v2508
      %v2621 = vunpack.c.l.b16 %v2509
      %v2622 = vunpack.c.l.b16 %v2510
      %v2623 = vunpack.c.l.b16 %v2511
      %v2624 = vunpack.c.l.b16 %v2512
      %v2625 = vunpack.c.l.b16 %v2513
      %v2626 = vunpack.c.l.b16 %v2514
      %v2627 = vunpack.c.l.b16 %v2515
      %v2628 = vunpack.c.l.b16 %v2516
      %v2629 = vunpack.c.l.b16 %v2517
      %v2630 = vunpack.c.l.b16 %v2518
      %v2631 = vunpack.c.l.b16 %v2519
      %v2632 = vunpack.c.l.b16 %v2520
      %v2633 = vunpack.c.l.b16 %v2521
      %v2634 = vunpack.c.l.b16 %v2522
      %v2635 = vunpack.c.l.b16 %v2523
      %v2636 = vunpack.c.l.b16 %v2524
      %v2637 = vunpack.c.l.b16 %v2525
      %v2638 = vunpack.c.l.b16 %v2526
      %v2639 = vunpack.c.l.b16 %v2527
      %v2640 = vunpack.c.l.b16 %v2528
      %v2641 = vunpack.c.l.b16 %v2529
      %v2642 = vunpack.c.l.b16 %v2530
      %v2643 = vunpack.c.l.b16 %v2531
      %v2644 = vunpack.c.l.b16 %v2532
      %v2645 = vunpack.c.l.b16 %v2533
      %v2646 = vunpack.c.l.b16 %v2534
      %v2647 = vunpack.c.l.b16 %v2535
      %v2648 = vunpack.c.l.b16 %v2536
      %v2649 = vunpack.c.l.b16 %v2537
      %v2650 = vunpack.c.l.b16 %v2538
      %v2651 = vunpack.c.l.b16 %v2539
      %v2652 = vunpack.c.l.b16 %v2540
      %v2653 = vunpack.c.l.b16 %v2541
      %v2654 = vunpack.c.l.b16 %v2542
      %v2655 = vunpack.c.l.b16 %v2543
      %v2656 = vunpack.c.l.b16 %v2544
      %v2657 = vunpack.c.l.b16 %v2545
      %v2658 = vunpack.c.l.b16 %v2546
      %v2659 = vunpack.c.l.b16 %v2547
      %v2660 = vunpack.c.l.b16 %v2548
      %v2661 = vunpack.c.l.b16 %v2549
      %v2662 = vunpack.c.l.b16 %v2550
      %v2663 = vunpack.c.l.b16 %v2551
      %v2664 = vunpack.c.l.b16 %v2552
      %v2665 = vunpack.c.l.b16 %v2553
      %v2666 = vunpack.c.l.b16 %v2554
      %v2667 = vunpack.c.l.b16 %v2555
      %v2668 = vunpack.c.l.b16 %v2556
      %v2669 = vunpack.c.l.b16 %v2557
      %v2670 = vunpack.c.l.b16 %v2558
      %v2671 = vunpack.c.l.b16 %v2559
      %v2672 = vunpack.c.l.b16 %v2560
      %v2673 = vunpack.c.l.b16 %v2561
      %v2674 = vpack.c.b16 %v2619, %v2618
      %v2675 = vpack.c.b16 %v2621, %v2620
      %v2676 = vpack.c.b16 %v2623, %v2622
      %v2677 = vpack.c.b16 %v2625, %v2624
      %v2678 = vpack.c.b16 %v2627, %v2626
      %v2679 = vpack.c.b16 %v2629, %v2628
      %v2680 = vpack.c.b16 %v2631, %v2630
      %v2681 = vpack.c.b16 %v2633, %v2632
      %v2682 = vpack.c.b16 %v2635, %v2634
      %v2683 = vpack.c.b16 %v2637, %v2636
      %v2684 = vpack.c.b16 %v2639, %v2638
      %v2685 = vpack.c.b16 %v2641, %v2640
      %v2686 = vpack.c.b16 %v2643, %v2642
      %v2687 = vpack.c.b16 %v2645, %v2644
      %v2688 = vpack.c.b16 %v2647, %v2646
      %v2689 = vpack.c.b16 %v2649, %v2648
      %v2690 = vpack.c.b16 %v2651, %v2650
      %v2691 = vpack.c.b16 %v2653, %v2652
      %v2692 = vpack.c.b16 %v2655, %v2654
      %v2693 = vpack.c.b16 %v2657, %v2656
      %v2694 = vpack.c.b16 %v2659, %v2658
      %v2695 = vpack.c.b16 %v2661, %v2660
      %v2696 = vpack.c.b16 %v2663, %v2662
      %v2697 = vpack.c.b16 %v2665, %v2664
      %v2698 = vpack.c.b16 %v2667, %v2666
      %v2699 = vpack.c.b16 %v2669, %v2668
      %v2700 = vpack.c.b16 %v2671, %v2670
      %v2701 = vpack.c.b16 %v2673, %v2672
      %v2731 = vsel %vm1060, %v2493, 0
      %2733 = vmatprep.subr.bf16.mxu0 0
      %2734 = vmatpush1.bf16.msra.mxu0 %v2681
      %2735 = vmatprep.subr.bf16.mxu0 0
      %2736 = vmatpush1.bf16.msra.mxu0 %v2680
      %2737 = vmatprep.subr.bf16.mxu0 0
      %2738 = vmatpush1.bf16.msra.mxu0 %v2679
      %2739 = vmatprep.subr.bf16.mxu0 0
      %2740 = vmatpush1.bf16.msra.mxu0 %v2678
      %2741 = vmatprep.subr.bf16.mxu0 0
      %2742 = vmatpush1.bf16.msra.mxu0 %v2677
      %2743 = vmatprep.subr.bf16.mxu0 0
      %2744 = vmatpush1.bf16.msra.mxu0 %v2676
      %2745 = vmatprep.subr.bf16.mxu0 0
      %2746 = vmatpush1.bf16.msra.mxu0 %v2675
      %2747 = vmatprep.subr.bf16.mxu0 0
      %2748 = vmatpush1.bf16.msra.mxu0 %v2674
      %2749 = vmatprep.subr.bf16.mxu0 0
      %2750 = vmatpush2.bf16.msra.mxu0 %v2689
      %2751 = vmatprep.subr.bf16.mxu0 0
      %2752 = vmatpush2.bf16.msra.mxu0 %v2688
      %2753 = vmatprep.subr.bf16.mxu0 0
      %2754 = vmatpush2.bf16.msra.mxu0 %v2687
      %2755 = vmatprep.subr.bf16.mxu0 0
      %2756 = vmatpush2.bf16.msra.mxu0 %v2686
      %2757 = vmatprep.subr.bf16.mxu0 0
      %2758 = vmatpush2.bf16.msra.mxu0 %v2685
      %2759 = vmatprep.subr.bf16.mxu0 0
      %2760 = vmatpush2.bf16.msra.mxu0 %v2684
      %2761 = vmatprep.subr.bf16.mxu0 0
      %2762 = vmatpush2.bf16.msra.mxu0 %v2683
      %2763 = vmatprep.subr.bf16.mxu0 0
      %2764 = vmatpush2.bf16.msra.mxu0 %v2682
      %2765 = vmatprep.mubr.bf16.mxu0 %v1119
      %2766 = vmatmul.mubr.bf16.gmra.mxu0 %v1068
      %v2767 = vpop.f32.mrf.mxu0
      %v2768 = vadd.f32 0.0, %v2767
      %v2769 = vpop.f32.mrf.mxu0
      %v2770 = vpop.f32.mrf.mxu0
      %v2771 = vadd.f32 0.0, %v2770
      %v2772 = vpop.f32.mrf.mxu0
      %2773 = vmatprep.mubr.bf16.mxu0 %v1123
      %2774 = vmatmul.mubr.bf16.gmra.mxu0 %v1071
      %v2775 = vpop.f32.mrf.mxu0
      %v2776 = vadd.f32 0.0, %v2775
      %v2777 = vpop.f32.mrf.mxu0
      %v2778 = vpop.f32.mrf.mxu0
      %v2779 = vadd.f32 0.0, %v2778
      %v2780 = vpop.f32.mrf.mxu0
      %2781 = vmatprep.mubr.bf16.mxu0 %v1127
      %2782 = vmatmul.mubr.bf16.gmra.mxu0 %v1074
      %v2783 = vpop.f32.mrf.mxu0
      %v2784 = vadd.f32 0.0, %v2783
      %v2785 = vpop.f32.mrf.mxu0
      %v2786 = vpop.f32.mrf.mxu0
      %v2787 = vadd.f32 0.0, %v2786
      %v2788 = vpop.f32.mrf.mxu0
      %2789 = vmatprep.mubr.bf16.mxu0 %v1131
      %2790 = vmatmul.mubr.bf16.gmra.mxu0 %v1077
      %v2791 = vpop.f32.mrf.mxu0
      %v2792 = vadd.f32 0.0, %v2791
      %v2793 = vpop.f32.mrf.mxu0
      %v2794 = vpop.f32.mrf.mxu0
      %v2795 = vadd.f32 0.0, %v2794
      %v2796 = vpop.f32.mrf.mxu0
      %2797 = vmatprep.mubr.bf16.mxu0 %v1135
      %2798 = vmatmul.mubr.bf16.gmra.mxu0 %v1080
      %v2799 = vpop.f32.mrf.mxu0
      %v2800 = vadd.f32 0.0, %v2799
      %v2801 = vpop.f32.mrf.mxu0
      %v2802 = vpop.f32.mrf.mxu0
      %v2803 = vadd.f32 0.0, %v2802
      %v2804 = vpop.f32.mrf.mxu0
      %2805 = vmatprep.mubr.bf16.mxu0 %v1139
      %2806 = vmatmul.mubr.bf16.gmra.mxu0 %v1083
      %v2807 = vpop.f32.mrf.mxu0
      %v2808 = vadd.f32 0.0, %v2807
      %v2809 = vpop.f32.mrf.mxu0
      %v2810 = vpop.f32.mrf.mxu0
      %v2811 = vadd.f32 0.0, %v2810
      %v2812 = vpop.f32.mrf.mxu0
      %2813 = vmatprep.mubr.bf16.mxu0 %v1143
      %2814 = vmatmul.mubr.bf16.gmra.mxu0 %v1086
      %v2815 = vpop.f32.mrf.mxu0
      %v2816 = vadd.f32 0.0, %v2815
      %v2817 = vpop.f32.mrf.mxu0
      %v2818 = vpop.f32.mrf.mxu0
      %v2819 = vadd.f32 0.0, %v2818
      %v2820 = vpop.f32.mrf.mxu0
      %2821 = vmatprep.mubr.bf16.mxu0 %v1147
      %2822 = vmatmul.mubr.bf16.gmra.mxu0 %v1089
      %v2823 = vpop.f32.mrf.mxu0
      %v2824 = vadd.f32 0.0, %v2823
      %v2825 = vpop.f32.mrf.mxu0
      %v2826 = vpop.f32.mrf.mxu0
      %v2827 = vadd.f32 0.0, %v2826
      %v2828 = vpop.f32.mrf.mxu0
      %2829 = vmatprep.mubr.bf16.mxu0 %v1151
      %2830 = vmatmul.mubr.bf16.gmra.mxu0 %v1092
      %v2831 = vpop.f32.mrf.mxu0
      %v2832 = vadd.f32 0.0, %v2831
      %v2833 = vpop.f32.mrf.mxu0
      %v2834 = vpop.f32.mrf.mxu0
      %v2835 = vadd.f32 0.0, %v2834
      %v2836 = vpop.f32.mrf.mxu0
      %2837 = vmatprep.mubr.bf16.mxu0 %v1155
      %2838 = vmatmul.mubr.bf16.gmra.mxu0 %v1095
      %v2839 = vpop.f32.mrf.mxu0
      %v2840 = vadd.f32 0.0, %v2839
      %v2841 = vpop.f32.mrf.mxu0
      %v2842 = vpop.f32.mrf.mxu0
      %v2843 = vadd.f32 0.0, %v2842
      %v2844 = vpop.f32.mrf.mxu0
      %2845 = vmatprep.mubr.bf16.mxu0 %v1159
      %2846 = vmatmul.mubr.bf16.gmra.mxu0 %v1098
      %v2847 = vpop.f32.mrf.mxu0
      %v2848 = vadd.f32 0.0, %v2847
      %v2849 = vpop.f32.mrf.mxu0
      %v2850 = vpop.f32.mrf.mxu0
      %v2851 = vadd.f32 0.0, %v2850
      %v2852 = vpop.f32.mrf.mxu0
      %2853 = vmatprep.mubr.bf16.mxu0 %v1163
      %2854 = vmatmul.mubr.bf16.gmra.mxu0 %v1101
      %v2855 = vpop.f32.mrf.mxu0
      %v2856 = vadd.f32 0.0, %v2855
      %v2857 = vpop.f32.mrf.mxu0
      %v2858 = vpop.f32.mrf.mxu0
      %v2859 = vadd.f32 0.0, %v2858
      %v2860 = vpop.f32.mrf.mxu0
      %2861 = vmatprep.mubr.bf16.mxu0 %v1167
      %2862 = vmatmul.mubr.bf16.gmra.mxu0 %v1104
      %v2863 = vpop.f32.mrf.mxu0
      %v2864 = vadd.f32 0.0, %v2863
      %v2865 = vpop.f32.mrf.mxu0
      %v2866 = vpop.f32.mrf.mxu0
      %v2867 = vadd.f32 0.0, %v2866
      %v2868 = vpop.f32.mrf.mxu0
      %2869 = vmatprep.mubr.bf16.mxu0 %v1171
      %2870 = vmatmul.mubr.bf16.gmra.mxu0 %v1107
      %v2871 = vpop.f32.mrf.mxu0
      %v2872 = vadd.f32 0.0, %v2871
      %v2873 = vpop.f32.mrf.mxu0
      %v2874 = vpop.f32.mrf.mxu0
      %v2875 = vadd.f32 0.0, %v2874
      %v2876 = vpop.f32.mrf.mxu0
      %2877 = vmatprep.mubr.bf16.mxu0 %v1349
      %2878 = vmatmul.mubr.bf16.gmra.mxu0 %v1345
      %v2879 = vpop.f32.mrf.mxu0
      %v2880 = vadd.f32 0.0, %v2879
      %v2881 = vpop.f32.mrf.mxu0
      %v2882 = vpop.f32.mrf.mxu0
      %v2883 = vadd.f32 0.0, %v2882
      %v2884 = vpop.f32.mrf.mxu0
      %2885 = vmatprep.mubr.bf16.mxu0 %v2499
      %2886 = vmatmul.mubr.bf16.gmra.mxu0 %v2495
      %v2887 = vpop.f32.mrf.mxu0
      %v2888 = vadd.f32 0.0, %v2887
      %v2889 = vpop.f32.mrf.mxu0
      %v2890 = vpop.f32.mrf.mxu0
      %v2891 = vadd.f32 0.0, %v2890
      %v2892 = vpop.f32.mrf.mxu0
      %2893 = vdwg.mxu0
      %2894 = vmatprep.subr.bf16.mxu0 0
      %2895 = vmatpush1.bf16.msra.mxu0 %v2697
      %2896 = vmatprep.subr.bf16.mxu0 0
      %2897 = vmatpush1.bf16.msra.mxu0 %v2696
      %2898 = vmatprep.subr.bf16.mxu0 0
      %2899 = vmatpush1.bf16.msra.mxu0 %v2695
      %2900 = vmatprep.subr.bf16.mxu0 0
      %2901 = vmatpush1.bf16.msra.mxu0 %v2694
      %2902 = vmatprep.subr.bf16.mxu0 0
      %2903 = vmatpush1.bf16.msra.mxu0 %v2693
      %2904 = vmatprep.subr.bf16.mxu0 0
      %2905 = vmatpush1.bf16.msra.mxu0 %v2692
      %2906 = vmatprep.subr.bf16.mxu0 0
      %2907 = vmatpush1.bf16.msra.mxu0 %v2691
      %2908 = vmatprep.subr.bf16.mxu0 0
      %2909 = vmatpush1.bf16.msra.mxu0 %v2690
      %2910 = vmatprep.subr.bf16.mxu0 0
      %2911 = vmatpush2.bf16.msra.mxu0 0
      %2912 = vmatprep.subr.bf16.mxu0 0
      %2913 = vmatpush2.bf16.msra.mxu0 0
      %2914 = vmatprep.subr.bf16.mxu0 0
      %2915 = vmatpush2.bf16.msra.mxu0 0
      %2916 = vmatprep.subr.bf16.mxu0 0
      %2917 = vmatpush2.bf16.msra.mxu0 0
      %2918 = vmatprep.subr.bf16.mxu0 0
      %2919 = vmatpush2.bf16.msra.mxu0 %v2701
      %2920 = vmatprep.subr.bf16.mxu0 0
      %2921 = vmatpush2.bf16.msra.mxu0 %v2700
      %2922 = vmatprep.subr.bf16.mxu0 0
      %2923 = vmatpush2.bf16.msra.mxu0 %v2699
      %2924 = vmatprep.subr.bf16.mxu0 0
      %2925 = vmatpush2.bf16.msra.mxu0 %v2698
      %2926 = vmatprep.mubr.bf16.mxu0 %v1584
      %2927 = vmatmul.mubr.bf16.gmra.mxu0 %v1183
      %v2928 = vpop.f32.mrf.mxu0
      %v2929 = vadd.f32 %v2768, %v2928
      %v2930 = vpop.f32.mrf.mxu0
      %v2931 = vpop.f32.mrf.mxu0
      %v2932 = vadd.f32 %v2771, %v2931
      %v2933 = vpop.f32.mrf.mxu0
      %2934 = vmatprep.mubr.bf16.mxu0 %v1587
      %2935 = vmatmul.mubr.bf16.gmra.mxu0 %v1187
      %v2936 = vpop.f32.mrf.mxu0
      %v2937 = vadd.f32 %v2776, %v2936
      %v2938 = vpop.f32.mrf.mxu0
      %v2939 = vpop.f32.mrf.mxu0
      %v2940 = vadd.f32 %v2779, %v2939
      %v2941 = vpop.f32.mrf.mxu0
      %2942 = vmatprep.mubr.bf16.mxu0 %v1590
      %2943 = vmatmul.mubr.bf16.gmra.mxu0 %v1191
      %v2944 = vpop.f32.mrf.mxu0
      %v2945 = vadd.f32 %v2784, %v2944
      %v2946 = vpop.f32.mrf.mxu0
      %v2947 = vpop.f32.mrf.mxu0
      %v2948 = vadd.f32 %v2787, %v2947
      %v2949 = vpop.f32.mrf.mxu0
      %2950 = vmatprep.mubr.bf16.mxu0 %v1593
      %2951 = vmatmul.mubr.bf16.gmra.mxu0 %v1195
      %v2952 = vpop.f32.mrf.mxu0
      %v2953 = vadd.f32 %v2792, %v2952
      %v2954 = vpop.f32.mrf.mxu0
      %v2955 = vpop.f32.mrf.mxu0
      %v2956 = vadd.f32 %v2795, %v2955
      %v2957 = vpop.f32.mrf.mxu0
      %2958 = vmatprep.mubr.bf16.mxu0 %v1596
      %2959 = vmatmul.mubr.bf16.gmra.mxu0 %v1199
      %v2960 = vpop.f32.mrf.mxu0
      %v2961 = vadd.f32 %v2800, %v2960
      %v2962 = vpop.f32.mrf.mxu0
      %v2963 = vpop.f32.mrf.mxu0
      %v2964 = vadd.f32 %v2803, %v2963
      %v2965 = vpop.f32.mrf.mxu0
      %2966 = vmatprep.mubr.bf16.mxu0 %v1599
      %2967 = vmatmul.mubr.bf16.gmra.mxu0 %v1203
      %v2968 = vpop.f32.mrf.mxu0
      %v2969 = vadd.f32 %v2808, %v2968
      %v2970 = vpop.f32.mrf.mxu0
      %v2971 = vpop.f32.mrf.mxu0
      %v2972 = vadd.f32 %v2811, %v2971
      %v2973 = vpop.f32.mrf.mxu0
      %2974 = vmatprep.mubr.bf16.mxu0 %v1602
      %2975 = vmatmul.mubr.bf16.gmra.mxu0 %v1207
      %v2976 = vpop.f32.mrf.mxu0
      %v2977 = vadd.f32 %v2816, %v2976
      %v2978 = vpop.f32.mrf.mxu0
      %v2979 = vpop.f32.mrf.mxu0
      %v2980 = vadd.f32 %v2819, %v2979
      %v2981 = vpop.f32.mrf.mxu0
      %2982 = vmatprep.mubr.bf16.mxu0 %v1605
      %2983 = vmatmul.mubr.bf16.gmra.mxu0 %v1211
      %v2984 = vpop.f32.mrf.mxu0
      %v2985 = vadd.f32 %v2824, %v2984
      %v2986 = vpop.f32.mrf.mxu0
      %v2987 = vpop.f32.mrf.mxu0
      %v2988 = vadd.f32 %v2827, %v2987
      %v2989 = vpop.f32.mrf.mxu0
      %2990 = vmatprep.mubr.bf16.mxu0 %v1608
      %2991 = vmatmul.mubr.bf16.gmra.mxu0 %v1215
      %v2992 = vpop.f32.mrf.mxu0
      %v2993 = vadd.f32 %v2832, %v2992
      %v2994 = vpop.f32.mrf.mxu0
      %v2995 = vpop.f32.mrf.mxu0
      %v2996 = vadd.f32 %v2835, %v2995
      %v2997 = vpop.f32.mrf.mxu0
      %2998 = vmatprep.mubr.bf16.mxu0 %v1611
      %2999 = vmatmul.mubr.bf16.gmra.mxu0 %v1219
      %v3000 = vpop.f32.mrf.mxu0
      %v3001 = vadd.f32 %v2840, %v3000
      %v3002 = vpop.f32.mrf.mxu0
      %v3003 = vpop.f32.mrf.mxu0
      %v3004 = vadd.f32 %v2843, %v3003
      %v3005 = vpop.f32.mrf.mxu0
      %3006 = vmatprep.mubr.bf16.mxu0 %v1614
      %3007 = vmatmul.mubr.bf16.gmra.mxu0 %v1223
      %v3008 = vpop.f32.mrf.mxu0
      %v3009 = vadd.f32 %v2848, %v3008
      %v3010 = vpop.f32.mrf.mxu0
      %v3011 = vpop.f32.mrf.mxu0
      %v3012 = vadd.f32 %v2851, %v3011
      %v3013 = vpop.f32.mrf.mxu0
      %3014 = vmatprep.mubr.bf16.mxu0 %v1617
      %3015 = vmatmul.mubr.bf16.gmra.mxu0 %v1227
      %v3016 = vpop.f32.mrf.mxu0
      %v3017 = vadd.f32 %v2856, %v3016
      %v3018 = vpop.f32.mrf.mxu0
      %v3019 = vpop.f32.mrf.mxu0
      %v3020 = vadd.f32 %v2859, %v3019
      %v3021 = vpop.f32.mrf.mxu0
      %3022 = vmatprep.mubr.bf16.mxu0 %v1620
      %3023 = vmatmul.mubr.bf16.gmra.mxu0 %v1231
      %v3024 = vpop.f32.mrf.mxu0
      %v3025 = vadd.f32 %v2864, %v3024
      %v3026 = vpop.f32.mrf.mxu0
      %v3027 = vpop.f32.mrf.mxu0
      %v3028 = vadd.f32 %v2867, %v3027
      %v3029 = vpop.f32.mrf.mxu0
      %3030 = vmatprep.mubr.bf16.mxu0 %v1623
      %3031 = vmatmul.mubr.bf16.gmra.mxu0 %v1235
      %v3032 = vpop.f32.mrf.mxu0
      %v3033 = vadd.f32 %v2872, %v3032
      %v3034 = vpop.f32.mrf.mxu0
      %v3035 = vpop.f32.mrf.mxu0
      %v3036 = vadd.f32 %v2875, %v3035
      %v3037 = vpop.f32.mrf.mxu0
      %3038 = vmatprep.mubr.bf16.mxu0 %v1626
      %3039 = vmatmul.mubr.bf16.gmra.mxu0 %v1353
      %v3040 = vpop.f32.mrf.mxu0
      %v3041 = vadd.f32 %v2880, %v3040
      %v3042 = vpop.f32.mrf.mxu0
      %v3043 = vpop.f32.mrf.mxu0
      %v3044 = vadd.f32 %v2883, %v3043
      %v3045 = vpop.f32.mrf.mxu0
      %3046 = vmatprep.mubr.bf16.mxu0 %v2731
      %3047 = vmatmul.mubr.bf16.gmra.mxu0 %v2503
      %v3048 = vpop.f32.mrf.mxu0
      %v3049 = vadd.f32 %v2888, %v3048
      %v3050 = vpop.f32.mrf.mxu0
      %v3051 = vpop.f32.mrf.mxu0
      %v3052 = vadd.f32 %v2891, %v3051
      %v3053 = vpop.f32.mrf.mxu0
      %3054 = vdwg.mxu0
      %v3055 = vadd.f32 %v2317, %v2929
      %v3056 = vadd.f32 %v2320, %v2932
      %v3057 = vadd.f32 %v2325, %v2937
      %v3058 = vadd.f32 %v2328, %v2940
      %v3059 = vadd.f32 %v2333, %v2945
      %v3060 = vadd.f32 %v2336, %v2948
      %v3061 = vadd.f32 %v2341, %v2953
      %v3062 = vadd.f32 %v2344, %v2956
      %v3063 = vadd.f32 %v2349, %v2961
      %v3064 = vadd.f32 %v2352, %v2964
      %v3065 = vadd.f32 %v2357, %v2969
      %v3066 = vadd.f32 %v2360, %v2972
      %v3067 = vadd.f32 %v2365, %v2977
      %v3068 = vadd.f32 %v2368, %v2980
      %v3069 = vadd.f32 %v2373, %v2985
      %v3070 = vadd.f32 %v2376, %v2988
      %v3071 = vadd.f32 %v2381, %v2993
      %v3072 = vadd.f32 %v2384, %v2996
      %v3073 = vadd.f32 %v2389, %v3001
      %v3074 = vadd.f32 %v2392, %v3004
      %v3075 = vadd.f32 %v2397, %v3009
      %v3076 = vadd.f32 %v2400, %v3012
      %v3077 = vadd.f32 %v2405, %v3017
      %v3078 = vadd.f32 %v2408, %v3020
      %v3079 = vadd.f32 %v2413, %v3025
      %v3080 = vadd.f32 %v2416, %v3028
      %v3081 = vadd.f32 %v2421, %v3033
      %v3082 = vadd.f32 %v2424, %v3036
      %v3083 = vadd.f32 %v2429, %v3041
      %v3084 = vadd.f32 %v2432, %v3044
      %v3085 = vadd.f32 %v2437, %v3049
      %v3086 = vadd.f32 %v2440, %v3052
      %v3089 = vunpack.c.l.b16 %v226
      %v3090 = vunpack.c.l.b16 %v227
      %v3091 = vpack.c.b16 %v3090, %v3089
      %v3093 = vunpack.c.l.b16 %v228
      %v3094 = vpack.c.b16 %v3093, %v3093
      %v3096 = vshrl.u32 %v3091, 16
      %v3098 = vshll.u32 %v3091, 16
      %v3100 = vrot.slane %v3098, 1
      %v3101 = vor.u32 %v3096, %v3100
      %v3103 = vshll.u32 %v3094, 16
      %v3105 = vrot.slane %v3103, 1
      %v3106 = vsel %vm366, %v3101, %v3105
      %3107 = vrot.lane.b32.xlu0 %v3106, 64
      %v3108 = vpop.permute.xlu0 %3107
      %v3109 = vrot.slane %v3091, 1
      %v3110 = vrot.slane %v3094, 1
      %v3111 = vsel %vm591, %v3109, %v3110
      %v3112 = vrot.slane %v3096, 1
      %v3113 = vrot.slane %v3098, 2
      %v3114 = vor.u32 %v3112, %v3113
      %v3115 = vshrl.u32 %v3094, 16
      %v3117 = vrot.slane %v3115, 1
      %v3118 = vrot.slane %v3103, 2
      %v3119 = vor.u32 %v3117, %v3118
      %v3120 = vsel %vm640, %v3114, %v3119
      %3121 = vrot.lane.b32.xlu0 %v3120, 64
      %v3122 = vpop.permute.xlu0 %3121
      %v3123 = vrot.slane %v3091, 2
      %v3124 = vrot.slane %v3094, 2
      %v3125 = vsel %vm817, %v3123, %v3124
      %v3126 = vrot.slane %v3096, 2
      %v3127 = vrot.slane %v3098, 3
      %v3128 = vor.u32 %v3126, %v3127
      %v3129 = vrot.slane %v3115, 2
      %v3130 = vrot.slane %v3103, 3
      %v3131 = vor.u32 %v3129, %v3130
      %v3132 = vsel %vm866, %v3128, %v3131
      %3133 = vrot.lane.b32.xlu0 %v3132, 64
      %v3134 = vpop.permute.xlu0 %3133
      %v3135 = vrot.slane %v3091, 3
      %v3136 = vrot.slane %v3094, 3
      %v3137 = vsel %vm1011, %v3135, %v3136
      %v3139 = vsel %vm1060, %v3091, %v3108
      %v3143 = vsel %vm1060, %v3111, %v3122
      %v3147 = vsel %vm1060, %v3125, %v3134
      %s3149 = scalar_lea.vmem %s1, 672
      %v3150 = vld [vmem:[%s3149] sm:$0xf]
      %v3151 = vld [vmem:[%s3149 + $0x4] sm:$0xf]
      %v3152 = vld [vmem:[%s3149 + $0x8] sm:$0xf]
      %v3153 = vld [vmem:[%s3149 + $0xc] sm:$0xf]
      %v3154 = vld [vmem:[%s3149 + $0x10] sm:$0xf]
      %v3155 = vld [vmem:[%s3149 + $0x14] sm:$0xf]
      %v3156 = vld [vmem:[%s3149 + $0x18] sm:$0xf]
      %v3157 = vld [vmem:[%s3149 + $0x1c] sm:$0xf]
      %v3158 = vld [vmem:[%s3149 + $0x20] sm:$0xf]
      %v3159 = vld [vmem:[%s3149 + $0x24] sm:$0xf]
      %v3160 = vld [vmem:[%s3149 + $0x28] sm:$0xf]
      %v3161 = vld [vmem:[%s3149 + $0x2c] sm:$0xf]
      %v3162 = vld [vmem:[%s3149 + $0x30] sm:$0xf]
      %v3163 = vld [vmem:[%s3149 + $0x34] sm:$0xf]
      %v3164 = vld [vmem:[%s3149 + $0x38] sm:$0xf]
      %v3165 = vld [vmem:[%s3149 + $0x3c] sm:$0xf]
      %v3166 = vld [vmem:[%s3149 + $0x40] sm:$0xf]
      %v3167 = vld [vmem:[%s3149 + $0x44] sm:$0xf]
      %v3168 = vld [vmem:[%s3149 + $0x48] sm:$0xf]
      %v3169 = vld [vmem:[%s3149 + $0x4c] sm:$0xf]
      %v3170 = vld [vmem:[%s3149 + $0x50] sm:$0xf]
      %v3171 = vld [vmem:[%s3149 + $0x54] sm:$0xf]
      %v3172 = vld [vmem:[%s3149 + $0x58] sm:$0xf]
      %v3173 = vld [vmem:[%s3149 + $0x5c] sm:$0xf]
      %v3174 = vld [vmem:[%s3149 + $0x60] sm:$0xf]
      %v3175 = vld [vmem:[%s3149 + $0x64] sm:$0xf]
      %v3176 = vld [vmem:[%s3149 + $0x68] sm:$0xf]
      %v3177 = vld [vmem:[%s3149 + $0x6c] sm:$0xf]
      %v3178 = vld [vmem:[%s3149 + $0x70] sm:$0xf]
      %v3179 = vld [vmem:[%s3149 + $0x74] sm:$0xf]
      %v3180 = vld [vmem:[%s3149 + $0x78] sm:$0xf]
      %v3181 = vld [vmem:[%s3149 + $0x7c] sm:$0xf]
      %v3182 = vld [vmem:[%s3149 + $0x80] sm:$0xf]
      %v3183 = vld [vmem:[%s3149 + $0x84] sm:$0xf]
      %v3184 = vld [vmem:[%s3149 + $0x88] sm:$0xf]
      %v3185 = vld [vmem:[%s3149 + $0x8c] sm:$0xf]
      %v3186 = vld [vmem:[%s3149 + $0x90] sm:$0xf]
      %v3187 = vld [vmem:[%s3149 + $0x94] sm:$0xf]
      %v3188 = vld [vmem:[%s3149 + $0x98] sm:$0xf]
      %v3189 = vld [vmem:[%s3149 + $0x9c] sm:$0xf]
      %v3190 = vld [vmem:[%s3149 + $0xa0] sm:$0xf]
      %v3191 = vld [vmem:[%s3149 + $0xa4] sm:$0xf]
      %v3192 = vld [vmem:[%s3149 + $0xa8] sm:$0xf]
      %v3193 = vld [vmem:[%s3149 + $0xac] sm:$0xf]
      %v3194 = vld [vmem:[%s3149 + $0xb0] sm:$0xf]
      %v3195 = vld [vmem:[%s3149 + $0xb4] sm:$0xf]
      %v3196 = vld [vmem:[%s3149 + $0xb8] sm:$0xf]
      %v3197 = vld [vmem:[%s3149 + $0xbc] sm:$0xf]
      %v3198 = vld [vmem:[%s3149 + $0xc0] sm:$0xf]
      %v3199 = vld [vmem:[%s3149 + $0xc4] sm:$0xf]
      %v3200 = vld [vmem:[%s3149 + $0xc8] sm:$0xf]
      %v3201 = vld [vmem:[%s3149 + $0xcc] sm:$0xf]
      %v3202 = vld [vmem:[%s3149 + $0xd0] sm:$0xf]
      %v3203 = vld [vmem:[%s3149 + $0xd4] sm:$0xf]
      %v3204 = vld [vmem:[%s3149 + $0xd8] sm:$0xf]
      %v3205 = vld [vmem:[%s3149 + $0xdc] sm:$0xf]
      %v3262 = vunpack.c.l.b16 %v3150
      %v3263 = vunpack.c.l.b16 %v3151
      %v3264 = vunpack.c.l.b16 %v3152
      %v3265 = vunpack.c.l.b16 %v3153
      %v3266 = vunpack.c.l.b16 %v3154
      %v3267 = vunpack.c.l.b16 %v3155
      %v3268 = vunpack.c.l.b16 %v3156
      %v3269 = vunpack.c.l.b16 %v3157
      %v3270 = vunpack.c.l.b16 %v3158
      %v3271 = vunpack.c.l.b16 %v3159
      %v3272 = vunpack.c.l.b16 %v3160
      %v3273 = vunpack.c.l.b16 %v3161
      %v3274 = vunpack.c.l.b16 %v3162
      %v3275 = vunpack.c.l.b16 %v3163
      %v3276 = vunpack.c.l.b16 %v3164
      %v3277 = vunpack.c.l.b16 %v3165
      %v3278 = vunpack.c.l.b16 %v3166
      %v3279 = vunpack.c.l.b16 %v3167
      %v3280 = vunpack.c.l.b16 %v3168
      %v3281 = vunpack.c.l.b16 %v3169
      %v3282 = vunpack.c.l.b16 %v3170
      %v3283 = vunpack.c.l.b16 %v3171
      %v3284 = vunpack.c.l.b16 %v3172
      %v3285 = vunpack.c.l.b16 %v3173
      %v3286 = vunpack.c.l.b16 %v3174
      %v3287 = vunpack.c.l.b16 %v3175
      %v3288 = vunpack.c.l.b16 %v3176
      %v3289 = vunpack.c.l.b16 %v3177
      %v3290 = vunpack.c.l.b16 %v3178
      %v3291 = vunpack.c.l.b16 %v3179
      %v3292 = vunpack.c.l.b16 %v3180
      %v3293 = vunpack.c.l.b16 %v3181
      %v3294 = vunpack.c.l.b16 %v3182
      %v3295 = vunpack.c.l.b16 %v3183
      %v3296 = vunpack.c.l.b16 %v3184
      %v3297 = vunpack.c.l.b16 %v3185
      %v3298 = vunpack.c.l.b16 %v3186
      %v3299 = vunpack.c.l.b16 %v3187
      %v3300 = vunpack.c.l.b16 %v3188
      %v3301 = vunpack.c.l.b16 %v3189
      %v3302 = vunpack.c.l.b16 %v3190
      %v3303 = vunpack.c.l.b16 %v3191
      %v3304 = vunpack.c.l.b16 %v3192
      %v3305 = vunpack.c.l.b16 %v3193
      %v3306 = vunpack.c.l.b16 %v3194
      %v3307 = vunpack.c.l.b16 %v3195
      %v3308 = vunpack.c.l.b16 %v3196
      %v3309 = vunpack.c.l.b16 %v3197
      %v3310 = vunpack.c.l.b16 %v3198
      %v3311 = vunpack.c.l.b16 %v3199
      %v3312 = vunpack.c.l.b16 %v3200
      %v3313 = vunpack.c.l.b16 %v3201
      %v3314 = vunpack.c.l.b16 %v3202
      %v3315 = vunpack.c.l.b16 %v3203
      %v3316 = vunpack.c.l.b16 %v3204
      %v3317 = vunpack.c.l.b16 %v3205
      %v3318 = vpack.c.b16 %v3263, %v3262
      %v3319 = vpack.c.b16 %v3265, %v3264
      %v3320 = vpack.c.b16 %v3267, %v3266
      %v3321 = vpack.c.b16 %v3269, %v3268
      %v3322 = vpack.c.b16 %v3271, %v3270
      %v3323 = vpack.c.b16 %v3273, %v3272
      %v3324 = vpack.c.b16 %v3275, %v3274
      %v3325 = vpack.c.b16 %v3277, %v3276
      %v3326 = vpack.c.b16 %v3279, %v3278
      %v3327 = vpack.c.b16 %v3281, %v3280
      %v3328 = vpack.c.b16 %v3283, %v3282
      %v3329 = vpack.c.b16 %v3285, %v3284
      %v3330 = vpack.c.b16 %v3287, %v3286
      %v3331 = vpack.c.b16 %v3289, %v3288
      %v3332 = vpack.c.b16 %v3291, %v3290
      %v3333 = vpack.c.b16 %v3293, %v3292
      %v3334 = vpack.c.b16 %v3295, %v3294
      %v3335 = vpack.c.b16 %v3297, %v3296
      %v3336 = vpack.c.b16 %v3299, %v3298
      %v3337 = vpack.c.b16 %v3301, %v3300
      %v3338 = vpack.c.b16 %v3303, %v3302
      %v3339 = vpack.c.b16 %v3305, %v3304
      %v3340 = vpack.c.b16 %v3307, %v3306
      %v3341 = vpack.c.b16 %v3309, %v3308
      %v3342 = vpack.c.b16 %v3311, %v3310
      %v3343 = vpack.c.b16 %v3313, %v3312
      %v3344 = vpack.c.b16 %v3315, %v3314
      %v3345 = vpack.c.b16 %v3317, %v3316
      %v3375 = vsel %vm1060, %v3137, 0
      %3377 = vmatprep.subr.bf16.mxu0 0
      %3378 = vmatpush1.bf16.msra.mxu0 %v3325
      %3379 = vmatprep.subr.bf16.mxu0 0
      %3380 = vmatpush1.bf16.msra.mxu0 %v3324
      %3381 = vmatprep.subr.bf16.mxu0 0
      %3382 = vmatpush1.bf16.msra.mxu0 %v3323
      %3383 = vmatprep.subr.bf16.mxu0 0
      %3384 = vmatpush1.bf16.msra.mxu0 %v3322
      %3385 = vmatprep.subr.bf16.mxu0 0
      %3386 = vmatpush1.bf16.msra.mxu0 %v3321
      %3387 = vmatprep.subr.bf16.mxu0 0
      %3388 = vmatpush1.bf16.msra.mxu0 %v3320
      %3389 = vmatprep.subr.bf16.mxu0 0
      %3390 = vmatpush1.bf16.msra.mxu0 %v3319
      %3391 = vmatprep.subr.bf16.mxu0 0
      %3392 = vmatpush1.bf16.msra.mxu0 %v3318
      %3393 = vmatprep.subr.bf16.mxu0 0
      %3394 = vmatpush2.bf16.msra.mxu0 %v3333
      %3395 = vmatprep.subr.bf16.mxu0 0
      %3396 = vmatpush2.bf16.msra.mxu0 %v3332
      %3397 = vmatprep.subr.bf16.mxu0 0
      %3398 = vmatpush2.bf16.msra.mxu0 %v3331
      %3399 = vmatprep.subr.bf16.mxu0 0
      %3400 = vmatpush2.bf16.msra.mxu0 %v3330
      %3401 = vmatprep.subr.bf16.mxu0 0
      %3402 = vmatpush2.bf16.msra.mxu0 %v3329
      %3403 = vmatprep.subr.bf16.mxu0 0
      %3404 = vmatpush2.bf16.msra.mxu0 %v3328
      %3405 = vmatprep.subr.bf16.mxu0 0
      %3406 = vmatpush2.bf16.msra.mxu0 %v3327
      %3407 = vmatprep.subr.bf16.mxu0 0
      %3408 = vmatpush2.bf16.msra.mxu0 %v3326
      %3409 = vmatprep.mubr.bf16.mxu0 %v1123
      %3410 = vmatmul.mubr.bf16.gmra.mxu0 %v1071
      %v3411 = vpop.f32.mrf.mxu0
      %v3412 = vadd.f32 0.0, %v3411
      %v3413 = vpop.f32.mrf.mxu0
      %v3414 = vpop.f32.mrf.mxu0
      %v3415 = vadd.f32 0.0, %v3414
      %v3416 = vpop.f32.mrf.mxu0
      %3417 = vmatprep.mubr.bf16.mxu0 %v1127
      %3418 = vmatmul.mubr.bf16.gmra.mxu0 %v1074
      %v3419 = vpop.f32.mrf.mxu0
      %v3420 = vadd.f32 0.0, %v3419
      %v3421 = vpop.f32.mrf.mxu0
      %v3422 = vpop.f32.mrf.mxu0
      %v3423 = vadd.f32 0.0, %v3422
      %v3424 = vpop.f32.mrf.mxu0
      %3425 = vmatprep.mubr.bf16.mxu0 %v1131
      %3426 = vmatmul.mubr.bf16.gmra.mxu0 %v1077
      %v3427 = vpop.f32.mrf.mxu0
      %v3428 = vadd.f32 0.0, %v3427
      %v3429 = vpop.f32.mrf.mxu0
      %v3430 = vpop.f32.mrf.mxu0
      %v3431 = vadd.f32 0.0, %v3430
      %v3432 = vpop.f32.mrf.mxu0
      %3433 = vmatprep.mubr.bf16.mxu0 %v1135
      %3434 = vmatmul.mubr.bf16.gmra.mxu0 %v1080
      %v3435 = vpop.f32.mrf.mxu0
      %v3436 = vadd.f32 0.0, %v3435
      %v3437 = vpop.f32.mrf.mxu0
      %v3438 = vpop.f32.mrf.mxu0
      %v3439 = vadd.f32 0.0, %v3438
      %v3440 = vpop.f32.mrf.mxu0
      %3441 = vmatprep.mubr.bf16.mxu0 %v1139
      %3442 = vmatmul.mubr.bf16.gmra.mxu0 %v1083
      %v3443 = vpop.f32.mrf.mxu0
      %v3444 = vadd.f32 0.0, %v3443
      %v3445 = vpop.f32.mrf.mxu0
      %v3446 = vpop.f32.mrf.mxu0
      %v3447 = vadd.f32 0.0, %v3446
      %v3448 = vpop.f32.mrf.mxu0
      %3449 = vmatprep.mubr.bf16.mxu0 %v1143
      %3450 = vmatmul.mubr.bf16.gmra.mxu0 %v1086
      %v3451 = vpop.f32.mrf.mxu0
      %v3452 = vadd.f32 0.0, %v3451
      %v3453 = vpop.f32.mrf.mxu0
      %v3454 = vpop.f32.mrf.mxu0
      %v3455 = vadd.f32 0.0, %v3454
      %v3456 = vpop.f32.mrf.mxu0
      %3457 = vmatprep.mubr.bf16.mxu0 %v1147
      %3458 = vmatmul.mubr.bf16.gmra.mxu0 %v1089
      %v3459 = vpop.f32.mrf.mxu0
      %v3460 = vadd.f32 0.0, %v3459
      %v3461 = vpop.f32.mrf.mxu0
      %v3462 = vpop.f32.mrf.mxu0
      %v3463 = vadd.f32 0.0, %v3462
      %v3464 = vpop.f32.mrf.mxu0
      %3465 = vmatprep.mubr.bf16.mxu0 %v1151
      %3466 = vmatmul.mubr.bf16.gmra.mxu0 %v1092
      %v3467 = vpop.f32.mrf.mxu0
      %v3468 = vadd.f32 0.0, %v3467
      %v3469 = vpop.f32.mrf.mxu0
      %v3470 = vpop.f32.mrf.mxu0
      %v3471 = vadd.f32 0.0, %v3470
      %v3472 = vpop.f32.mrf.mxu0
      %3473 = vmatprep.mubr.bf16.mxu0 %v1155
      %3474 = vmatmul.mubr.bf16.gmra.mxu0 %v1095
      %v3475 = vpop.f32.mrf.mxu0
      %v3476 = vadd.f32 0.0, %v3475
      %v3477 = vpop.f32.mrf.mxu0
      %v3478 = vpop.f32.mrf.mxu0
      %v3479 = vadd.f32 0.0, %v3478
      %v3480 = vpop.f32.mrf.mxu0
      %3481 = vmatprep.mubr.bf16.mxu0 %v1159
      %3482 = vmatmul.mubr.bf16.gmra.mxu0 %v1098
      %v3483 = vpop.f32.mrf.mxu0
      %v3484 = vadd.f32 0.0, %v3483
      %v3485 = vpop.f32.mrf.mxu0
      %v3486 = vpop.f32.mrf.mxu0
      %v3487 = vadd.f32 0.0, %v3486
      %v3488 = vpop.f32.mrf.mxu0
      %3489 = vmatprep.mubr.bf16.mxu0 %v1163
      %3490 = vmatmul.mubr.bf16.gmra.mxu0 %v1101
      %v3491 = vpop.f32.mrf.mxu0
      %v3492 = vadd.f32 0.0, %v3491
      %v3493 = vpop.f32.mrf.mxu0
      %v3494 = vpop.f32.mrf.mxu0
      %v3495 = vadd.f32 0.0, %v3494
      %v3496 = vpop.f32.mrf.mxu0
      %3497 = vmatprep.mubr.bf16.mxu0 %v1167
      %3498 = vmatmul.mubr.bf16.gmra.mxu0 %v1104
      %v3499 = vpop.f32.mrf.mxu0
      %v3500 = vadd.f32 0.0, %v3499
      %v3501 = vpop.f32.mrf.mxu0
      %v3502 = vpop.f32.mrf.mxu0
      %v3503 = vadd.f32 0.0, %v3502
      %v3504 = vpop.f32.mrf.mxu0
      %3505 = vmatprep.mubr.bf16.mxu0 %v1171
      %3506 = vmatmul.mubr.bf16.gmra.mxu0 %v1107
      %v3507 = vpop.f32.mrf.mxu0
      %v3508 = vadd.f32 0.0, %v3507
      %v3509 = vpop.f32.mrf.mxu0
      %v3510 = vpop.f32.mrf.mxu0
      %v3511 = vadd.f32 0.0, %v3510
      %v3512 = vpop.f32.mrf.mxu0
      %3513 = vmatprep.mubr.bf16.mxu0 %v1349
      %3514 = vmatmul.mubr.bf16.gmra.mxu0 %v1345
      %v3515 = vpop.f32.mrf.mxu0
      %v3516 = vadd.f32 0.0, %v3515
      %v3517 = vpop.f32.mrf.mxu0
      %v3518 = vpop.f32.mrf.mxu0
      %v3519 = vadd.f32 0.0, %v3518
      %v3520 = vpop.f32.mrf.mxu0
      %3521 = vmatprep.mubr.bf16.mxu0 %v2499
      %3522 = vmatmul.mubr.bf16.gmra.mxu0 %v2495
      %v3523 = vpop.f32.mrf.mxu0
      %v3524 = vadd.f32 0.0, %v3523
      %v3525 = vpop.f32.mrf.mxu0
      %v3526 = vpop.f32.mrf.mxu0
      %v3527 = vadd.f32 0.0, %v3526
      %v3528 = vpop.f32.mrf.mxu0
      %3529 = vmatprep.mubr.bf16.mxu0 %v3143
      %3530 = vmatmul.mubr.bf16.gmra.mxu0 %v3139
      %v3531 = vpop.f32.mrf.mxu0
      %v3532 = vadd.f32 0.0, %v3531
      %v3533 = vpop.f32.mrf.mxu0
      %v3534 = vpop.f32.mrf.mxu0
      %v3535 = vadd.f32 0.0, %v3534
      %v3536 = vpop.f32.mrf.mxu0
      %3537 = vdwg.mxu0
      %3538 = vmatprep.subr.bf16.mxu0 0
      %3539 = vmatpush1.bf16.msra.mxu0 %v3341
      %3540 = vmatprep.subr.bf16.mxu0 0
      %3541 = vmatpush1.bf16.msra.mxu0 %v3340
      %3542 = vmatprep.subr.bf16.mxu0 0
      %3543 = vmatpush1.bf16.msra.mxu0 %v3339
      %3544 = vmatprep.subr.bf16.mxu0 0
      %3545 = vmatpush1.bf16.msra.mxu0 %v3338
      %3546 = vmatprep.subr.bf16.mxu0 0
      %3547 = vmatpush1.bf16.msra.mxu0 %v3337
      %3548 = vmatprep.subr.bf16.mxu0 0
      %3549 = vmatpush1.bf16.msra.mxu0 %v3336
      %3550 = vmatprep.subr.bf16.mxu0 0
      %3551 = vmatpush1.bf16.msra.mxu0 %v3335
      %3552 = vmatprep.subr.bf16.mxu0 0
      %3553 = vmatpush1.bf16.msra.mxu0 %v3334
      %3554 = vmatprep.subr.bf16.mxu0 0
      %3555 = vmatpush2.bf16.msra.mxu0 0
      %3556 = vmatprep.subr.bf16.mxu0 0
      %3557 = vmatpush2.bf16.msra.mxu0 0
      %3558 = vmatprep.subr.bf16.mxu0 0
      %3559 = vmatpush2.bf16.msra.mxu0 0
      %3560 = vmatprep.subr.bf16.mxu0 0
      %3561 = vmatpush2.bf16.msra.mxu0 0
      %3562 = vmatprep.subr.bf16.mxu0 0
      %3563 = vmatpush2.bf16.msra.mxu0 %v3345
      %3564 = vmatprep.subr.bf16.mxu0 0
      %3565 = vmatpush2.bf16.msra.mxu0 %v3344
      %3566 = vmatprep.subr.bf16.mxu0 0
      %3567 = vmatpush2.bf16.msra.mxu0 %v3343
      %3568 = vmatprep.subr.bf16.mxu0 0
      %3569 = vmatpush2.bf16.msra.mxu0 %v3342
      %3570 = vmatprep.mubr.bf16.mxu0 %v1587
      %3571 = vmatmul.mubr.bf16.gmra.mxu0 %v1187
      %v3572 = vpop.f32.mrf.mxu0
      %v3573 = vadd.f32 %v3412, %v3572
      %v3574 = vpop.f32.mrf.mxu0
      %v3575 = vpop.f32.mrf.mxu0
      %v3576 = vadd.f32 %v3415, %v3575
      %v3577 = vpop.f32.mrf.mxu0
      %3578 = vmatprep.mubr.bf16.mxu0 %v1590
      %3579 = vmatmul.mubr.bf16.gmra.mxu0 %v1191
      %v3580 = vpop.f32.mrf.mxu0
      %v3581 = vadd.f32 %v3420, %v3580
      %v3582 = vpop.f32.mrf.mxu0
      %v3583 = vpop.f32.mrf.mxu0
      %v3584 = vadd.f32 %v3423, %v3583
      %v3585 = vpop.f32.mrf.mxu0
      %3586 = vmatprep.mubr.bf16.mxu0 %v1593
      %3587 = vmatmul.mubr.bf16.gmra.mxu0 %v1195
      %v3588 = vpop.f32.mrf.mxu0
      %v3589 = vadd.f32 %v3428, %v3588
      %v3590 = vpop.f32.mrf.mxu0
      %v3591 = vpop.f32.mrf.mxu0
      %v3592 = vadd.f32 %v3431, %v3591
      %v3593 = vpop.f32.mrf.mxu0
      %3594 = vmatprep.mubr.bf16.mxu0 %v1596
      %3595 = vmatmul.mubr.bf16.gmra.mxu0 %v1199
      %v3596 = vpop.f32.mrf.mxu0
      %v3597 = vadd.f32 %v3436, %v3596
      %v3598 = vpop.f32.mrf.mxu0
      %v3599 = vpop.f32.mrf.mxu0
      %v3600 = vadd.f32 %v3439, %v3599
      %v3601 = vpop.f32.mrf.mxu0
      %3602 = vmatprep.mubr.bf16.mxu0 %v1599
      %3603 = vmatmul.mubr.bf16.gmra.mxu0 %v1203
      %v3604 = vpop.f32.mrf.mxu0
      %v3605 = vadd.f32 %v3444, %v3604
      %v3606 = vpop.f32.mrf.mxu0
      %v3607 = vpop.f32.mrf.mxu0
      %v3608 = vadd.f32 %v3447, %v3607
      %v3609 = vpop.f32.mrf.mxu0
      %3610 = vmatprep.mubr.bf16.mxu0 %v1602
      %3611 = vmatmul.mubr.bf16.gmra.mxu0 %v1207
      %v3612 = vpop.f32.mrf.mxu0
      %v3613 = vadd.f32 %v3452, %v3612
      %v3614 = vpop.f32.mrf.mxu0
      %v3615 = vpop.f32.mrf.mxu0
      %v3616 = vadd.f32 %v3455, %v3615
      %v3617 = vpop.f32.mrf.mxu0
      %3618 = vmatprep.mubr.bf16.mxu0 %v1605
      %3619 = vmatmul.mubr.bf16.gmra.mxu0 %v1211
      %v3620 = vpop.f32.mrf.mxu0
      %v3621 = vadd.f32 %v3460, %v3620
      %v3622 = vpop.f32.mrf.mxu0
      %v3623 = vpop.f32.mrf.mxu0
      %v3624 = vadd.f32 %v3463, %v3623
      %v3625 = vpop.f32.mrf.mxu0
      %3626 = vmatprep.mubr.bf16.mxu0 %v1608
      %3627 = vmatmul.mubr.bf16.gmra.mxu0 %v1215
      %v3628 = vpop.f32.mrf.mxu0
      %v3629 = vadd.f32 %v3468, %v3628
      %v3630 = vpop.f32.mrf.mxu0
      %v3631 = vpop.f32.mrf.mxu0
      %v3632 = vadd.f32 %v3471, %v3631
      %v3633 = vpop.f32.mrf.mxu0
      %3634 = vmatprep.mubr.bf16.mxu0 %v1611
      %3635 = vmatmul.mubr.bf16.gmra.mxu0 %v1219
      %v3636 = vpop.f32.mrf.mxu0
      %v3637 = vadd.f32 %v3476, %v3636
      %v3638 = vpop.f32.mrf.mxu0
      %v3639 = vpop.f32.mrf.mxu0
      %v3640 = vadd.f32 %v3479, %v3639
      %v3641 = vpop.f32.mrf.mxu0
      %3642 = vmatprep.mubr.bf16.mxu0 %v1614
      %3643 = vmatmul.mubr.bf16.gmra.mxu0 %v1223
      %v3644 = vpop.f32.mrf.mxu0
      %v3645 = vadd.f32 %v3484, %v3644
      %v3646 = vpop.f32.mrf.mxu0
      %v3647 = vpop.f32.mrf.mxu0
      %v3648 = vadd.f32 %v3487, %v3647
      %v3649 = vpop.f32.mrf.mxu0
      %3650 = vmatprep.mubr.bf16.mxu0 %v1617
      %3651 = vmatmul.mubr.bf16.gmra.mxu0 %v1227
      %v3652 = vpop.f32.mrf.mxu0
      %v3653 = vadd.f32 %v3492, %v3652
      %v3654 = vpop.f32.mrf.mxu0
      %v3655 = vpop.f32.mrf.mxu0
      %v3656 = vadd.f32 %v3495, %v3655
      %v3657 = vpop.f32.mrf.mxu0
      %3658 = vmatprep.mubr.bf16.mxu0 %v1620
      %3659 = vmatmul.mubr.bf16.gmra.mxu0 %v1231
      %v3660 = vpop.f32.mrf.mxu0
      %v3661 = vadd.f32 %v3500, %v3660
      %v3662 = vpop.f32.mrf.mxu0
      %v3663 = vpop.f32.mrf.mxu0
      %v3664 = vadd.f32 %v3503, %v3663
      %v3665 = vpop.f32.mrf.mxu0
      %3666 = vmatprep.mubr.bf16.mxu0 %v1623
      %3667 = vmatmul.mubr.bf16.gmra.mxu0 %v1235
      %v3668 = vpop.f32.mrf.mxu0
      %v3669 = vadd.f32 %v3508, %v3668
      %v3670 = vpop.f32.mrf.mxu0
      %v3671 = vpop.f32.mrf.mxu0
      %v3672 = vadd.f32 %v3511, %v3671
      %v3673 = vpop.f32.mrf.mxu0
      %3674 = vmatprep.mubr.bf16.mxu0 %v1626
      %3675 = vmatmul.mubr.bf16.gmra.mxu0 %v1353
      %v3676 = vpop.f32.mrf.mxu0
      %v3677 = vadd.f32 %v3516, %v3676
      %v3678 = vpop.f32.mrf.mxu0
      %v3679 = vpop.f32.mrf.mxu0
      %v3680 = vadd.f32 %v3519, %v3679
      %v3681 = vpop.f32.mrf.mxu0
      %3682 = vmatprep.mubr.bf16.mxu0 %v2731
      %3683 = vmatmul.mubr.bf16.gmra.mxu0 %v2503
      %v3684 = vpop.f32.mrf.mxu0
      %v3685 = vadd.f32 %v3524, %v3684
      %v3686 = vpop.f32.mrf.mxu0
      %v3687 = vpop.f32.mrf.mxu0
      %v3688 = vadd.f32 %v3527, %v3687
      %v3689 = vpop.f32.mrf.mxu0
      %3690 = vmatprep.mubr.bf16.mxu0 %v3375
      %3691 = vmatmul.mubr.bf16.gmra.mxu0 %v3147
      %v3692 = vpop.f32.mrf.mxu0
      %v3693 = vadd.f32 %v3532, %v3692
      %v3694 = vpop.f32.mrf.mxu0
      %v3695 = vpop.f32.mrf.mxu0
      %v3696 = vadd.f32 %v3535, %v3695
      %v3697 = vpop.f32.mrf.mxu0
      %3698 = vdwg.mxu0
      %v3699 = vadd.f32 %v3055, %v3573
      %v3700 = vadd.f32 %v3056, %v3576
      %v3701 = vadd.f32 %v3057, %v3581
      %v3702 = vadd.f32 %v3058, %v3584
      %v3703 = vadd.f32 %v3059, %v3589
      %v3704 = vadd.f32 %v3060, %v3592
      %v3705 = vadd.f32 %v3061, %v3597
      %v3706 = vadd.f32 %v3062, %v3600
      %v3707 = vadd.f32 %v3063, %v3605
      %v3708 = vadd.f32 %v3064, %v3608
      %v3709 = vadd.f32 %v3065, %v3613
      %v3710 = vadd.f32 %v3066, %v3616
      %v3711 = vadd.f32 %v3067, %v3621
      %v3712 = vadd.f32 %v3068, %v3624
      %v3713 = vadd.f32 %v3069, %v3629
      %v3714 = vadd.f32 %v3070, %v3632
      %v3715 = vadd.f32 %v3071, %v3637
      %v3716 = vadd.f32 %v3072, %v3640
      %v3717 = vadd.f32 %v3073, %v3645
      %v3718 = vadd.f32 %v3074, %v3648
      %v3719 = vadd.f32 %v3075, %v3653
      %v3720 = vadd.f32 %v3076, %v3656
      %v3721 = vadd.f32 %v3077, %v3661
      %v3722 = vadd.f32 %v3078, %v3664
      %v3723 = vadd.f32 %v3079, %v3669
      %v3724 = vadd.f32 %v3080, %v3672
      %v3725 = vadd.f32 %v3081, %v3677
      %v3726 = vadd.f32 %v3082, %v3680
      %v3727 = vadd.f32 %v3083, %v3685
      %v3728 = vadd.f32 %v3084, %v3688
      %v3729 = vadd.f32 %v3085, %v3693
      %v3730 = vadd.f32 %v3086, %v3696
      %v3733 = vunpack.c.l.b16 %v229
      %v3734 = vunpack.c.l.b16 %v230
      %v3735 = vpack.c.b16 %v3734, %v3733
      %v3737 = vunpack.c.l.b16 %v231
      %v3738 = vpack.c.b16 %v3737, %v3737
      %v3740 = vshrl.u32 %v3735, 16
      %v3742 = vshll.u32 %v3735, 16
      %v3744 = vrot.slane %v3742, 1
      %v3745 = vor.u32 %v3740, %v3744
      %v3747 = vshll.u32 %v3738, 16
      %v3749 = vrot.slane %v3747, 1
      %v3750 = vsel %vm366, %v3745, %v3749
      %3751 = vrot.lane.b32.xlu0 %v3750, 64
      %v3752 = vpop.permute.xlu0 %3751
      %v3753 = vrot.slane %v3735, 1
      %v3754 = vrot.slane %v3738, 1
      %v3755 = vsel %vm591, %v3753, %v3754
      %v3756 = vrot.slane %v3740, 1
      %v3757 = vrot.slane %v3742, 2
      %v3758 = vor.u32 %v3756, %v3757
      %v3759 = vshrl.u32 %v3738, 16
      %v3761 = vrot.slane %v3759, 1
      %v3762 = vrot.slane %v3747, 2
      %v3763 = vor.u32 %v3761, %v3762
      %v3764 = vsel %vm640, %v3758, %v3763
      %3765 = vrot.lane.b32.xlu0 %v3764, 64
      %v3766 = vpop.permute.xlu0 %3765
      %v3767 = vrot.slane %v3735, 2
      %v3768 = vrot.slane %v3738, 2
      %v3769 = vsel %vm817, %v3767, %v3768
      %v3770 = vrot.slane %v3740, 2
      %v3771 = vrot.slane %v3742, 3
      %v3772 = vor.u32 %v3770, %v3771
      %v3773 = vrot.slane %v3759, 2
      %v3774 = vrot.slane %v3747, 3
      %v3775 = vor.u32 %v3773, %v3774
      %v3776 = vsel %vm866, %v3772, %v3775
      %3777 = vrot.lane.b32.xlu0 %v3776, 64
      %v3778 = vpop.permute.xlu0 %3777
      %v3779 = vrot.slane %v3735, 3
      %v3780 = vrot.slane %v3738, 3
      %v3781 = vsel %vm1011, %v3779, %v3780
      %v3783 = vsel %vm1060, %v3735, %v3752
      %v3787 = vsel %vm1060, %v3755, %v3766
      %v3791 = vsel %vm1060, %v3769, %v3778
      %s3793 = scalar_lea.vmem %s1, 896
      %v3794 = vld [vmem:[%s3793] sm:$0xf]
      %v3795 = vld [vmem:[%s3793 + $0x4] sm:$0xf]
      %v3796 = vld [vmem:[%s3793 + $0x8] sm:$0xf]
      %v3797 = vld [vmem:[%s3793 + $0xc] sm:$0xf]
      %v3798 = vld [vmem:[%s3793 + $0x10] sm:$0xf]
      %v3799 = vld [vmem:[%s3793 + $0x14] sm:$0xf]
      %v3800 = vld [vmem:[%s3793 + $0x18] sm:$0xf]
      %v3801 = vld [vmem:[%s3793 + $0x1c] sm:$0xf]
      %v3802 = vld [vmem:[%s3793 + $0x20] sm:$0xf]
      %v3803 = vld [vmem:[%s3793 + $0x24] sm:$0xf]
      %v3804 = vld [vmem:[%s3793 + $0x28] sm:$0xf]
      %v3805 = vld [vmem:[%s3793 + $0x2c] sm:$0xf]
      %v3806 = vld [vmem:[%s3793 + $0x30] sm:$0xf]
      %v3807 = vld [vmem:[%s3793 + $0x34] sm:$0xf]
      %v3808 = vld [vmem:[%s3793 + $0x38] sm:$0xf]
      %v3809 = vld [vmem:[%s3793 + $0x3c] sm:$0xf]
      %v3810 = vld [vmem:[%s3793 + $0x40] sm:$0xf]
      %v3811 = vld [vmem:[%s3793 + $0x44] sm:$0xf]
      %v3812 = vld [vmem:[%s3793 + $0x48] sm:$0xf]
      %v3813 = vld [vmem:[%s3793 + $0x4c] sm:$0xf]
      %v3814 = vld [vmem:[%s3793 + $0x50] sm:$0xf]
      %v3815 = vld [vmem:[%s3793 + $0x54] sm:$0xf]
      %v3816 = vld [vmem:[%s3793 + $0x58] sm:$0xf]
      %v3817 = vld [vmem:[%s3793 + $0x5c] sm:$0xf]
      %v3818 = vld [vmem:[%s3793 + $0x60] sm:$0xf]
      %v3819 = vld [vmem:[%s3793 + $0x64] sm:$0xf]
      %v3820 = vld [vmem:[%s3793 + $0x68] sm:$0xf]
      %v3821 = vld [vmem:[%s3793 + $0x6c] sm:$0xf]
      %v3822 = vld [vmem:[%s3793 + $0x70] sm:$0xf]
      %v3823 = vld [vmem:[%s3793 + $0x74] sm:$0xf]
      %v3824 = vld [vmem:[%s3793 + $0x78] sm:$0xf]
      %v3825 = vld [vmem:[%s3793 + $0x7c] sm:$0xf]
      %v3826 = vld [vmem:[%s3793 + $0x80] sm:$0xf]
      %v3827 = vld [vmem:[%s3793 + $0x84] sm:$0xf]
      %v3828 = vld [vmem:[%s3793 + $0x88] sm:$0xf]
      %v3829 = vld [vmem:[%s3793 + $0x8c] sm:$0xf]
      %v3830 = vld [vmem:[%s3793 + $0x90] sm:$0xf]
      %v3831 = vld [vmem:[%s3793 + $0x94] sm:$0xf]
      %v3832 = vld [vmem:[%s3793 + $0x98] sm:$0xf]
      %v3833 = vld [vmem:[%s3793 + $0x9c] sm:$0xf]
      %v3834 = vld [vmem:[%s3793 + $0xa0] sm:$0xf]
      %v3835 = vld [vmem:[%s3793 + $0xa4] sm:$0xf]
      %v3836 = vld [vmem:[%s3793 + $0xa8] sm:$0xf]
      %v3837 = vld [vmem:[%s3793 + $0xac] sm:$0xf]
      %v3838 = vld [vmem:[%s3793 + $0xb0] sm:$0xf]
      %v3839 = vld [vmem:[%s3793 + $0xb4] sm:$0xf]
      %v3840 = vld [vmem:[%s3793 + $0xb8] sm:$0xf]
      %v3841 = vld [vmem:[%s3793 + $0xbc] sm:$0xf]
      %v3842 = vld [vmem:[%s3793 + $0xc0] sm:$0xf]
      %v3843 = vld [vmem:[%s3793 + $0xc4] sm:$0xf]
      %v3844 = vld [vmem:[%s3793 + $0xc8] sm:$0xf]
      %v3845 = vld [vmem:[%s3793 + $0xcc] sm:$0xf]
      %v3846 = vld [vmem:[%s3793 + $0xd0] sm:$0xf]
      %v3847 = vld [vmem:[%s3793 + $0xd4] sm:$0xf]
      %v3848 = vld [vmem:[%s3793 + $0xd8] sm:$0xf]
      %v3849 = vld [vmem:[%s3793 + $0xdc] sm:$0xf]
      %v3906 = vunpack.c.l.b16 %v3794
      %v3907 = vunpack.c.l.b16 %v3795
      %v3908 = vunpack.c.l.b16 %v3796
      %v3909 = vunpack.c.l.b16 %v3797
      %v3910 = vunpack.c.l.b16 %v3798
      %v3911 = vunpack.c.l.b16 %v3799
      %v3912 = vunpack.c.l.b16 %v3800
      %v3913 = vunpack.c.l.b16 %v3801
      %v3914 = vunpack.c.l.b16 %v3802
      %v3915 = vunpack.c.l.b16 %v3803
      %v3916 = vunpack.c.l.b16 %v3804
      %v3917 = vunpack.c.l.b16 %v3805
      %v3918 = vunpack.c.l.b16 %v3806
      %v3919 = vunpack.c.l.b16 %v3807
      %v3920 = vunpack.c.l.b16 %v3808
      %v3921 = vunpack.c.l.b16 %v3809
      %v3922 = vunpack.c.l.b16 %v3810
      %v3923 = vunpack.c.l.b16 %v3811
      %v3924 = vunpack.c.l.b16 %v3812
      %v3925 = vunpack.c.l.b16 %v3813
      %v3926 = vunpack.c.l.b16 %v3814
      %v3927 = vunpack.c.l.b16 %v3815
      %v3928 = vunpack.c.l.b16 %v3816
      %v3929 = vunpack.c.l.b16 %v3817
      %v3930 = vunpack.c.l.b16 %v3818
      %v3931 = vunpack.c.l.b16 %v3819
      %v3932 = vunpack.c.l.b16 %v3820
      %v3933 = vunpack.c.l.b16 %v3821
      %v3934 = vunpack.c.l.b16 %v3822
      %v3935 = vunpack.c.l.b16 %v3823
      %v3936 = vunpack.c.l.b16 %v3824
      %v3937 = vunpack.c.l.b16 %v3825
      %v3938 = vunpack.c.l.b16 %v3826
      %v3939 = vunpack.c.l.b16 %v3827
      %v3940 = vunpack.c.l.b16 %v3828
      %v3941 = vunpack.c.l.b16 %v3829
      %v3942 = vunpack.c.l.b16 %v3830
      %v3943 = vunpack.c.l.b16 %v3831
      %v3944 = vunpack.c.l.b16 %v3832
      %v3945 = vunpack.c.l.b16 %v3833
      %v3946 = vunpack.c.l.b16 %v3834
      %v3947 = vunpack.c.l.b16 %v3835
      %v3948 = vunpack.c.l.b16 %v3836
      %v3949 = vunpack.c.l.b16 %v3837
      %v3950 = vunpack.c.l.b16 %v3838
      %v3951 = vunpack.c.l.b16 %v3839
      %v3952 = vunpack.c.l.b16 %v3840
      %v3953 = vunpack.c.l.b16 %v3841
      %v3954 = vunpack.c.l.b16 %v3842
      %v3955 = vunpack.c.l.b16 %v3843
      %v3956 = vunpack.c.l.b16 %v3844
      %v3957 = vunpack.c.l.b16 %v3845
      %v3958 = vunpack.c.l.b16 %v3846
      %v3959 = vunpack.c.l.b16 %v3847
      %v3960 = vunpack.c.l.b16 %v3848
      %v3961 = vunpack.c.l.b16 %v3849
      %v3962 = vpack.c.b16 %v3907, %v3906
      %v3963 = vpack.c.b16 %v3909, %v3908
      %v3964 = vpack.c.b16 %v3911, %v3910
      %v3965 = vpack.c.b16 %v3913, %v3912
      %v3966 = vpack.c.b16 %v3915, %v3914
      %v3967 = vpack.c.b16 %v3917, %v3916
      %v3968 = vpack.c.b16 %v3919, %v3918
      %v3969 = vpack.c.b16 %v3921, %v3920
      %v3970 = vpack.c.b16 %v3923, %v3922
      %v3971 = vpack.c.b16 %v3925, %v3924
      %v3972 = vpack.c.b16 %v3927, %v3926
      %v3973 = vpack.c.b16 %v3929, %v3928
      %v3974 = vpack.c.b16 %v3931, %v3930
      %v3975 = vpack.c.b16 %v3933, %v3932
      %v3976 = vpack.c.b16 %v3935, %v3934
      %v3977 = vpack.c.b16 %v3937, %v3936
      %v3978 = vpack.c.b16 %v3939, %v3938
      %v3979 = vpack.c.b16 %v3941, %v3940
      %v3980 = vpack.c.b16 %v3943, %v3942
      %v3981 = vpack.c.b16 %v3945, %v3944
      %v3982 = vpack.c.b16 %v3947, %v3946
      %v3983 = vpack.c.b16 %v3949, %v3948
      %v3984 = vpack.c.b16 %v3951, %v3950
      %v3985 = vpack.c.b16 %v3953, %v3952
      %v3986 = vpack.c.b16 %v3955, %v3954
      %v3987 = vpack.c.b16 %v3957, %v3956
      %v3988 = vpack.c.b16 %v3959, %v3958
      %v3989 = vpack.c.b16 %v3961, %v3960
      %v4019 = vsel %vm1060, %v3781, 0
      %4021 = vmatprep.subr.bf16.mxu0 0
      %4022 = vmatpush1.bf16.msra.mxu0 %v3969
      %4023 = vmatprep.subr.bf16.mxu0 0
      %4024 = vmatpush1.bf16.msra.mxu0 %v3968
      %4025 = vmatprep.subr.bf16.mxu0 0
      %4026 = vmatpush1.bf16.msra.mxu0 %v3967
      %4027 = vmatprep.subr.bf16.mxu0 0
      %4028 = vmatpush1.bf16.msra.mxu0 %v3966
      %4029 = vmatprep.subr.bf16.mxu0 0
      %4030 = vmatpush1.bf16.msra.mxu0 %v3965
      %4031 = vmatprep.subr.bf16.mxu0 0
      %4032 = vmatpush1.bf16.msra.mxu0 %v3964
      %4033 = vmatprep.subr.bf16.mxu0 0
      %4034 = vmatpush1.bf16.msra.mxu0 %v3963
      %4035 = vmatprep.subr.bf16.mxu0 0
      %4036 = vmatpush1.bf16.msra.mxu0 %v3962
      %4037 = vmatprep.subr.bf16.mxu0 0
      %4038 = vmatpush2.bf16.msra.mxu0 %v3977
      %4039 = vmatprep.subr.bf16.mxu0 0
      %4040 = vmatpush2.bf16.msra.mxu0 %v3976
      %4041 = vmatprep.subr.bf16.mxu0 0
      %4042 = vmatpush2.bf16.msra.mxu0 %v3975
      %4043 = vmatprep.subr.bf16.mxu0 0
      %4044 = vmatpush2.bf16.msra.mxu0 %v3974
      %4045 = vmatprep.subr.bf16.mxu0 0
      %4046 = vmatpush2.bf16.msra.mxu0 %v3973
      %4047 = vmatprep.subr.bf16.mxu0 0
      %4048 = vmatpush2.bf16.msra.mxu0 %v3972
      %4049 = vmatprep.subr.bf16.mxu0 0
      %4050 = vmatpush2.bf16.msra.mxu0 %v3971
      %4051 = vmatprep.subr.bf16.mxu0 0
      %4052 = vmatpush2.bf16.msra.mxu0 %v3970
      %4053 = vmatprep.mubr.bf16.mxu0 %v1127
      %4054 = vmatmul.mubr.bf16.gmra.mxu0 %v1074
      %v4055 = vpop.f32.mrf.mxu0
      %v4056 = vadd.f32 0.0, %v4055
      %v4057 = vpop.f32.mrf.mxu0
      %v4058 = vpop.f32.mrf.mxu0
      %v4059 = vadd.f32 0.0, %v4058
      %v4060 = vpop.f32.mrf.mxu0
      %4061 = vmatprep.mubr.bf16.mxu0 %v1131
      %4062 = vmatmul.mubr.bf16.gmra.mxu0 %v1077
      %v4063 = vpop.f32.mrf.mxu0
      %v4064 = vadd.f32 0.0, %v4063
      %v4065 = vpop.f32.mrf.mxu0
      %v4066 = vpop.f32.mrf.mxu0
      %v4067 = vadd.f32 0.0, %v4066
      %v4068 = vpop.f32.mrf.mxu0
      %4069 = vmatprep.mubr.bf16.mxu0 %v1135
      %4070 = vmatmul.mubr.bf16.gmra.mxu0 %v1080
      %v4071 = vpop.f32.mrf.mxu0
      %v4072 = vadd.f32 0.0, %v4071
      %v4073 = vpop.f32.mrf.mxu0
      %v4074 = vpop.f32.mrf.mxu0
      %v4075 = vadd.f32 0.0, %v4074
      %v4076 = vpop.f32.mrf.mxu0
      %4077 = vmatprep.mubr.bf16.mxu0 %v1139
      %4078 = vmatmul.mubr.bf16.gmra.mxu0 %v1083
      %v4079 = vpop.f32.mrf.mxu0
      %v4080 = vadd.f32 0.0, %v4079
      %v4081 = vpop.f32.mrf.mxu0
      %v4082 = vpop.f32.mrf.mxu0
      %v4083 = vadd.f32 0.0, %v4082
      %v4084 = vpop.f32.mrf.mxu0
      %4085 = vmatprep.mubr.bf16.mxu0 %v1143
      %4086 = vmatmul.mubr.bf16.gmra.mxu0 %v1086
      %v4087 = vpop.f32.mrf.mxu0
      %v4088 = vadd.f32 0.0, %v4087
      %v4089 = vpop.f32.mrf.mxu0
      %v4090 = vpop.f32.mrf.mxu0
      %v4091 = vadd.f32 0.0, %v4090
      %v4092 = vpop.f32.mrf.mxu0
      %4093 = vmatprep.mubr.bf16.mxu0 %v1147
      %4094 = vmatmul.mubr.bf16.gmra.mxu0 %v1089
      %v4095 = vpop.f32.mrf.mxu0
      %v4096 = vadd.f32 0.0, %v4095
      %v4097 = vpop.f32.mrf.mxu0
      %v4098 = vpop.f32.mrf.mxu0
      %v4099 = vadd.f32 0.0, %v4098
      %v4100 = vpop.f32.mrf.mxu0
      %4101 = vmatprep.mubr.bf16.mxu0 %v1151
      %4102 = vmatmul.mubr.bf16.gmra.mxu0 %v1092
      %v4103 = vpop.f32.mrf.mxu0
      %v4104 = vadd.f32 0.0, %v4103
      %v4105 = vpop.f32.mrf.mxu0
      %v4106 = vpop.f32.mrf.mxu0
      %v4107 = vadd.f32 0.0, %v4106
      %v4108 = vpop.f32.mrf.mxu0
      %4109 = vmatprep.mubr.bf16.mxu0 %v1155
      %4110 = vmatmul.mubr.bf16.gmra.mxu0 %v1095
      %v4111 = vpop.f32.mrf.mxu0
      %v4112 = vadd.f32 0.0, %v4111
      %v4113 = vpop.f32.mrf.mxu0
      %v4114 = vpop.f32.mrf.mxu0
      %v4115 = vadd.f32 0.0, %v4114
      %v4116 = vpop.f32.mrf.mxu0
      %4117 = vmatprep.mubr.bf16.mxu0 %v1159
      %4118 = vmatmul.mubr.bf16.gmra.mxu0 %v1098
      %v4119 = vpop.f32.mrf.mxu0
      %v4120 = vadd.f32 0.0, %v4119
      %v4121 = vpop.f32.mrf.mxu0
      %v4122 = vpop.f32.mrf.mxu0
      %v4123 = vadd.f32 0.0, %v4122
      %v4124 = vpop.f32.mrf.mxu0
      %4125 = vmatprep.mubr.bf16.mxu0 %v1163
      %4126 = vmatmul.mubr.bf16.gmra.mxu0 %v1101
      %v4127 = vpop.f32.mrf.mxu0
      %v4128 = vadd.f32 0.0, %v4127
      %v4129 = vpop.f32.mrf.mxu0
      %v4130 = vpop.f32.mrf.mxu0
      %v4131 = vadd.f32 0.0, %v4130
      %v4132 = vpop.f32.mrf.mxu0
      %4133 = vmatprep.mubr.bf16.mxu0 %v1167
      %4134 = vmatmul.mubr.bf16.gmra.mxu0 %v1104
      %v4135 = vpop.f32.mrf.mxu0
      %v4136 = vadd.f32 0.0, %v4135
      %v4137 = vpop.f32.mrf.mxu0
      %v4138 = vpop.f32.mrf.mxu0
      %v4139 = vadd.f32 0.0, %v4138
      %v4140 = vpop.f32.mrf.mxu0
      %4141 = vmatprep.mubr.bf16.mxu0 %v1171
      %4142 = vmatmul.mubr.bf16.gmra.mxu0 %v1107
      %v4143 = vpop.f32.mrf.mxu0
      %v4144 = vadd.f32 0.0, %v4143
      %v4145 = vpop.f32.mrf.mxu0
      %v4146 = vpop.f32.mrf.mxu0
      %v4147 = vadd.f32 0.0, %v4146
      %v4148 = vpop.f32.mrf.mxu0
      %4149 = vmatprep.mubr.bf16.mxu0 %v1349
      %4150 = vmatmul.mubr.bf16.gmra.mxu0 %v1345
      %v4151 = vpop.f32.mrf.mxu0
      %v4152 = vadd.f32 0.0, %v4151
      %v4153 = vpop.f32.mrf.mxu0
      %v4154 = vpop.f32.mrf.mxu0
      %v4155 = vadd.f32 0.0, %v4154
      %v4156 = vpop.f32.mrf.mxu0
      %4157 = vmatprep.mubr.bf16.mxu0 %v2499
      %4158 = vmatmul.mubr.bf16.gmra.mxu0 %v2495
      %v4159 = vpop.f32.mrf.mxu0
      %v4160 = vadd.f32 0.0, %v4159
      %v4161 = vpop.f32.mrf.mxu0
      %v4162 = vpop.f32.mrf.mxu0
      %v4163 = vadd.f32 0.0, %v4162
      %v4164 = vpop.f32.mrf.mxu0
      %4165 = vmatprep.mubr.bf16.mxu0 %v3143
      %4166 = vmatmul.mubr.bf16.gmra.mxu0 %v3139
      %v4167 = vpop.f32.mrf.mxu0
      %v4168 = vadd.f32 0.0, %v4167
      %v4169 = vpop.f32.mrf.mxu0
      %v4170 = vpop.f32.mrf.mxu0
      %v4171 = vadd.f32 0.0, %v4170
      %v4172 = vpop.f32.mrf.mxu0
      %4173 = vmatprep.mubr.bf16.mxu0 %v3787
      %4174 = vmatmul.mubr.bf16.gmra.mxu0 %v3783
      %v4175 = vpop.f32.mrf.mxu0
      %v4176 = vadd.f32 0.0, %v4175
      %v4177 = vpop.f32.mrf.mxu0
      %v4178 = vpop.f32.mrf.mxu0
      %v4179 = vadd.f32 0.0, %v4178
      %v4180 = vpop.f32.mrf.mxu0
      %4181 = vdwg.mxu0
      %4182 = vmatprep.subr.bf16.mxu0 0
      %4183 = vmatpush1.bf16.msra.mxu0 %v3985
      %4184 = vmatprep.subr.bf16.mxu0 0
      %4185 = vmatpush1.bf16.msra.mxu0 %v3984
      %4186 = vmatprep.subr.bf16.mxu0 0
      %4187 = vmatpush1.bf16.msra.mxu0 %v3983
      %4188 = vmatprep.subr.bf16.mxu0 0
      %4189 = vmatpush1.bf16.msra.mxu0 %v3982
      %4190 = vmatprep.subr.bf16.mxu0 0
      %4191 = vmatpush1.bf16.msra.mxu0 %v3981
      %4192 = vmatprep.subr.bf16.mxu0 0
      %4193 = vmatpush1.bf16.msra.mxu0 %v3980
      %4194 = vmatprep.subr.bf16.mxu0 0
      %4195 = vmatpush1.bf16.msra.mxu0 %v3979
      %4196 = vmatprep.subr.bf16.mxu0 0
      %4197 = vmatpush1.bf16.msra.mxu0 %v3978
      %4198 = vmatprep.subr.bf16.mxu0 0
      %4199 = vmatpush2.bf16.msra.mxu0 0
      %4200 = vmatprep.subr.bf16.mxu0 0
      %4201 = vmatpush2.bf16.msra.mxu0 0
      %4202 = vmatprep.subr.bf16.mxu0 0
      %4203 = vmatpush2.bf16.msra.mxu0 0
      %4204 = vmatprep.subr.bf16.mxu0 0
      %4205 = vmatpush2.bf16.msra.mxu0 0
      %4206 = vmatprep.subr.bf16.mxu0 0
      %4207 = vmatpush2.bf16.msra.mxu0 %v3989
      %4208 = vmatprep.subr.bf16.mxu0 0
      %4209 = vmatpush2.bf16.msra.mxu0 %v3988
      %4210 = vmatprep.subr.bf16.mxu0 0
      %4211 = vmatpush2.bf16.msra.mxu0 %v3987
      %4212 = vmatprep.subr.bf16.mxu0 0
      %4213 = vmatpush2.bf16.msra.mxu0 %v3986
      %4214 = vmatprep.mubr.bf16.mxu0 %v1590
      %4215 = vmatmul.mubr.bf16.gmra.mxu0 %v1191
      %v4216 = vpop.f32.mrf.mxu0
      %v4217 = vadd.f32 %v4056, %v4216
      %v4218 = vpop.f32.mrf.mxu0
      %v4219 = vpop.f32.mrf.mxu0
      %v4220 = vadd.f32 %v4059, %v4219
      %v4221 = vpop.f32.mrf.mxu0
      %4222 = vmatprep.mubr.bf16.mxu0 %v1593
      %4223 = vmatmul.mubr.bf16.gmra.mxu0 %v1195
      %v4224 = vpop.f32.mrf.mxu0
      %v4225 = vadd.f32 %v4064, %v4224
      %v4226 = vpop.f32.mrf.mxu0
      %v4227 = vpop.f32.mrf.mxu0
      %v4228 = vadd.f32 %v4067, %v4227
      %v4229 = vpop.f32.mrf.mxu0
      %4230 = vmatprep.mubr.bf16.mxu0 %v1596
      %4231 = vmatmul.mubr.bf16.gmra.mxu0 %v1199
      %v4232 = vpop.f32.mrf.mxu0
      %v4233 = vadd.f32 %v4072, %v4232
      %v4234 = vpop.f32.mrf.mxu0
      %v4235 = vpop.f32.mrf.mxu0
      %v4236 = vadd.f32 %v4075, %v4235
      %v4237 = vpop.f32.mrf.mxu0
      %4238 = vmatprep.mubr.bf16.mxu0 %v1599
      %4239 = vmatmul.mubr.bf16.gmra.mxu0 %v1203
      %v4240 = vpop.f32.mrf.mxu0
      %v4241 = vadd.f32 %v4080, %v4240
      %v4242 = vpop.f32.mrf.mxu0
      %v4243 = vpop.f32.mrf.mxu0
      %v4244 = vadd.f32 %v4083, %v4243
      %v4245 = vpop.f32.mrf.mxu0
      %4246 = vmatprep.mubr.bf16.mxu0 %v1602
      %4247 = vmatmul.mubr.bf16.gmra.mxu0 %v1207
      %v4248 = vpop.f32.mrf.mxu0
      %v4249 = vadd.f32 %v4088, %v4248
      %v4250 = vpop.f32.mrf.mxu0
      %v4251 = vpop.f32.mrf.mxu0
      %v4252 = vadd.f32 %v4091, %v4251
      %v4253 = vpop.f32.mrf.mxu0
      %4254 = vmatprep.mubr.bf16.mxu0 %v1605
      %4255 = vmatmul.mubr.bf16.gmra.mxu0 %v1211
      %v4256 = vpop.f32.mrf.mxu0
      %v4257 = vadd.f32 %v4096, %v4256
      %v4258 = vpop.f32.mrf.mxu0
      %v4259 = vpop.f32.mrf.mxu0
      %v4260 = vadd.f32 %v4099, %v4259
      %v4261 = vpop.f32.mrf.mxu0
      %4262 = vmatprep.mubr.bf16.mxu0 %v1608
      %4263 = vmatmul.mubr.bf16.gmra.mxu0 %v1215
      %v4264 = vpop.f32.mrf.mxu0
      %v4265 = vadd.f32 %v4104, %v4264
      %v4266 = vpop.f32.mrf.mxu0
      %v4267 = vpop.f32.mrf.mxu0
      %v4268 = vadd.f32 %v4107, %v4267
      %v4269 = vpop.f32.mrf.mxu0
      %4270 = vmatprep.mubr.bf16.mxu0 %v1611
      %4271 = vmatmul.mubr.bf16.gmra.mxu0 %v1219
      %v4272 = vpop.f32.mrf.mxu0
      %v4273 = vadd.f32 %v4112, %v4272
      %v4274 = vpop.f32.mrf.mxu0
      %v4275 = vpop.f32.mrf.mxu0
      %v4276 = vadd.f32 %v4115, %v4275
      %v4277 = vpop.f32.mrf.mxu0
      %4278 = vmatprep.mubr.bf16.mxu0 %v1614
      %4279 = vmatmul.mubr.bf16.gmra.mxu0 %v1223
      %v4280 = vpop.f32.mrf.mxu0
      %v4281 = vadd.f32 %v4120, %v4280
      %v4282 = vpop.f32.mrf.mxu0
      %v4283 = vpop.f32.mrf.mxu0
      %v4284 = vadd.f32 %v4123, %v4283
      %v4285 = vpop.f32.mrf.mxu0
      %4286 = vmatprep.mubr.bf16.mxu0 %v1617
      %4287 = vmatmul.mubr.bf16.gmra.mxu0 %v1227
      %v4288 = vpop.f32.mrf.mxu0
      %v4289 = vadd.f32 %v4128, %v4288
      %v4290 = vpop.f32.mrf.mxu0
      %v4291 = vpop.f32.mrf.mxu0
      %v4292 = vadd.f32 %v4131, %v4291
      %v4293 = vpop.f32.mrf.mxu0
      %4294 = vmatprep.mubr.bf16.mxu0 %v1620
      %4295 = vmatmul.mubr.bf16.gmra.mxu0 %v1231
      %v4296 = vpop.f32.mrf.mxu0
      %v4297 = vadd.f32 %v4136, %v4296
      %v4298 = vpop.f32.mrf.mxu0
      %v4299 = vpop.f32.mrf.mxu0
      %v4300 = vadd.f32 %v4139, %v4299
      %v4301 = vpop.f32.mrf.mxu0
      %4302 = vmatprep.mubr.bf16.mxu0 %v1623
      %4303 = vmatmul.mubr.bf16.gmra.mxu0 %v1235
      %v4304 = vpop.f32.mrf.mxu0
      %v4305 = vadd.f32 %v4144, %v4304
      %v4306 = vpop.f32.mrf.mxu0
      %v4307 = vpop.f32.mrf.mxu0
      %v4308 = vadd.f32 %v4147, %v4307
      %v4309 = vpop.f32.mrf.mxu0
      %4310 = vmatprep.mubr.bf16.mxu0 %v1626
      %4311 = vmatmul.mubr.bf16.gmra.mxu0 %v1353
      %v4312 = vpop.f32.mrf.mxu0
      %v4313 = vadd.f32 %v4152, %v4312
      %v4314 = vpop.f32.mrf.mxu0
      %v4315 = vpop.f32.mrf.mxu0
      %v4316 = vadd.f32 %v4155, %v4315
      %v4317 = vpop.f32.mrf.mxu0
      %4318 = vmatprep.mubr.bf16.mxu0 %v2731
      %4319 = vmatmul.mubr.bf16.gmra.mxu0 %v2503
      %v4320 = vpop.f32.mrf.mxu0
      %v4321 = vadd.f32 %v4160, %v4320
      %v4322 = vpop.f32.mrf.mxu0
      %v4323 = vpop.f32.mrf.mxu0
      %v4324 = vadd.f32 %v4163, %v4323
      %v4325 = vpop.f32.mrf.mxu0
      %4326 = vmatprep.mubr.bf16.mxu0 %v3375
      %4327 = vmatmul.mubr.bf16.gmra.mxu0 %v3147
      %v4328 = vpop.f32.mrf.mxu0
      %v4329 = vadd.f32 %v4168, %v4328
      %v4330 = vpop.f32.mrf.mxu0
      %v4331 = vpop.f32.mrf.mxu0
      %v4332 = vadd.f32 %v4171, %v4331
      %v4333 = vpop.f32.mrf.mxu0
      %4334 = vmatprep.mubr.bf16.mxu0 %v4019
      %4335 = vmatmul.mubr.bf16.gmra.mxu0 %v3791
      %v4336 = vpop.f32.mrf.mxu0
      %v4337 = vadd.f32 %v4176, %v4336
      %v4338 = vpop.f32.mrf.mxu0
      %v4339 = vpop.f32.mrf.mxu0
      %v4340 = vadd.f32 %v4179, %v4339
      %v4341 = vpop.f32.mrf.mxu0
      %4342 = vdwg.mxu0
      %v4343 = vadd.f32 %v3699, %v4217
      %v4344 = vadd.f32 %v3700, %v4220
      %v4345 = vadd.f32 %v3701, %v4225
      %v4346 = vadd.f32 %v3702, %v4228
      %v4347 = vadd.f32 %v3703, %v4233
      %v4348 = vadd.f32 %v3704, %v4236
      %v4349 = vadd.f32 %v3705, %v4241
      %v4350 = vadd.f32 %v3706, %v4244
      %v4351 = vadd.f32 %v3707, %v4249
      %v4352 = vadd.f32 %v3708, %v4252
      %v4353 = vadd.f32 %v3709, %v4257
      %v4354 = vadd.f32 %v3710, %v4260
      %v4355 = vadd.f32 %v3711, %v4265
      %v4356 = vadd.f32 %v3712, %v4268
      %v4357 = vadd.f32 %v3713, %v4273
      %v4358 = vadd.f32 %v3714, %v4276
      %v4359 = vadd.f32 %v3715, %v4281
      %v4360 = vadd.f32 %v3716, %v4284
      %v4361 = vadd.f32 %v3717, %v4289
      %v4362 = vadd.f32 %v3718, %v4292
      %v4363 = vadd.f32 %v3719, %v4297
      %v4364 = vadd.f32 %v3720, %v4300
      %v4365 = vadd.f32 %v3721, %v4305
      %v4366 = vadd.f32 %v3722, %v4308
      %v4367 = vadd.f32 %v3723, %v4313
      %v4368 = vadd.f32 %v3724, %v4316
      %v4369 = vadd.f32 %v3725, %v4321
      %v4370 = vadd.f32 %v3726, %v4324
      %v4371 = vadd.f32 %v3727, %v4329
      %v4372 = vadd.f32 %v3728, %v4332
      %v4373 = vadd.f32 %v3729, %v4337
      %v4374 = vadd.f32 %v3730, %v4340
      %v4377 = vunpack.c.l.b16 %v232
      %v4378 = vunpack.c.l.b16 %v233
      %v4379 = vpack.c.b16 %v4378, %v4377
      %v4381 = vunpack.c.l.b16 %v234
      %v4382 = vpack.c.b16 %v4381, %v4381
      %v4384 = vshrl.u32 %v4379, 16
      %v4386 = vshll.u32 %v4379, 16
      %v4388 = vrot.slane %v4386, 1
      %v4389 = vor.u32 %v4384, %v4388
      %v4391 = vshll.u32 %v4382, 16
      %v4393 = vrot.slane %v4391, 1
      %v4394 = vsel %vm366, %v4389, %v4393
      %4395 = vrot.lane.b32.xlu0 %v4394, 64
      %v4396 = vpop.permute.xlu0 %4395
      %v4397 = vrot.slane %v4379, 1
      %v4398 = vrot.slane %v4382, 1
      %v4399 = vsel %vm591, %v4397, %v4398
      %v4400 = vrot.slane %v4384, 1
      %v4401 = vrot.slane %v4386, 2
      %v4402 = vor.u32 %v4400, %v4401
      %v4403 = vshrl.u32 %v4382, 16
      %v4405 = vrot.slane %v4403, 1
      %v4406 = vrot.slane %v4391, 2
      %v4407 = vor.u32 %v4405, %v4406
      %v4408 = vsel %vm640, %v4402, %v4407
      %4409 = vrot.lane.b32.xlu0 %v4408, 64
      %v4410 = vpop.permute.xlu0 %4409
      %v4411 = vrot.slane %v4379, 2
      %v4412 = vrot.slane %v4382, 2
      %v4413 = vsel %vm817, %v4411, %v4412
      %v4414 = vrot.slane %v4384, 2
      %v4415 = vrot.slane %v4386, 3
      %v4416 = vor.u32 %v4414, %v4415
      %v4417 = vrot.slane %v4403, 2
      %v4418 = vrot.slane %v4391, 3
      %v4419 = vor.u32 %v4417, %v4418
      %v4420 = vsel %vm866, %v4416, %v4419
      %4421 = vrot.lane.b32.xlu0 %v4420, 64
      %v4422 = vpop.permute.xlu0 %4421
      %v4423 = vrot.slane %v4379, 3
      %v4424 = vrot.slane %v4382, 3
      %v4425 = vsel %vm1011, %v4423, %v4424
      %v4427 = vsel %vm1060, %v4379, %v4396
      %v4431 = vsel %vm1060, %v4399, %v4410
      %v4435 = vsel %vm1060, %v4413, %v4422
      %s4437 = scalar_lea.vmem %s1, 1120
      %v4438 = vld [vmem:[%s4437] sm:$0xf]
      %v4439 = vld [vmem:[%s4437 + $0x4] sm:$0xf]
      %v4440 = vld [vmem:[%s4437 + $0x8] sm:$0xf]
      %v4441 = vld [vmem:[%s4437 + $0xc] sm:$0xf]
      %v4442 = vld [vmem:[%s4437 + $0x10] sm:$0xf]
      %v4443 = vld [vmem:[%s4437 + $0x14] sm:$0xf]
      %v4444 = vld [vmem:[%s4437 + $0x18] sm:$0xf]
      %v4445 = vld [vmem:[%s4437 + $0x1c] sm:$0xf]
      %v4446 = vld [vmem:[%s4437 + $0x20] sm:$0xf]
      %v4447 = vld [vmem:[%s4437 + $0x24] sm:$0xf]
      %v4448 = vld [vmem:[%s4437 + $0x28] sm:$0xf]
      %v4449 = vld [vmem:[%s4437 + $0x2c] sm:$0xf]
      %v4450 = vld [vmem:[%s4437 + $0x30] sm:$0xf]
      %v4451 = vld [vmem:[%s4437 + $0x34] sm:$0xf]
      %v4452 = vld [vmem:[%s4437 + $0x38] sm:$0xf]
      %v4453 = vld [vmem:[%s4437 + $0x3c] sm:$0xf]
      %v4454 = vld [vmem:[%s4437 + $0x40] sm:$0xf]
      %v4455 = vld [vmem:[%s4437 + $0x44] sm:$0xf]
      %v4456 = vld [vmem:[%s4437 + $0x48] sm:$0xf]
      %v4457 = vld [vmem:[%s4437 + $0x4c] sm:$0xf]
      %v4458 = vld [vmem:[%s4437 + $0x50] sm:$0xf]
      %v4459 = vld [vmem:[%s4437 + $0x54] sm:$0xf]
      %v4460 = vld [vmem:[%s4437 + $0x58] sm:$0xf]
      %v4461 = vld [vmem:[%s4437 + $0x5c] sm:$0xf]
      %v4462 = vld [vmem:[%s4437 + $0x60] sm:$0xf]
      %v4463 = vld [vmem:[%s4437 + $0x64] sm:$0xf]
      %v4464 = vld [vmem:[%s4437 + $0x68] sm:$0xf]
      %v4465 = vld [vmem:[%s4437 + $0x6c] sm:$0xf]
      %v4466 = vld [vmem:[%s4437 + $0x70] sm:$0xf]
      %v4467 = vld [vmem:[%s4437 + $0x74] sm:$0xf]
      %v4468 = vld [vmem:[%s4437 + $0x78] sm:$0xf]
      %v4469 = vld [vmem:[%s4437 + $0x7c] sm:$0xf]
      %v4470 = vld [vmem:[%s4437 + $0x80] sm:$0xf]
      %v4471 = vld [vmem:[%s4437 + $0x84] sm:$0xf]
      %v4472 = vld [vmem:[%s4437 + $0x88] sm:$0xf]
      %v4473 = vld [vmem:[%s4437 + $0x8c] sm:$0xf]
      %v4474 = vld [vmem:[%s4437 + $0x90] sm:$0xf]
      %v4475 = vld [vmem:[%s4437 + $0x94] sm:$0xf]
      %v4476 = vld [vmem:[%s4437 + $0x98] sm:$0xf]
      %v4477 = vld [vmem:[%s4437 + $0x9c] sm:$0xf]
      %v4478 = vld [vmem:[%s4437 + $0xa0] sm:$0xf]
      %v4479 = vld [vmem:[%s4437 + $0xa4] sm:$0xf]
      %v4480 = vld [vmem:[%s4437 + $0xa8] sm:$0xf]
      %v4481 = vld [vmem:[%s4437 + $0xac] sm:$0xf]
      %v4482 = vld [vmem:[%s4437 + $0xb0] sm:$0xf]
      %v4483 = vld [vmem:[%s4437 + $0xb4] sm:$0xf]
      %v4484 = vld [vmem:[%s4437 + $0xb8] sm:$0xf]
      %v4485 = vld [vmem:[%s4437 + $0xbc] sm:$0xf]
      %v4486 = vld [vmem:[%s4437 + $0xc0] sm:$0xf]
      %v4487 = vld [vmem:[%s4437 + $0xc4] sm:$0xf]
      %v4488 = vld [vmem:[%s4437 + $0xc8] sm:$0xf]
      %v4489 = vld [vmem:[%s4437 + $0xcc] sm:$0xf]
      %v4490 = vld [vmem:[%s4437 + $0xd0] sm:$0xf]
      %v4491 = vld [vmem:[%s4437 + $0xd4] sm:$0xf]
      %v4492 = vld [vmem:[%s4437 + $0xd8] sm:$0xf]
      %v4493 = vld [vmem:[%s4437 + $0xdc] sm:$0xf]
      %v4550 = vunpack.c.l.b16 %v4438
      %v4551 = vunpack.c.l.b16 %v4439
      %v4552 = vunpack.c.l.b16 %v4440
      %v4553 = vunpack.c.l.b16 %v4441
      %v4554 = vunpack.c.l.b16 %v4442
      %v4555 = vunpack.c.l.b16 %v4443
      %v4556 = vunpack.c.l.b16 %v4444
      %v4557 = vunpack.c.l.b16 %v4445
      %v4558 = vunpack.c.l.b16 %v4446
      %v4559 = vunpack.c.l.b16 %v4447
      %v4560 = vunpack.c.l.b16 %v4448
      %v4561 = vunpack.c.l.b16 %v4449
      %v4562 = vunpack.c.l.b16 %v4450
      %v4563 = vunpack.c.l.b16 %v4451
      %v4564 = vunpack.c.l.b16 %v4452
      %v4565 = vunpack.c.l.b16 %v4453
      %v4566 = vunpack.c.l.b16 %v4454
      %v4567 = vunpack.c.l.b16 %v4455
      %v4568 = vunpack.c.l.b16 %v4456
      %v4569 = vunpack.c.l.b16 %v4457
      %v4570 = vunpack.c.l.b16 %v4458
      %v4571 = vunpack.c.l.b16 %v4459
      %v4572 = vunpack.c.l.b16 %v4460
      %v4573 = vunpack.c.l.b16 %v4461
      %v4574 = vunpack.c.l.b16 %v4462
      %v4575 = vunpack.c.l.b16 %v4463
      %v4576 = vunpack.c.l.b16 %v4464
      %v4577 = vunpack.c.l.b16 %v4465
      %v4578 = vunpack.c.l.b16 %v4466
      %v4579 = vunpack.c.l.b16 %v4467
      %v4580 = vunpack.c.l.b16 %v4468
      %v4581 = vunpack.c.l.b16 %v4469
      %v4582 = vunpack.c.l.b16 %v4470
      %v4583 = vunpack.c.l.b16 %v4471
      %v4584 = vunpack.c.l.b16 %v4472
      %v4585 = vunpack.c.l.b16 %v4473
      %v4586 = vunpack.c.l.b16 %v4474
      %v4587 = vunpack.c.l.b16 %v4475
      %v4588 = vunpack.c.l.b16 %v4476
      %v4589 = vunpack.c.l.b16 %v4477
      %v4590 = vunpack.c.l.b16 %v4478
      %v4591 = vunpack.c.l.b16 %v4479
      %v4592 = vunpack.c.l.b16 %v4480
      %v4593 = vunpack.c.l.b16 %v4481
      %v4594 = vunpack.c.l.b16 %v4482
      %v4595 = vunpack.c.l.b16 %v4483
      %v4596 = vunpack.c.l.b16 %v4484
      %v4597 = vunpack.c.l.b16 %v4485
      %v4598 = vunpack.c.l.b16 %v4486
      %v4599 = vunpack.c.l.b16 %v4487
      %v4600 = vunpack.c.l.b16 %v4488
      %v4601 = vunpack.c.l.b16 %v4489
      %v4602 = vunpack.c.l.b16 %v4490
      %v4603 = vunpack.c.l.b16 %v4491
      %v4604 = vunpack.c.l.b16 %v4492
      %v4605 = vunpack.c.l.b16 %v4493
      %v4606 = vpack.c.b16 %v4551, %v4550
      %v4607 = vpack.c.b16 %v4553, %v4552
      %v4608 = vpack.c.b16 %v4555, %v4554
      %v4609 = vpack.c.b16 %v4557, %v4556
      %v4610 = vpack.c.b16 %v4559, %v4558
      %v4611 = vpack.c.b16 %v4561, %v4560
      %v4612 = vpack.c.b16 %v4563, %v4562
      %v4613 = vpack.c.b16 %v4565, %v4564
      %v4614 = vpack.c.b16 %v4567, %v4566
      %v4615 = vpack.c.b16 %v4569, %v4568
      %v4616 = vpack.c.b16 %v4571, %v4570
      %v4617 = vpack.c.b16 %v4573, %v4572
      %v4618 = vpack.c.b16 %v4575, %v4574
      %v4619 = vpack.c.b16 %v4577, %v4576
      %v4620 = vpack.c.b16 %v4579, %v4578
      %v4621 = vpack.c.b16 %v4581, %v4580
      %v4622 = vpack.c.b16 %v4583, %v4582
      %v4623 = vpack.c.b16 %v4585, %v4584
      %v4624 = vpack.c.b16 %v4587, %v4586
      %v4625 = vpack.c.b16 %v4589, %v4588
      %v4626 = vpack.c.b16 %v4591, %v4590
      %v4627 = vpack.c.b16 %v4593, %v4592
      %v4628 = vpack.c.b16 %v4595, %v4594
      %v4629 = vpack.c.b16 %v4597, %v4596
      %v4630 = vpack.c.b16 %v4599, %v4598
      %v4631 = vpack.c.b16 %v4601, %v4600
      %v4632 = vpack.c.b16 %v4603, %v4602
      %v4633 = vpack.c.b16 %v4605, %v4604
      %v4663 = vsel %vm1060, %v4425, 0
      %4665 = vmatprep.subr.bf16.mxu0 0
      %4666 = vmatpush1.bf16.msra.mxu0 %v4613
      %4667 = vmatprep.subr.bf16.mxu0 0
      %4668 = vmatpush1.bf16.msra.mxu0 %v4612
      %4669 = vmatprep.subr.bf16.mxu0 0
      %4670 = vmatpush1.bf16.msra.mxu0 %v4611
      %4671 = vmatprep.subr.bf16.mxu0 0
      %4672 = vmatpush1.bf16.msra.mxu0 %v4610
      %4673 = vmatprep.subr.bf16.mxu0 0
      %4674 = vmatpush1.bf16.msra.mxu0 %v4609
      %4675 = vmatprep.subr.bf16.mxu0 0
      %4676 = vmatpush1.bf16.msra.mxu0 %v4608
      %4677 = vmatprep.subr.bf16.mxu0 0
      %4678 = vmatpush1.bf16.msra.mxu0 %v4607
      %4679 = vmatprep.subr.bf16.mxu0 0
      %4680 = vmatpush1.bf16.msra.mxu0 %v4606
      %4681 = vmatprep.subr.bf16.mxu0 0
      %4682 = vmatpush2.bf16.msra.mxu0 %v4621
      %4683 = vmatprep.subr.bf16.mxu0 0
      %4684 = vmatpush2.bf16.msra.mxu0 %v4620
      %4685 = vmatprep.subr.bf16.mxu0 0
      %4686 = vmatpush2.bf16.msra.mxu0 %v4619
      %4687 = vmatprep.subr.bf16.mxu0 0
      %4688 = vmatpush2.bf16.msra.mxu0 %v4618
      %4689 = vmatprep.subr.bf16.mxu0 0
      %4690 = vmatpush2.bf16.msra.mxu0 %v4617
      %4691 = vmatprep.subr.bf16.mxu0 0
      %4692 = vmatpush2.bf16.msra.mxu0 %v4616
      %4693 = vmatprep.subr.bf16.mxu0 0
      %4694 = vmatpush2.bf16.msra.mxu0 %v4615
      %4695 = vmatprep.subr.bf16.mxu0 0
      %4696 = vmatpush2.bf16.msra.mxu0 %v4614
      %4697 = vmatprep.mubr.bf16.mxu0 %v1131
      %4698 = vmatmul.mubr.bf16.gmra.mxu0 %v1077
      %v4699 = vpop.f32.mrf.mxu0
      %v4700 = vadd.f32 0.0, %v4699
      %v4701 = vpop.f32.mrf.mxu0
      %v4702 = vpop.f32.mrf.mxu0
      %v4703 = vadd.f32 0.0, %v4702
      %v4704 = vpop.f32.mrf.mxu0
      %4705 = vmatprep.mubr.bf16.mxu0 %v1135
      %4706 = vmatmul.mubr.bf16.gmra.mxu0 %v1080
      %v4707 = vpop.f32.mrf.mxu0
      %v4708 = vadd.f32 0.0, %v4707
      %v4709 = vpop.f32.mrf.mxu0
      %v4710 = vpop.f32.mrf.mxu0
      %v4711 = vadd.f32 0.0, %v4710
      %v4712 = vpop.f32.mrf.mxu0
      %4713 = vmatprep.mubr.bf16.mxu0 %v1139
      %4714 = vmatmul.mubr.bf16.gmra.mxu0 %v1083
      %v4715 = vpop.f32.mrf.mxu0
      %v4716 = vadd.f32 0.0, %v4715
      %v4717 = vpop.f32.mrf.mxu0
      %v4718 = vpop.f32.mrf.mxu0
      %v4719 = vadd.f32 0.0, %v4718
      %v4720 = vpop.f32.mrf.mxu0
      %4721 = vmatprep.mubr.bf16.mxu0 %v1143
      %4722 = vmatmul.mubr.bf16.gmra.mxu0 %v1086
      %v4723 = vpop.f32.mrf.mxu0
      %v4724 = vadd.f32 0.0, %v4723
      %v4725 = vpop.f32.mrf.mxu0
      %v4726 = vpop.f32.mrf.mxu0
      %v4727 = vadd.f32 0.0, %v4726
      %v4728 = vpop.f32.mrf.mxu0
      %4729 = vmatprep.mubr.bf16.mxu0 %v1147
      %4730 = vmatmul.mubr.bf16.gmra.mxu0 %v1089
      %v4731 = vpop.f32.mrf.mxu0
      %v4732 = vadd.f32 0.0, %v4731
      %v4733 = vpop.f32.mrf.mxu0
      %v4734 = vpop.f32.mrf.mxu0
      %v4735 = vadd.f32 0.0, %v4734
      %v4736 = vpop.f32.mrf.mxu0
      %4737 = vmatprep.mubr.bf16.mxu0 %v1151
      %4738 = vmatmul.mubr.bf16.gmra.mxu0 %v1092
      %v4739 = vpop.f32.mrf.mxu0
      %v4740 = vadd.f32 0.0, %v4739
      %v4741 = vpop.f32.mrf.mxu0
      %v4742 = vpop.f32.mrf.mxu0
      %v4743 = vadd.f32 0.0, %v4742
      %v4744 = vpop.f32.mrf.mxu0
      %4745 = vmatprep.mubr.bf16.mxu0 %v1155
      %4746 = vmatmul.mubr.bf16.gmra.mxu0 %v1095
      %v4747 = vpop.f32.mrf.mxu0
      %v4748 = vadd.f32 0.0, %v4747
      %v4749 = vpop.f32.mrf.mxu0
      %v4750 = vpop.f32.mrf.mxu0
      %v4751 = vadd.f32 0.0, %v4750
      %v4752 = vpop.f32.mrf.mxu0
      %4753 = vmatprep.mubr.bf16.mxu0 %v1159
      %4754 = vmatmul.mubr.bf16.gmra.mxu0 %v1098
      %v4755 = vpop.f32.mrf.mxu0
      %v4756 = vadd.f32 0.0, %v4755
      %v4757 = vpop.f32.mrf.mxu0
      %v4758 = vpop.f32.mrf.mxu0
      %v4759 = vadd.f32 0.0, %v4758
      %v4760 = vpop.f32.mrf.mxu0
      %4761 = vmatprep.mubr.bf16.mxu0 %v1163
      %4762 = vmatmul.mubr.bf16.gmra.mxu0 %v1101
      %v4763 = vpop.f32.mrf.mxu0
      %v4764 = vadd.f32 0.0, %v4763
      %v4765 = vpop.f32.mrf.mxu0
      %v4766 = vpop.f32.mrf.mxu0
      %v4767 = vadd.f32 0.0, %v4766
      %v4768 = vpop.f32.mrf.mxu0
      %4769 = vmatprep.mubr.bf16.mxu0 %v1167
      %4770 = vmatmul.mubr.bf16.gmra.mxu0 %v1104
      %v4771 = vpop.f32.mrf.mxu0
      %v4772 = vadd.f32 0.0, %v4771
      %v4773 = vpop.f32.mrf.mxu0
      %v4774 = vpop.f32.mrf.mxu0
      %v4775 = vadd.f32 0.0, %v4774
      %v4776 = vpop.f32.mrf.mxu0
      %4777 = vmatprep.mubr.bf16.mxu0 %v1171
      %4778 = vmatmul.mubr.bf16.gmra.mxu0 %v1107
      %v4779 = vpop.f32.mrf.mxu0
      %v4780 = vadd.f32 0.0, %v4779
      %v4781 = vpop.f32.mrf.mxu0
      %v4782 = vpop.f32.mrf.mxu0
      %v4783 = vadd.f32 0.0, %v4782
      %v4784 = vpop.f32.mrf.mxu0
      %4785 = vmatprep.mubr.bf16.mxu0 %v1349
      %4786 = vmatmul.mubr.bf16.gmra.mxu0 %v1345
      %v4787 = vpop.f32.mrf.mxu0
      %v4788 = vadd.f32 0.0, %v4787
      %v4789 = vpop.f32.mrf.mxu0
      %v4790 = vpop.f32.mrf.mxu0
      %v4791 = vadd.f32 0.0, %v4790
      %v4792 = vpop.f32.mrf.mxu0
      %4793 = vmatprep.mubr.bf16.mxu0 %v2499
      %4794 = vmatmul.mubr.bf16.gmra.mxu0 %v2495
      %v4795 = vpop.f32.mrf.mxu0
      %v4796 = vadd.f32 0.0, %v4795
      %v4797 = vpop.f32.mrf.mxu0
      %v4798 = vpop.f32.mrf.mxu0
      %v4799 = vadd.f32 0.0, %v4798
      %v4800 = vpop.f32.mrf.mxu0
      %4801 = vmatprep.mubr.bf16.mxu0 %v3143
      %4802 = vmatmul.mubr.bf16.gmra.mxu0 %v3139
      %v4803 = vpop.f32.mrf.mxu0
      %v4804 = vadd.f32 0.0, %v4803
      %v4805 = vpop.f32.mrf.mxu0
      %v4806 = vpop.f32.mrf.mxu0
      %v4807 = vadd.f32 0.0, %v4806
      %v4808 = vpop.f32.mrf.mxu0
      %4809 = vmatprep.mubr.bf16.mxu0 %v3787
      %4810 = vmatmul.mubr.bf16.gmra.mxu0 %v3783
      %v4811 = vpop.f32.mrf.mxu0
      %v4812 = vadd.f32 0.0, %v4811
      %v4813 = vpop.f32.mrf.mxu0
      %v4814 = vpop.f32.mrf.mxu0
      %v4815 = vadd.f32 0.0, %v4814
      %v4816 = vpop.f32.mrf.mxu0
      %4817 = vmatprep.mubr.bf16.mxu0 %v4431
      %4818 = vmatmul.mubr.bf16.gmra.mxu0 %v4427
      %v4819 = vpop.f32.mrf.mxu0
      %v4820 = vadd.f32 0.0, %v4819
      %v4821 = vpop.f32.mrf.mxu0
      %v4822 = vpop.f32.mrf.mxu0
      %v4823 = vadd.f32 0.0, %v4822
      %v4824 = vpop.f32.mrf.mxu0
      %4825 = vdwg.mxu0
      %4826 = vmatprep.subr.bf16.mxu0 0
      %4827 = vmatpush1.bf16.msra.mxu0 %v4629
      %4828 = vmatprep.subr.bf16.mxu0 0
      %4829 = vmatpush1.bf16.msra.mxu0 %v4628
      %4830 = vmatprep.subr.bf16.mxu0 0
      %4831 = vmatpush1.bf16.msra.mxu0 %v4627
      %4832 = vmatprep.subr.bf16.mxu0 0
      %4833 = vmatpush1.bf16.msra.mxu0 %v4626
      %4834 = vmatprep.subr.bf16.mxu0 0
      %4835 = vmatpush1.bf16.msra.mxu0 %v4625
      %4836 = vmatprep.subr.bf16.mxu0 0
      %4837 = vmatpush1.bf16.msra.mxu0 %v4624
      %4838 = vmatprep.subr.bf16.mxu0 0
      %4839 = vmatpush1.bf16.msra.mxu0 %v4623
      %4840 = vmatprep.subr.bf16.mxu0 0
      %4841 = vmatpush1.bf16.msra.mxu0 %v4622
      %4842 = vmatprep.subr.bf16.mxu0 0
      %4843 = vmatpush2.bf16.msra.mxu0 0
      %4844 = vmatprep.subr.bf16.mxu0 0
      %4845 = vmatpush2.bf16.msra.mxu0 0
      %4846 = vmatprep.subr.bf16.mxu0 0
      %4847 = vmatpush2.bf16.msra.mxu0 0
      %4848 = vmatprep.subr.bf16.mxu0 0
      %4849 = vmatpush2.bf16.msra.mxu0 0
      %4850 = vmatprep.subr.bf16.mxu0 0
      %4851 = vmatpush2.bf16.msra.mxu0 %v4633
      %4852 = vmatprep.subr.bf16.mxu0 0
      %4853 = vmatpush2.bf16.msra.mxu0 %v4632
      %4854 = vmatprep.subr.bf16.mxu0 0
      %4855 = vmatpush2.bf16.msra.mxu0 %v4631
      %4856 = vmatprep.subr.bf16.mxu0 0
      %4857 = vmatpush2.bf16.msra.mxu0 %v4630
      %4858 = vmatprep.mubr.bf16.mxu0 %v1593
      %4859 = vmatmul.mubr.bf16.gmra.mxu0 %v1195
      %v4860 = vpop.f32.mrf.mxu0
      %v4861 = vadd.f32 %v4700, %v4860
      %v4862 = vpop.f32.mrf.mxu0
      %v4863 = vpop.f32.mrf.mxu0
      %v4864 = vadd.f32 %v4703, %v4863
      %v4865 = vpop.f32.mrf.mxu0
      %4866 = vmatprep.mubr.bf16.mxu0 %v1596
      %4867 = vmatmul.mubr.bf16.gmra.mxu0 %v1199
      %v4868 = vpop.f32.mrf.mxu0
      %v4869 = vadd.f32 %v4708, %v4868
      %v4870 = vpop.f32.mrf.mxu0
      %v4871 = vpop.f32.mrf.mxu0
      %v4872 = vadd.f32 %v4711, %v4871
      %v4873 = vpop.f32.mrf.mxu0
      %4874 = vmatprep.mubr.bf16.mxu0 %v1599
      %4875 = vmatmul.mubr.bf16.gmra.mxu0 %v1203
      %v4876 = vpop.f32.mrf.mxu0
      %v4877 = vadd.f32 %v4716, %v4876
      %v4878 = vpop.f32.mrf.mxu0
      %v4879 = vpop.f32.mrf.mxu0
      %v4880 = vadd.f32 %v4719, %v4879
      %v4881 = vpop.f32.mrf.mxu0
      %4882 = vmatprep.mubr.bf16.mxu0 %v1602
      %4883 = vmatmul.mubr.bf16.gmra.mxu0 %v1207
      %v4884 = vpop.f32.mrf.mxu0
      %v4885 = vadd.f32 %v4724, %v4884
      %v4886 = vpop.f32.mrf.mxu0
      %v4887 = vpop.f32.mrf.mxu0
      %v4888 = vadd.f32 %v4727, %v4887
      %v4889 = vpop.f32.mrf.mxu0
      %4890 = vmatprep.mubr.bf16.mxu0 %v1605
      %4891 = vmatmul.mubr.bf16.gmra.mxu0 %v1211
      %v4892 = vpop.f32.mrf.mxu0
      %v4893 = vadd.f32 %v4732, %v4892
      %v4894 = vpop.f32.mrf.mxu0
      %v4895 = vpop.f32.mrf.mxu0
      %v4896 = vadd.f32 %v4735, %v4895
      %v4897 = vpop.f32.mrf.mxu0
      %4898 = vmatprep.mubr.bf16.mxu0 %v1608
      %4899 = vmatmul.mubr.bf16.gmra.mxu0 %v1215
      %v4900 = vpop.f32.mrf.mxu0
      %v4901 = vadd.f32 %v4740, %v4900
      %v4902 = vpop.f32.mrf.mxu0
      %v4903 = vpop.f32.mrf.mxu0
      %v4904 = vadd.f32 %v4743, %v4903
      %v4905 = vpop.f32.mrf.mxu0
      %4906 = vmatprep.mubr.bf16.mxu0 %v1611
      %4907 = vmatmul.mubr.bf16.gmra.mxu0 %v1219
      %v4908 = vpop.f32.mrf.mxu0
      %v4909 = vadd.f32 %v4748, %v4908
      %v4910 = vpop.f32.mrf.mxu0
      %v4911 = vpop.f32.mrf.mxu0
      %v4912 = vadd.f32 %v4751, %v4911
      %v4913 = vpop.f32.mrf.mxu0
      %4914 = vmatprep.mubr.bf16.mxu0 %v1614
      %4915 = vmatmul.mubr.bf16.gmra.mxu0 %v1223
      %v4916 = vpop.f32.mrf.mxu0
      %v4917 = vadd.f32 %v4756, %v4916
      %v4918 = vpop.f32.mrf.mxu0
      %v4919 = vpop.f32.mrf.mxu0
      %v4920 = vadd.f32 %v4759, %v4919
      %v4921 = vpop.f32.mrf.mxu0
      %4922 = vmatprep.mubr.bf16.mxu0 %v1617
      %4923 = vmatmul.mubr.bf16.gmra.mxu0 %v1227
      %v4924 = vpop.f32.mrf.mxu0
      %v4925 = vadd.f32 %v4764, %v4924
      %v4926 = vpop.f32.mrf.mxu0
      %v4927 = vpop.f32.mrf.mxu0
      %v4928 = vadd.f32 %v4767, %v4927
      %v4929 = vpop.f32.mrf.mxu0
      %4930 = vmatprep.mubr.bf16.mxu0 %v1620
      %4931 = vmatmul.mubr.bf16.gmra.mxu0 %v1231
      %v4932 = vpop.f32.mrf.mxu0
      %v4933 = vadd.f32 %v4772, %v4932
      %v4934 = vpop.f32.mrf.mxu0
      %v4935 = vpop.f32.mrf.mxu0
      %v4936 = vadd.f32 %v4775, %v4935
      %v4937 = vpop.f32.mrf.mxu0
      %4938 = vmatprep.mubr.bf16.mxu0 %v1623
      %4939 = vmatmul.mubr.bf16.gmra.mxu0 %v1235
      %v4940 = vpop.f32.mrf.mxu0
      %v4941 = vadd.f32 %v4780, %v4940
      %v4942 = vpop.f32.mrf.mxu0
      %v4943 = vpop.f32.mrf.mxu0
      %v4944 = vadd.f32 %v4783, %v4943
      %v4945 = vpop.f32.mrf.mxu0
      %4946 = vmatprep.mubr.bf16.mxu0 %v1626
      %4947 = vmatmul.mubr.bf16.gmra.mxu0 %v1353
      %v4948 = vpop.f32.mrf.mxu0
      %v4949 = vadd.f32 %v4788, %v4948
      %v4950 = vpop.f32.mrf.mxu0
      %v4951 = vpop.f32.mrf.mxu0
      %v4952 = vadd.f32 %v4791, %v4951
      %v4953 = vpop.f32.mrf.mxu0
      %4954 = vmatprep.mubr.bf16.mxu0 %v2731
      %4955 = vmatmul.mubr.bf16.gmra.mxu0 %v2503
      %v4956 = vpop.f32.mrf.mxu0
      %v4957 = vadd.f32 %v4796, %v4956
      %v4958 = vpop.f32.mrf.mxu0
      %v4959 = vpop.f32.mrf.mxu0
      %v4960 = vadd.f32 %v4799, %v4959
      %v4961 = vpop.f32.mrf.mxu0
      %4962 = vmatprep.mubr.bf16.mxu0 %v3375
      %4963 = vmatmul.mubr.bf16.gmra.mxu0 %v3147
      %v4964 = vpop.f32.mrf.mxu0
      %v4965 = vadd.f32 %v4804, %v4964
      %v4966 = vpop.f32.mrf.mxu0
      %v4967 = vpop.f32.mrf.mxu0
      %v4968 = vadd.f32 %v4807, %v4967
      %v4969 = vpop.f32.mrf.mxu0
      %4970 = vmatprep.mubr.bf16.mxu0 %v4019
      %4971 = vmatmul.mubr.bf16.gmra.mxu0 %v3791
      %v4972 = vpop.f32.mrf.mxu0
      %v4973 = vadd.f32 %v4812, %v4972
      %v4974 = vpop.f32.mrf.mxu0
      %v4975 = vpop.f32.mrf.mxu0
      %v4976 = vadd.f32 %v4815, %v4975
      %v4977 = vpop.f32.mrf.mxu0
      %4978 = vmatprep.mubr.bf16.mxu0 %v4663
      %4979 = vmatmul.mubr.bf16.gmra.mxu0 %v4435
      %v4980 = vpop.f32.mrf.mxu0
      %v4981 = vadd.f32 %v4820, %v4980
      %v4982 = vpop.f32.mrf.mxu0
      %v4983 = vpop.f32.mrf.mxu0
      %v4984 = vadd.f32 %v4823, %v4983
      %v4985 = vpop.f32.mrf.mxu0
      %4986 = vdwg.mxu0
      %v4987 = vadd.f32 %v4343, %v4861
      %v4988 = vadd.f32 %v4344, %v4864
      %v4989 = vadd.f32 %v4345, %v4869
      %v4990 = vadd.f32 %v4346, %v4872
      %v4991 = vadd.f32 %v4347, %v4877
      %v4992 = vadd.f32 %v4348, %v4880
      %v4993 = vadd.f32 %v4349, %v4885
      %v4994 = vadd.f32 %v4350, %v4888
      %v4995 = vadd.f32 %v4351, %v4893
      %v4996 = vadd.f32 %v4352, %v4896
      %v4997 = vadd.f32 %v4353, %v4901
      %v4998 = vadd.f32 %v4354, %v4904
      %v4999 = vadd.f32 %v4355, %v4909
      %v5000 = vadd.f32 %v4356, %v4912
      %v5001 = vadd.f32 %v4357, %v4917
      %v5002 = vadd.f32 %v4358, %v4920
      %v5003 = vadd.f32 %v4359, %v4925
      %v5004 = vadd.f32 %v4360, %v4928
      %v5005 = vadd.f32 %v4361, %v4933
      %v5006 = vadd.f32 %v4362, %v4936
      %v5007 = vadd.f32 %v4363, %v4941
      %v5008 = vadd.f32 %v4364, %v4944
      %v5009 = vadd.f32 %v4365, %v4949
      %v5010 = vadd.f32 %v4366, %v4952
      %v5011 = vadd.f32 %v4367, %v4957
      %v5012 = vadd.f32 %v4368, %v4960
      %v5013 = vadd.f32 %v4369, %v4965
      %v5014 = vadd.f32 %v4370, %v4968
      %v5015 = vadd.f32 %v4371, %v4973
      %v5016 = vadd.f32 %v4372, %v4976
      %v5017 = vadd.f32 %v4373, %v4981
      %v5018 = vadd.f32 %v4374, %v4984
      %v5021 = vunpack.c.l.b16 %v235
      %v5022 = vunpack.c.l.b16 %v236
      %v5023 = vpack.c.b16 %v5022, %v5021
      %v5025 = vunpack.c.l.b16 %v237
      %v5026 = vpack.c.b16 %v5025, %v5025
      %v5028 = vshrl.u32 %v5023, 16
      %v5030 = vshll.u32 %v5023, 16
      %v5032 = vrot.slane %v5030, 1
      %v5033 = vor.u32 %v5028, %v5032
      %v5035 = vshll.u32 %v5026, 16
      %v5037 = vrot.slane %v5035, 1
      %v5038 = vsel %vm366, %v5033, %v5037
      %5039 = vrot.lane.b32.xlu0 %v5038, 64
      %v5040 = vpop.permute.xlu0 %5039
      %v5041 = vrot.slane %v5023, 1
      %v5042 = vrot.slane %v5026, 1
      %v5043 = vsel %vm591, %v5041, %v5042
      %v5044 = vrot.slane %v5028, 1
      %v5045 = vrot.slane %v5030, 2
      %v5046 = vor.u32 %v5044, %v5045
      %v5047 = vshrl.u32 %v5026, 16
      %v5049 = vrot.slane %v5047, 1
      %v5050 = vrot.slane %v5035, 2
      %v5051 = vor.u32 %v5049, %v5050
      %v5052 = vsel %vm640, %v5046, %v5051
      %5053 = vrot.lane.b32.xlu0 %v5052, 64
      %v5054 = vpop.permute.xlu0 %5053
      %v5055 = vrot.slane %v5023, 2
      %v5056 = vrot.slane %v5026, 2
      %v5057 = vsel %vm817, %v5055, %v5056
      %v5058 = vrot.slane %v5028, 2
      %v5059 = vrot.slane %v5030, 3
      %v5060 = vor.u32 %v5058, %v5059
      %v5061 = vrot.slane %v5047, 2
      %v5062 = vrot.slane %v5035, 3
      %v5063 = vor.u32 %v5061, %v5062
      %v5064 = vsel %vm866, %v5060, %v5063
      %5065 = vrot.lane.b32.xlu0 %v5064, 64
      %v5066 = vpop.permute.xlu0 %5065
      %v5067 = vrot.slane %v5023, 3
      %v5068 = vrot.slane %v5026, 3
      %v5069 = vsel %vm1011, %v5067, %v5068
      %v5071 = vsel %vm1060, %v5023, %v5040
      %v5075 = vsel %vm1060, %v5043, %v5054
      %v5079 = vsel %vm1060, %v5057, %v5066
      %s5081 = scalar_lea.vmem %s1, 1344
      %v5082 = vld [vmem:[%s5081] sm:$0xf]
      %v5083 = vld [vmem:[%s5081 + $0x4] sm:$0xf]
      %v5084 = vld [vmem:[%s5081 + $0x8] sm:$0xf]
      %v5085 = vld [vmem:[%s5081 + $0xc] sm:$0xf]
      %v5086 = vld [vmem:[%s5081 + $0x10] sm:$0xf]
      %v5087 = vld [vmem:[%s5081 + $0x14] sm:$0xf]
      %v5088 = vld [vmem:[%s5081 + $0x18] sm:$0xf]
      %v5089 = vld [vmem:[%s5081 + $0x1c] sm:$0xf]
      %v5090 = vld [vmem:[%s5081 + $0x20] sm:$0xf]
      %v5091 = vld [vmem:[%s5081 + $0x24] sm:$0xf]
      %v5092 = vld [vmem:[%s5081 + $0x28] sm:$0xf]
      %v5093 = vld [vmem:[%s5081 + $0x2c] sm:$0xf]
      %v5094 = vld [vmem:[%s5081 + $0x30] sm:$0xf]
      %v5095 = vld [vmem:[%s5081 + $0x34] sm:$0xf]
      %v5096 = vld [vmem:[%s5081 + $0x38] sm:$0xf]
      %v5097 = vld [vmem:[%s5081 + $0x3c] sm:$0xf]
      %v5098 = vld [vmem:[%s5081 + $0x40] sm:$0xf]
      %v5099 = vld [vmem:[%s5081 + $0x44] sm:$0xf]
      %v5100 = vld [vmem:[%s5081 + $0x48] sm:$0xf]
      %v5101 = vld [vmem:[%s5081 + $0x4c] sm:$0xf]
      %v5102 = vld [vmem:[%s5081 + $0x50] sm:$0xf]
      %v5103 = vld [vmem:[%s5081 + $0x54] sm:$0xf]
      %v5104 = vld [vmem:[%s5081 + $0x58] sm:$0xf]
      %v5105 = vld [vmem:[%s5081 + $0x5c] sm:$0xf]
      %v5106 = vld [vmem:[%s5081 + $0x60] sm:$0xf]
      %v5107 = vld [vmem:[%s5081 + $0x64] sm:$0xf]
      %v5108 = vld [vmem:[%s5081 + $0x68] sm:$0xf]
      %v5109 = vld [vmem:[%s5081 + $0x6c] sm:$0xf]
      %v5110 = vld [vmem:[%s5081 + $0x70] sm:$0xf]
      %v5111 = vld [vmem:[%s5081 + $0x74] sm:$0xf]
      %v5112 = vld [vmem:[%s5081 + $0x78] sm:$0xf]
      %v5113 = vld [vmem:[%s5081 + $0x7c] sm:$0xf]
      %v5114 = vld [vmem:[%s5081 + $0x80] sm:$0xf]
      %v5115 = vld [vmem:[%s5081 + $0x84] sm:$0xf]
      %v5116 = vld [vmem:[%s5081 + $0x88] sm:$0xf]
      %v5117 = vld [vmem:[%s5081 + $0x8c] sm:$0xf]
      %v5118 = vld [vmem:[%s5081 + $0x90] sm:$0xf]
      %v5119 = vld [vmem:[%s5081 + $0x94] sm:$0xf]
      %v5120 = vld [vmem:[%s5081 + $0x98] sm:$0xf]
      %v5121 = vld [vmem:[%s5081 + $0x9c] sm:$0xf]
      %v5122 = vld [vmem:[%s5081 + $0xa0] sm:$0xf]
      %v5123 = vld [vmem:[%s5081 + $0xa4] sm:$0xf]
      %v5124 = vld [vmem:[%s5081 + $0xa8] sm:$0xf]
      %v5125 = vld [vmem:[%s5081 + $0xac] sm:$0xf]
      %v5126 = vld [vmem:[%s5081 + $0xb0] sm:$0xf]
      %v5127 = vld [vmem:[%s5081 + $0xb4] sm:$0xf]
      %v5128 = vld [vmem:[%s5081 + $0xb8] sm:$0xf]
      %v5129 = vld [vmem:[%s5081 + $0xbc] sm:$0xf]
      %v5130 = vld [vmem:[%s5081 + $0xc0] sm:$0xf]
      %v5131 = vld [vmem:[%s5081 + $0xc4] sm:$0xf]
      %v5132 = vld [vmem:[%s5081 + $0xc8] sm:$0xf]
      %v5133 = vld [vmem:[%s5081 + $0xcc] sm:$0xf]
      %v5134 = vld [vmem:[%s5081 + $0xd0] sm:$0xf]
      %v5135 = vld [vmem:[%s5081 + $0xd4] sm:$0xf]
      %v5136 = vld [vmem:[%s5081 + $0xd8] sm:$0xf]
      %v5137 = vld [vmem:[%s5081 + $0xdc] sm:$0xf]
      %v5194 = vunpack.c.l.b16 %v5082
      %v5195 = vunpack.c.l.b16 %v5083
      %v5196 = vunpack.c.l.b16 %v5084
      %v5197 = vunpack.c.l.b16 %v5085
      %v5198 = vunpack.c.l.b16 %v5086
      %v5199 = vunpack.c.l.b16 %v5087
      %v5200 = vunpack.c.l.b16 %v5088
      %v5201 = vunpack.c.l.b16 %v5089
      %v5202 = vunpack.c.l.b16 %v5090
      %v5203 = vunpack.c.l.b16 %v5091
      %v5204 = vunpack.c.l.b16 %v5092
      %v5205 = vunpack.c.l.b16 %v5093
      %v5206 = vunpack.c.l.b16 %v5094
      %v5207 = vunpack.c.l.b16 %v5095
      %v5208 = vunpack.c.l.b16 %v5096
      %v5209 = vunpack.c.l.b16 %v5097
      %v5210 = vunpack.c.l.b16 %v5098
      %v5211 = vunpack.c.l.b16 %v5099
      %v5212 = vunpack.c.l.b16 %v5100
      %v5213 = vunpack.c.l.b16 %v5101
      %v5214 = vunpack.c.l.b16 %v5102
      %v5215 = vunpack.c.l.b16 %v5103
      %v5216 = vunpack.c.l.b16 %v5104
      %v5217 = vunpack.c.l.b16 %v5105
      %v5218 = vunpack.c.l.b16 %v5106
      %v5219 = vunpack.c.l.b16 %v5107
      %v5220 = vunpack.c.l.b16 %v5108
      %v5221 = vunpack.c.l.b16 %v5109
      %v5222 = vunpack.c.l.b16 %v5110
      %v5223 = vunpack.c.l.b16 %v5111
      %v5224 = vunpack.c.l.b16 %v5112
      %v5225 = vunpack.c.l.b16 %v5113
      %v5226 = vunpack.c.l.b16 %v5114
      %v5227 = vunpack.c.l.b16 %v5115
      %v5228 = vunpack.c.l.b16 %v5116
      %v5229 = vunpack.c.l.b16 %v5117
      %v5230 = vunpack.c.l.b16 %v5118
      %v5231 = vunpack.c.l.b16 %v5119
      %v5232 = vunpack.c.l.b16 %v5120
      %v5233 = vunpack.c.l.b16 %v5121
      %v5234 = vunpack.c.l.b16 %v5122
      %v5235 = vunpack.c.l.b16 %v5123
      %v5236 = vunpack.c.l.b16 %v5124
      %v5237 = vunpack.c.l.b16 %v5125
      %v5238 = vunpack.c.l.b16 %v5126
      %v5239 = vunpack.c.l.b16 %v5127
      %v5240 = vunpack.c.l.b16 %v5128
      %v5241 = vunpack.c.l.b16 %v5129
      %v5242 = vunpack.c.l.b16 %v5130
      %v5243 = vunpack.c.l.b16 %v5131
      %v5244 = vunpack.c.l.b16 %v5132
      %v5245 = vunpack.c.l.b16 %v5133
      %v5246 = vunpack.c.l.b16 %v5134
      %v5247 = vunpack.c.l.b16 %v5135
      %v5248 = vunpack.c.l.b16 %v5136
      %v5249 = vunpack.c.l.b16 %v5137
      %v5250 = vpack.c.b16 %v5195, %v5194
      %v5251 = vpack.c.b16 %v5197, %v5196
      %v5252 = vpack.c.b16 %v5199, %v5198
      %v5253 = vpack.c.b16 %v5201, %v5200
      %v5254 = vpack.c.b16 %v5203, %v5202
      %v5255 = vpack.c.b16 %v5205, %v5204
      %v5256 = vpack.c.b16 %v5207, %v5206
      %v5257 = vpack.c.b16 %v5209, %v5208
      %v5258 = vpack.c.b16 %v5211, %v5210
      %v5259 = vpack.c.b16 %v5213, %v5212
      %v5260 = vpack.c.b16 %v5215, %v5214
      %v5261 = vpack.c.b16 %v5217, %v5216
      %v5262 = vpack.c.b16 %v5219, %v5218
      %v5263 = vpack.c.b16 %v5221, %v5220
      %v5264 = vpack.c.b16 %v5223, %v5222
      %v5265 = vpack.c.b16 %v5225, %v5224
      %v5266 = vpack.c.b16 %v5227, %v5226
      %v5267 = vpack.c.b16 %v5229, %v5228
      %v5268 = vpack.c.b16 %v5231, %v5230
      %v5269 = vpack.c.b16 %v5233, %v5232
      %v5270 = vpack.c.b16 %v5235, %v5234
      %v5271 = vpack.c.b16 %v5237, %v5236
      %v5272 = vpack.c.b16 %v5239, %v5238
      %v5273 = vpack.c.b16 %v5241, %v5240
      %v5274 = vpack.c.b16 %v5243, %v5242
      %v5275 = vpack.c.b16 %v5245, %v5244
      %v5276 = vpack.c.b16 %v5247, %v5246
      %v5277 = vpack.c.b16 %v5249, %v5248
      %v5307 = vsel %vm1060, %v5069, 0
      %5309 = vmatprep.subr.bf16.mxu0 0
      %5310 = vmatpush1.bf16.msra.mxu0 %v5257
      %5311 = vmatprep.subr.bf16.mxu0 0
      %5312 = vmatpush1.bf16.msra.mxu0 %v5256
      %5313 = vmatprep.subr.bf16.mxu0 0
      %5314 = vmatpush1.bf16.msra.mxu0 %v5255
      %5315 = vmatprep.subr.bf16.mxu0 0
      %5316 = vmatpush1.bf16.msra.mxu0 %v5254
      %5317 = vmatprep.subr.bf16.mxu0 0
      %5318 = vmatpush1.bf16.msra.mxu0 %v5253
      %5319 = vmatprep.subr.bf16.mxu0 0
      %5320 = vmatpush1.bf16.msra.mxu0 %v5252
      %5321 = vmatprep.subr.bf16.mxu0 0
      %5322 = vmatpush1.bf16.msra.mxu0 %v5251
      %5323 = vmatprep.subr.bf16.mxu0 0
      %5324 = vmatpush1.bf16.msra.mxu0 %v5250
      %5325 = vmatprep.subr.bf16.mxu0 0
      %5326 = vmatpush2.bf16.msra.mxu0 %v5265
      %5327 = vmatprep.subr.bf16.mxu0 0
      %5328 = vmatpush2.bf16.msra.mxu0 %v5264
      %5329 = vmatprep.subr.bf16.mxu0 0
      %5330 = vmatpush2.bf16.msra.mxu0 %v5263
      %5331 = vmatprep.subr.bf16.mxu0 0
      %5332 = vmatpush2.bf16.msra.mxu0 %v5262
      %5333 = vmatprep.subr.bf16.mxu0 0
      %5334 = vmatpush2.bf16.msra.mxu0 %v5261
      %5335 = vmatprep.subr.bf16.mxu0 0
      %5336 = vmatpush2.bf16.msra.mxu0 %v5260
      %5337 = vmatprep.subr.bf16.mxu0 0
      %5338 = vmatpush2.bf16.msra.mxu0 %v5259
      %5339 = vmatprep.subr.bf16.mxu0 0
      %5340 = vmatpush2.bf16.msra.mxu0 %v5258
      %5341 = vmatprep.mubr.bf16.mxu0 %v1135
      %5342 = vmatmul.mubr.bf16.gmra.mxu0 %v1080
      %v5343 = vpop.f32.mrf.mxu0
      %v5344 = vadd.f32 0.0, %v5343
      %v5345 = vpop.f32.mrf.mxu0
      %v5346 = vpop.f32.mrf.mxu0
      %v5347 = vadd.f32 0.0, %v5346
      %v5348 = vpop.f32.mrf.mxu0
      %5349 = vmatprep.mubr.bf16.mxu0 %v1139
      %5350 = vmatmul.mubr.bf16.gmra.mxu0 %v1083
      %v5351 = vpop.f32.mrf.mxu0
      %v5352 = vadd.f32 0.0, %v5351
      %v5353 = vpop.f32.mrf.mxu0
      %v5354 = vpop.f32.mrf.mxu0
      %v5355 = vadd.f32 0.0, %v5354
      %v5356 = vpop.f32.mrf.mxu0
      %5357 = vmatprep.mubr.bf16.mxu0 %v1143
      %5358 = vmatmul.mubr.bf16.gmra.mxu0 %v1086
      %v5359 = vpop.f32.mrf.mxu0
      %v5360 = vadd.f32 0.0, %v5359
      %v5361 = vpop.f32.mrf.mxu0
      %v5362 = vpop.f32.mrf.mxu0
      %v5363 = vadd.f32 0.0, %v5362
      %v5364 = vpop.f32.mrf.mxu0
      %5365 = vmatprep.mubr.bf16.mxu0 %v1147
      %5366 = vmatmul.mubr.bf16.gmra.mxu0 %v1089
      %v5367 = vpop.f32.mrf.mxu0
      %v5368 = vadd.f32 0.0, %v5367
      %v5369 = vpop.f32.mrf.mxu0
      %v5370 = vpop.f32.mrf.mxu0
      %v5371 = vadd.f32 0.0, %v5370
      %v5372 = vpop.f32.mrf.mxu0
      %5373 = vmatprep.mubr.bf16.mxu0 %v1151
      %5374 = vmatmul.mubr.bf16.gmra.mxu0 %v1092
      %v5375 = vpop.f32.mrf.mxu0
      %v5376 = vadd.f32 0.0, %v5375
      %v5377 = vpop.f32.mrf.mxu0
      %v5378 = vpop.f32.mrf.mxu0
      %v5379 = vadd.f32 0.0, %v5378
      %v5380 = vpop.f32.mrf.mxu0
      %5381 = vmatprep.mubr.bf16.mxu0 %v1155
      %5382 = vmatmul.mubr.bf16.gmra.mxu0 %v1095
      %v5383 = vpop.f32.mrf.mxu0
      %v5384 = vadd.f32 0.0, %v5383
      %v5385 = vpop.f32.mrf.mxu0
      %v5386 = vpop.f32.mrf.mxu0
      %v5387 = vadd.f32 0.0, %v5386
      %v5388 = vpop.f32.mrf.mxu0
      %5389 = vmatprep.mubr.bf16.mxu0 %v1159
      %5390 = vmatmul.mubr.bf16.gmra.mxu0 %v1098
      %v5391 = vpop.f32.mrf.mxu0
      %v5392 = vadd.f32 0.0, %v5391
      %v5393 = vpop.f32.mrf.mxu0
      %v5394 = vpop.f32.mrf.mxu0
      %v5395 = vadd.f32 0.0, %v5394
      %v5396 = vpop.f32.mrf.mxu0
      %5397 = vmatprep.mubr.bf16.mxu0 %v1163
      %5398 = vmatmul.mubr.bf16.gmra.mxu0 %v1101
      %v5399 = vpop.f32.mrf.mxu0
      %v5400 = vadd.f32 0.0, %v5399
      %v5401 = vpop.f32.mrf.mxu0
      %v5402 = vpop.f32.mrf.mxu0
      %v5403 = vadd.f32 0.0, %v5402
      %v5404 = vpop.f32.mrf.mxu0
      %5405 = vmatprep.mubr.bf16.mxu0 %v1167
      %5406 = vmatmul.mubr.bf16.gmra.mxu0 %v1104
      %v5407 = vpop.f32.mrf.mxu0
      %v5408 = vadd.f32 0.0, %v5407
      %v5409 = vpop.f32.mrf.mxu0
      %v5410 = vpop.f32.mrf.mxu0
      %v5411 = vadd.f32 0.0, %v5410
      %v5412 = vpop.f32.mrf.mxu0
      %5413 = vmatprep.mubr.bf16.mxu0 %v1171
      %5414 = vmatmul.mubr.bf16.gmra.mxu0 %v1107
      %v5415 = vpop.f32.mrf.mxu0
      %v5416 = vadd.f32 0.0, %v5415
      %v5417 = vpop.f32.mrf.mxu0
      %v5418 = vpop.f32.mrf.mxu0
      %v5419 = vadd.f32 0.0, %v5418
      %v5420 = vpop.f32.mrf.mxu0
      %5421 = vmatprep.mubr.bf16.mxu0 %v1349
      %5422 = vmatmul.mubr.bf16.gmra.mxu0 %v1345
      %v5423 = vpop.f32.mrf.mxu0
      %v5424 = vadd.f32 0.0, %v5423
      %v5425 = vpop.f32.mrf.mxu0
      %v5426 = vpop.f32.mrf.mxu0
      %v5427 = vadd.f32 0.0, %v5426
      %v5428 = vpop.f32.mrf.mxu0
      %5429 = vmatprep.mubr.bf16.mxu0 %v2499
      %5430 = vmatmul.mubr.bf16.gmra.mxu0 %v2495
      %v5431 = vpop.f32.mrf.mxu0
      %v5432 = vadd.f32 0.0, %v5431
      %v5433 = vpop.f32.mrf.mxu0
      %v5434 = vpop.f32.mrf.mxu0
      %v5435 = vadd.f32 0.0, %v5434
      %v5436 = vpop.f32.mrf.mxu0
      %5437 = vmatprep.mubr.bf16.mxu0 %v3143
      %5438 = vmatmul.mubr.bf16.gmra.mxu0 %v3139
      %v5439 = vpop.f32.mrf.mxu0
      %v5440 = vadd.f32 0.0, %v5439
      %v5441 = vpop.f32.mrf.mxu0
      %v5442 = vpop.f32.mrf.mxu0
      %v5443 = vadd.f32 0.0, %v5442
      %v5444 = vpop.f32.mrf.mxu0
      %5445 = vmatprep.mubr.bf16.mxu0 %v3787
      %5446 = vmatmul.mubr.bf16.gmra.mxu0 %v3783
      %v5447 = vpop.f32.mrf.mxu0
      %v5448 = vadd.f32 0.0, %v5447
      %v5449 = vpop.f32.mrf.mxu0
      %v5450 = vpop.f32.mrf.mxu0
      %v5451 = vadd.f32 0.0, %v5450
      %v5452 = vpop.f32.mrf.mxu0
      %5453 = vmatprep.mubr.bf16.mxu0 %v4431
      %5454 = vmatmul.mubr.bf16.gmra.mxu0 %v4427
      %v5455 = vpop.f32.mrf.mxu0
      %v5456 = vadd.f32 0.0, %v5455
      %v5457 = vpop.f32.mrf.mxu0
      %v5458 = vpop.f32.mrf.mxu0
      %v5459 = vadd.f32 0.0, %v5458
      %v5460 = vpop.f32.mrf.mxu0
      %5461 = vmatprep.mubr.bf16.mxu0 %v5075
      %5462 = vmatmul.mubr.bf16.gmra.mxu0 %v5071
      %v5463 = vpop.f32.mrf.mxu0
      %v5464 = vadd.f32 0.0, %v5463
      %v5465 = vpop.f32.mrf.mxu0
      %v5466 = vpop.f32.mrf.mxu0
      %v5467 = vadd.f32 0.0, %v5466
      %v5468 = vpop.f32.mrf.mxu0
      %5469 = vdwg.mxu0
      %5470 = vmatprep.subr.bf16.mxu0 0
      %5471 = vmatpush1.bf16.msra.mxu0 %v5273
      %5472 = vmatprep.subr.bf16.mxu0 0
      %5473 = vmatpush1.bf16.msra.mxu0 %v5272
      %5474 = vmatprep.subr.bf16.mxu0 0
      %5475 = vmatpush1.bf16.msra.mxu0 %v5271
      %5476 = vmatprep.subr.bf16.mxu0 0
      %5477 = vmatpush1.bf16.msra.mxu0 %v5270
      %5478 = vmatprep.subr.bf16.mxu0 0
      %5479 = vmatpush1.bf16.msra.mxu0 %v5269
      %5480 = vmatprep.subr.bf16.mxu0 0
      %5481 = vmatpush1.bf16.msra.mxu0 %v5268
      %5482 = vmatprep.subr.bf16.mxu0 0
      %5483 = vmatpush1.bf16.msra.mxu0 %v5267
      %5484 = vmatprep.subr.bf16.mxu0 0
      %5485 = vmatpush1.bf16.msra.mxu0 %v5266
      %5486 = vmatprep.subr.bf16.mxu0 0
      %5487 = vmatpush2.bf16.msra.mxu0 0
      %5488 = vmatprep.subr.bf16.mxu0 0
      %5489 = vmatpush2.bf16.msra.mxu0 0
      %5490 = vmatprep.subr.bf16.mxu0 0
      %5491 = vmatpush2.bf16.msra.mxu0 0
      %5492 = vmatprep.subr.bf16.mxu0 0
      %5493 = vmatpush2.bf16.msra.mxu0 0
      %5494 = vmatprep.subr.bf16.mxu0 0
      %5495 = vmatpush2.bf16.msra.mxu0 %v5277
      %5496 = vmatprep.subr.bf16.mxu0 0
      %5497 = vmatpush2.bf16.msra.mxu0 %v5276
      %5498 = vmatprep.subr.bf16.mxu0 0
      %5499 = vmatpush2.bf16.msra.mxu0 %v5275
      %5500 = vmatprep.subr.bf16.mxu0 0
      %5501 = vmatpush2.bf16.msra.mxu0 %v5274
      %5502 = vmatprep.mubr.bf16.mxu0 %v1596
      %5503 = vmatmul.mubr.bf16.gmra.mxu0 %v1199
      %v5504 = vpop.f32.mrf.mxu0
      %v5505 = vadd.f32 %v5344, %v5504
      %v5506 = vpop.f32.mrf.mxu0
      %v5507 = vpop.f32.mrf.mxu0
      %v5508 = vadd.f32 %v5347, %v5507
      %v5509 = vpop.f32.mrf.mxu0
      %5510 = vmatprep.mubr.bf16.mxu0 %v1599
      %5511 = vmatmul.mubr.bf16.gmra.mxu0 %v1203
      %v5512 = vpop.f32.mrf.mxu0
      %v5513 = vadd.f32 %v5352, %v5512
      %v5514 = vpop.f32.mrf.mxu0
      %v5515 = vpop.f32.mrf.mxu0
      %v5516 = vadd.f32 %v5355, %v5515
      %v5517 = vpop.f32.mrf.mxu0
      %5518 = vmatprep.mubr.bf16.mxu0 %v1602
      %5519 = vmatmul.mubr.bf16.gmra.mxu0 %v1207
      %v5520 = vpop.f32.mrf.mxu0
      %v5521 = vadd.f32 %v5360, %v5520
      %v5522 = vpop.f32.mrf.mxu0
      %v5523 = vpop.f32.mrf.mxu0
      %v5524 = vadd.f32 %v5363, %v5523
      %v5525 = vpop.f32.mrf.mxu0
      %5526 = vmatprep.mubr.bf16.mxu0 %v1605
      %5527 = vmatmul.mubr.bf16.gmra.mxu0 %v1211
      %v5528 = vpop.f32.mrf.mxu0
      %v5529 = vadd.f32 %v5368, %v5528
      %v5530 = vpop.f32.mrf.mxu0
      %v5531 = vpop.f32.mrf.mxu0
      %v5532 = vadd.f32 %v5371, %v5531
      %v5533 = vpop.f32.mrf.mxu0
      %5534 = vmatprep.mubr.bf16.mxu0 %v1608
      %5535 = vmatmul.mubr.bf16.gmra.mxu0 %v1215
      %v5536 = vpop.f32.mrf.mxu0
      %v5537 = vadd.f32 %v5376, %v5536
      %v5538 = vpop.f32.mrf.mxu0
      %v5539 = vpop.f32.mrf.mxu0
      %v5540 = vadd.f32 %v5379, %v5539
      %v5541 = vpop.f32.mrf.mxu0
      %5542 = vmatprep.mubr.bf16.mxu0 %v1611
      %5543 = vmatmul.mubr.bf16.gmra.mxu0 %v1219
      %v5544 = vpop.f32.mrf.mxu0
      %v5545 = vadd.f32 %v5384, %v5544
      %v5546 = vpop.f32.mrf.mxu0
      %v5547 = vpop.f32.mrf.mxu0
      %v5548 = vadd.f32 %v5387, %v5547
      %v5549 = vpop.f32.mrf.mxu0
      %5550 = vmatprep.mubr.bf16.mxu0 %v1614
      %5551 = vmatmul.mubr.bf16.gmra.mxu0 %v1223
      %v5552 = vpop.f32.mrf.mxu0
      %v5553 = vadd.f32 %v5392, %v5552
      %v5554 = vpop.f32.mrf.mxu0
      %v5555 = vpop.f32.mrf.mxu0
      %v5556 = vadd.f32 %v5395, %v5555
      %v5557 = vpop.f32.mrf.mxu0
      %5558 = vmatprep.mubr.bf16.mxu0 %v1617
      %5559 = vmatmul.mubr.bf16.gmra.mxu0 %v1227
      %v5560 = vpop.f32.mrf.mxu0
      %v5561 = vadd.f32 %v5400, %v5560
      %v5562 = vpop.f32.mrf.mxu0
      %v5563 = vpop.f32.mrf.mxu0
      %v5564 = vadd.f32 %v5403, %v5563
      %v5565 = vpop.f32.mrf.mxu0
      %5566 = vmatprep.mubr.bf16.mxu0 %v1620
      %5567 = vmatmul.mubr.bf16.gmra.mxu0 %v1231
      %v5568 = vpop.f32.mrf.mxu0
      %v5569 = vadd.f32 %v5408, %v5568
      %v5570 = vpop.f32.mrf.mxu0
      %v5571 = vpop.f32.mrf.mxu0
      %v5572 = vadd.f32 %v5411, %v5571
      %v5573 = vpop.f32.mrf.mxu0
      %5574 = vmatprep.mubr.bf16.mxu0 %v1623
      %5575 = vmatmul.mubr.bf16.gmra.mxu0 %v1235
      %v5576 = vpop.f32.mrf.mxu0
      %v5577 = vadd.f32 %v5416, %v5576
      %v5578 = vpop.f32.mrf.mxu0
      %v5579 = vpop.f32.mrf.mxu0
      %v5580 = vadd.f32 %v5419, %v5579
      %v5581 = vpop.f32.mrf.mxu0
      %5582 = vmatprep.mubr.bf16.mxu0 %v1626
      %5583 = vmatmul.mubr.bf16.gmra.mxu0 %v1353
      %v5584 = vpop.f32.mrf.mxu0
      %v5585 = vadd.f32 %v5424, %v5584
      %v5586 = vpop.f32.mrf.mxu0
      %v5587 = vpop.f32.mrf.mxu0
      %v5588 = vadd.f32 %v5427, %v5587
      %v5589 = vpop.f32.mrf.mxu0
      %5590 = vmatprep.mubr.bf16.mxu0 %v2731
      %5591 = vmatmul.mubr.bf16.gmra.mxu0 %v2503
      %v5592 = vpop.f32.mrf.mxu0
      %v5593 = vadd.f32 %v5432, %v5592
      %v5594 = vpop.f32.mrf.mxu0
      %v5595 = vpop.f32.mrf.mxu0
      %v5596 = vadd.f32 %v5435, %v5595
      %v5597 = vpop.f32.mrf.mxu0
      %5598 = vmatprep.mubr.bf16.mxu0 %v3375
      %5599 = vmatmul.mubr.bf16.gmra.mxu0 %v3147
      %v5600 = vpop.f32.mrf.mxu0
      %v5601 = vadd.f32 %v5440, %v5600
      %v5602 = vpop.f32.mrf.mxu0
      %v5603 = vpop.f32.mrf.mxu0
      %v5604 = vadd.f32 %v5443, %v5603
      %v5605 = vpop.f32.mrf.mxu0
      %5606 = vmatprep.mubr.bf16.mxu0 %v4019
      %5607 = vmatmul.mubr.bf16.gmra.mxu0 %v3791
      %v5608 = vpop.f32.mrf.mxu0
      %v5609 = vadd.f32 %v5448, %v5608
      %v5610 = vpop.f32.mrf.mxu0
      %v5611 = vpop.f32.mrf.mxu0
      %v5612 = vadd.f32 %v5451, %v5611
      %v5613 = vpop.f32.mrf.mxu0
      %5614 = vmatprep.mubr.bf16.mxu0 %v4663
      %5615 = vmatmul.mubr.bf16.gmra.mxu0 %v4435
      %v5616 = vpop.f32.mrf.mxu0
      %v5617 = vadd.f32 %v5456, %v5616
      %v5618 = vpop.f32.mrf.mxu0
      %v5619 = vpop.f32.mrf.mxu0
      %v5620 = vadd.f32 %v5459, %v5619
      %v5621 = vpop.f32.mrf.mxu0
      %5622 = vmatprep.mubr.bf16.mxu0 %v5307
      %5623 = vmatmul.mubr.bf16.gmra.mxu0 %v5079
      %v5624 = vpop.f32.mrf.mxu0
      %v5625 = vadd.f32 %v5464, %v5624
      %v5626 = vpop.f32.mrf.mxu0
      %v5627 = vpop.f32.mrf.mxu0
      %v5628 = vadd.f32 %v5467, %v5627
      %v5629 = vpop.f32.mrf.mxu0
      %5630 = vdwg.mxu0
      %v5631 = vadd.f32 %v4987, %v5505
      %v5632 = vadd.f32 %v4988, %v5508
      %v5633 = vadd.f32 %v4989, %v5513
      %v5634 = vadd.f32 %v4990, %v5516
      %v5635 = vadd.f32 %v4991, %v5521
      %v5636 = vadd.f32 %v4992, %v5524
      %v5637 = vadd.f32 %v4993, %v5529
      %v5638 = vadd.f32 %v4994, %v5532
      %v5639 = vadd.f32 %v4995, %v5537
      %v5640 = vadd.f32 %v4996, %v5540
      %v5641 = vadd.f32 %v4997, %v5545
      %v5642 = vadd.f32 %v4998, %v5548
      %v5643 = vadd.f32 %v4999, %v5553
      %v5644 = vadd.f32 %v5000, %v5556
      %v5645 = vadd.f32 %v5001, %v5561
      %v5646 = vadd.f32 %v5002, %v5564
      %v5647 = vadd.f32 %v5003, %v5569
      %v5648 = vadd.f32 %v5004, %v5572
      %v5649 = vadd.f32 %v5005, %v5577
      %v5650 = vadd.f32 %v5006, %v5580
      %v5651 = vadd.f32 %v5007, %v5585
      %v5652 = vadd.f32 %v5008, %v5588
      %v5653 = vadd.f32 %v5009, %v5593
      %v5654 = vadd.f32 %v5010, %v5596
      %v5655 = vadd.f32 %v5011, %v5601
      %v5656 = vadd.f32 %v5012, %v5604
      %v5657 = vadd.f32 %v5013, %v5609
      %v5658 = vadd.f32 %v5014, %v5612
      %v5659 = vadd.f32 %v5015, %v5617
      %v5660 = vadd.f32 %v5016, %v5620
      %v5661 = vadd.f32 %v5017, %v5625
      %v5662 = vadd.f32 %v5018, %v5628
      %v5663 = vld [vmem:[%s2] sm:$0x1]
      %v5665 = vlaneseq
      %v5666 = vshrl.u32 %v5665, 7
      %v5667 = vsub.s32 0, %v5666
      %v5668 = vrot.slane %v5663, %v5667
      %v5670 = vadd.f32 %v5631, %v5668
      %v5671 = vadd.f32 %v5632, %v5668
      %v5672 = vadd.f32 %v5633, %v5668
      %v5673 = vadd.f32 %v5634, %v5668
      %v5674 = vadd.f32 %v5635, %v5668
      %v5675 = vadd.f32 %v5636, %v5668
      %v5676 = vadd.f32 %v5637, %v5668
      %v5677 = vadd.f32 %v5638, %v5668
      %v5678 = vadd.f32 %v5639, %v5668
      %v5679 = vadd.f32 %v5640, %v5668
      %v5680 = vadd.f32 %v5641, %v5668
      %v5681 = vadd.f32 %v5642, %v5668
      %v5682 = vadd.f32 %v5643, %v5668
      %v5683 = vadd.f32 %v5644, %v5668
      %v5684 = vadd.f32 %v5645, %v5668
      %v5685 = vadd.f32 %v5646, %v5668
      %v5686 = vadd.f32 %v5647, %v5668
      %v5687 = vadd.f32 %v5648, %v5668
      %v5688 = vadd.f32 %v5649, %v5668
      %v5689 = vadd.f32 %v5650, %v5668
      %v5690 = vadd.f32 %v5651, %v5668
      %v5691 = vadd.f32 %v5652, %v5668
      %v5692 = vadd.f32 %v5653, %v5668
      %v5693 = vadd.f32 %v5654, %v5668
      %v5694 = vadd.f32 %v5655, %v5668
      %v5695 = vadd.f32 %v5656, %v5668
      %v5696 = vadd.f32 %v5657, %v5668
      %v5697 = vadd.f32 %v5658, %v5668
      %v5698 = vadd.f32 %v5659, %v5668
      %v5699 = vadd.f32 %v5660, %v5668
      %v5700 = vadd.f32 %v5661, %v5668
      %v5701 = vadd.f32 %v5662, %v5668
      %v5702 = vtanh.pop %v5670
      %v5703 = vtanh.pop %v5671
      %v5704 = vtanh.pop %v5672
      %v5705 = vtanh.pop %v5673
      %v5706 = vtanh.pop %v5674
      %v5707 = vtanh.pop %v5675
      %v5708 = vtanh.pop %v5676
      %v5709 = vtanh.pop %v5677
      %v5710 = vtanh.pop %v5678
      %v5711 = vtanh.pop %v5679
      %v5712 = vtanh.pop %v5680
      %v5713 = vtanh.pop %v5681
      %v5714 = vtanh.pop %v5682
      %v5715 = vtanh.pop %v5683
      %v5716 = vtanh.pop %v5684
      %v5717 = vtanh.pop %v5685
      %v5718 = vtanh.pop %v5686
      %v5719 = vtanh.pop %v5687
      %v5720 = vtanh.pop %v5688
      %v5721 = vtanh.pop %v5689
      %v5722 = vtanh.pop %v5690
      %v5723 = vtanh.pop %v5691
      %v5724 = vtanh.pop %v5692
      %v5725 = vtanh.pop %v5693
      %v5726 = vtanh.pop %v5694
      %v5727 = vtanh.pop %v5695
      %v5728 = vtanh.pop %v5696
      %v5729 = vtanh.pop %v5697
      %v5730 = vtanh.pop %v5698
      %v5731 = vtanh.pop %v5699
      %v5732 = vtanh.pop %v5700
      %v5733 = vtanh.pop %v5701
      %vm5734 = vcmask 23552
      %5735 = vst.msk [vmem:[%s170] sm:$0xff] %vm5734, %v5702
      %5736 = vst.msk [vmem:[%s170 + $0x8] sm:$0xff] %vm5734, %v5703
      %5737 = vst.msk [vmem:[%s170 + $0x10] sm:$0xff] %vm5734, %v5704
      %5738 = vst.msk [vmem:[%s170 + $0x18] sm:$0xff] %vm5734, %v5705
      %5739 = vst.msk [vmem:[%s170 + $0x20] sm:$0xff] %vm5734, %v5706
      %5740 = vst.msk [vmem:[%s170 + $0x28] sm:$0xff] %vm5734, %v5707
      %5741 = vst.msk [vmem:[%s170 + $0x30] sm:$0xff] %vm5734, %v5708
      %5742 = vst.msk [vmem:[%s170 + $0x38] sm:$0xff] %vm5734, %v5709
      %5743 = vst.msk [vmem:[%s170 + $0x40] sm:$0xff] %vm5734, %v5710
      %5744 = vst.msk [vmem:[%s170 + $0x48] sm:$0xff] %vm5734, %v5711
      %5745 = vst.msk [vmem:[%s170 + $0x50] sm:$0xff] %vm5734, %v5712
      %5746 = vst.msk [vmem:[%s170 + $0x58] sm:$0xff] %vm5734, %v5713
      %5747 = vst.msk [vmem:[%s170 + $0x60] sm:$0xff] %vm5734, %v5714
      %5748 = vst.msk [vmem:[%s170 + $0x68] sm:$0xff] %vm5734, %v5715
      %5749 = vst.msk [vmem:[%s170 + $0x70] sm:$0xff] %vm5734, %v5716
      %5750 = vst.msk [vmem:[%s170 + $0x78] sm:$0xff] %vm5734, %v5717
      %5751 = vst.msk [vmem:[%s170 + $0x80] sm:$0xff] %vm5734, %v5718
      %5752 = vst.msk [vmem:[%s170 + $0x88] sm:$0xff] %vm5734, %v5719
      %5753 = vst.msk [vmem:[%s170 + $0x90] sm:$0xff] %vm5734, %v5720
      %5754 = vst.msk [vmem:[%s170 + $0x98] sm:$0xff] %vm5734, %v5721
      %5755 = vst.msk [vmem:[%s170 + $0xa0] sm:$0xff] %vm5734, %v5722
      %5756 = vst.msk [vmem:[%s170 + $0xa8] sm:$0xff] %vm5734, %v5723
      %5757 = vst.msk [vmem:[%s170 + $0xb0] sm:$0xff] %vm5734, %v5724
      %5758 = vst.msk [vmem:[%s170 + $0xb8] sm:$0xff] %vm5734, %v5725
      %5759 = vst.msk [vmem:[%s170 + $0xc0] sm:$0xff] %vm5734, %v5726
      %5760 = vst.msk [vmem:[%s170 + $0xc8] sm:$0xff] %vm5734, %v5727
      %5761 = vst.msk [vmem:[%s170 + $0xd0] sm:$0xff] %vm5734, %v5728
      %5762 = vst.msk [vmem:[%s170 + $0xd8] sm:$0xff] %vm5734, %v5729
      %5763 = vst.msk [vmem:[%s170 + $0xe0] sm:$0xff] %vm5734, %v5730
      %5764 = vst.msk [vmem:[%s170 + $0xe8] sm:$0xff] %vm5734, %v5731
      %5765 = vst.msk [vmem:[%s170 + $0xf0] sm:$0xff] %vm5734, %v5732
      %5766 = vst.msk [vmem:[%s170 + $0xf8] sm:$0xff] %vm5734, %v5733
      %p5767 = scmp.lt.s32.totalorder %s14, 1
      %s5768 = scalar_select %p5767, %s14, 1
      %s5769 = smul.addr %s5768, 32
      %s5770 = smul.addr %s5769, 8
      %s5771 = scalar_lea.vmem %s3, %s5770
      // Predicated region
      $region33: #{decoder_generator_forward.1} parent=31 // pred_check
        %p5772 = pneg %p100
      $region34: #{decoder_generator_forward.1} parent=31 // pred_check_branch
        %5774 = sbr.rel (%p5772) target = $region36
      $region35: #{decoder_generator_forward.1} parent=31 // pred_region
        _
      $region36: #{decoder_generator_forward.1} parent=31 // pred_fallthru
        _
    $region32: #{decoder_generator_forward.1} parent=5 // pred_fallthru
      _
    %p5775 = scmp.le.s32.totalorder 2, %s9
    // Predicated region
    $region37: #{decoder_generator_forward.1} parent=5 // pred_check
      %p5776 = pneg %p5775
    $region38: #{decoder_generator_forward.1} parent=5 // pred_check_branch
      %5778 = sbr.rel (%p5776) target = $region40
    $region39: #{decoder_generator_forward.1} parent=5 // pred_region
      %s5779 = ssub.s32 %s9, 2
      // Predicated region
      $region41: #{decoder_generator_forward.1} parent=39 // pred_check
        %p5780 = pneg %p106
      $region42: #{decoder_generator_forward.1} parent=39 // pred_check_branch
        %5782 = sbr.rel (%p5780) target = $region44
      $region43: #{decoder_generator_forward.1} parent=39 // pred_region
        %p5783 = scmp.lt.s32.totalorder %s15, 1
        %s5784 = scalar_select %p5783, %s15, 1
        %s5785 = smul.addr %s5784, 32
        %s5786 = smul.addr %s5785, 8
        %s5787 = scalar_lea.vmem %s3, %s5786
      $region44: #{decoder_generator_forward.1} parent=39 // pred_fallthru
        _
    $region40: #{decoder_generator_forward.1} parent=5 // pred_fallthru
      _
  $region6: #{decoder_generator_forward.1} parent=0 // loop_footer
    %s13 = sadd.s32 1, %s9
  $region7: #{decoder_generator_forward.1} parent=0 // loop_footer_branch
    %8 = sbr.rel target = $region3
  $region8: #{decoder_generator_forward.1} parent=0 // loop_exit
    _

</llo_original>
